<compile_context>
chip_gen: v7x
topology: tpu7x:2x2x1
jax: 0.10.0
libtpu: 0.0.40
codegen_flags: <defaults>
</compile_context>

<pallas_src>
import jax
import jax.numpy as jnp
from jax.experimental import pallas as pl
from jax.experimental.pallas import tpu as pltpu


# ----------------------------- Pallas kernel -----------------------------

def mpnn_fused_kernel(xn_ref, gd_ref, gs_ref, a_ref,
                      w1i_ref, w1j_ref, b1_ref, w2_ref, b2_ref,
                      u1_ref, c1_ref, u2_ref, c2_ref, u3_ref, c3_ref,
                      out_ref):
    """One grid step == Tb fused time steps of the NRIDecoderUnit MPNN."""
    Tb, Nn, D = xn_ref.shape
    E = gd_ref.shape[0]
    Hp = w2_ref.shape[0]
    cdt = w2_ref.dtype                       # compute dtype (bf16 or f32)

    xn = xn_ref[...]                         # [Tb, Nn, D]  float32
    xf = xn.reshape(Tb * Nn, D)              # rows = (t, n); Nn is sublane-aligned
    xc = xf.astype(cdt)

    # message_net layer 1, algebraically split over cat(x_i, x_j):
    #   msg1[e] = relu(x[dst[e]] @ W1i + x[src[e]] @ W1j + b1)
    # b1 is folded into the dst branch only: the gather matrix is exactly
    # one-hot per edge, so the bias appears exactly once per (real) edge.
    pi = jnp.dot(xc, w1i_ref[...], preferred_element_type=jnp.float32) + b1_ref[...]
    pj = jnp.dot(xc, w1j_ref[...], preferred_element_type=jnp.float32)
    pi3 = pi.astype(cdt).reshape(Tb, Nn, Hp)
    pj3 = pj.astype(cdt).reshape(Tb, Nn, Hp)

    # gather node projections to edges: one-hot matmuls batched over time
    gd = jnp.broadcast_to(gd_ref[...], (Tb, E, Nn))
    gs = jnp.broadcast_to(gs_ref[...], (Tb, E, Nn))
    m = (jnp.einsum('ten,tnh->teh', gd, pi3, preferred_element_type=jnp.float32)
         + jnp.einsum('ten,tnh->teh', gs, pj3, preferred_element_type=jnp.float32))
    m = jnp.maximum(m, 0.0).astype(cdt).reshape(Tb * E, Hp)

    # message_net layer 2 (all Tb*E edge rows in a single MXU matmul)
    m = jnp.dot(m, w2_ref[...], preferred_element_type=jnp.float32) + b2_ref[...]
    m = jnp.maximum(m, 0.0).astype(cdt).reshape(Tb, E, Hp)

    # aggr='add': scatter-add messages onto dst nodes as a one-hot matmul
    # (padded-edge columns of A are zero, so padded edges contribute nothing)
    ab = jnp.broadcast_to(a_ref[...], (Tb, Nn, E))
    agg = jnp.einsum('tne,teh->tnh', ab, m, preferred_element_type=jnp.float32)
    agg = agg.astype(cdt).reshape(Tb * Nn, Hp)

    # update_net
    h = jnp.maximum(
        jnp.dot(agg, u1_ref[...], preferred_element_type=jnp.float32) + c1_ref[...], 0.0)
    h = jnp.maximum(
        jnp.dot(h.astype(cdt), u2_ref[...], preferred_element_type=jnp.float32) + c2_ref[...], 0.0)
    delta = jnp.dot(h.astype(cdt), u3_ref[...], preferred_element_type=jnp.float32) + c3_ref[...]

    # residual: out = x + delta_x   (float32)
    out_ref[...] = (xf + delta).reshape(Tb, Nn, D)


def mpnn_decoder_fused(xn_tmajor, Gd, Gs, A, pp, *, time_block):
    """xn_tmajor: [Tpad, Nn, D] f32, Gd/Gs: [E, Nn], A: [Nn, E]."""
    Tpad, Nn, D = xn_tmajor.shape
    E = Gd.shape[0]
    Hp = pp["W2"].shape[0]
    num_tb = Tpad // time_block

    def const(shape):
        return pl.BlockSpec(shape, lambda t: (0,) * len(shape))

    return pl.pallas_call(
        mpnn_fused_kernel,
        out_shape=jax.ShapeDtypeStruct((Tpad, Nn, D), jnp.float32),
        grid_spec=pltpu.PrefetchScalarGridSpec(
            num_scalar_prefetch=0,
            grid=(num_tb,),
            in_specs=[
                pl.BlockSpec((time_block, Nn, D), lambda t: (t, 0, 0)),   # node feats
                const((E, Nn)), const((E, Nn)), const((Nn, E)),           # Gd, Gs, A
                const((D, Hp)), const((D, Hp)), const((1, Hp)),           # W1i, W1j, b1
                const((Hp, Hp)), const((1, Hp)),                          # W2, b2
                const((Hp, Hp)), const((1, Hp)),                          # U1, c1
                const((Hp, Hp)), const((1, Hp)),                          # U2, c2
                const((Hp, D)), const((1, D)),                            # U3, c3
            ],
            out_specs=pl.BlockSpec((time_block, Nn, D), lambda t: (t, 0, 0)),
        ),
        compiler_params=pltpu.CompilerParams(
            dimension_semantics=("parallel",),          # time blocks shard across TCs
            vmem_limit_bytes=32 * 1024 * 1024,          # raise v5e's 16 MiB default
        ),
    )(xn_tmajor, Gd, Gs, A,
      pp["W1i"], pp["W1j"], pp["b1"], pp["W2"], pp["b2"],
      pp["U1"], pp["c1"], pp["U2"], pp["c2"], pp["U3"], pp["c3"])


# ----------------------------- plain-JAX glue -----------------------------

def _round_up(n, m):
    return ((n + m - 1) // m) * m


def prepare_params(params, D, compute_dtype):
    """Split W1 into (x_i, x_j) halves, zero-pad H to a multiple of 128 lanes,
    cast weights to the compute dtype (biases stay f32)."""
    H = params["W2"].shape[0]
    Hp = _round_up(H, 128)

    def padc(m):  # pad columns (output features) up to Hp
        return jnp.pad(m, ((0, 0), (0, Hp - m.shape[1])))

    def padr(m):  # pad rows (input features) up to Hp
        return jnp.pad(m, ((0, Hp - m.shape[0]), (0, 0)))

    W1 = params["W1"]                      # [2D, H]
    return dict(
        W1i=padc(W1[:D]).astype(compute_dtype),
        W1j=padc(W1[D:]).astype(compute_dtype),
        b1=padc(params["b1"]),
        W2=padc(padr(params["W2"])).astype(compute_dtype),
        b2=padc(params["b2"]),
        U1=padc(padr(params["U1"])).astype(compute_dtype),
        c1=padc(params["c1"]),
        U2=padc(padr(params["U2"])).astype(compute_dtype),
        c2=padc(params["c2"]),
        U3=padr(params["U3"]).astype(compute_dtype),
        c3=params["c3"],
    )


def nri_decoder_forward(x, x_attr, y, y_attr, edge_index, params, *,
                        time_block=8, compute_dtype=jnp.bfloat16):
    """NRIDecoder.forward, mpnn branch with teacher forcing.

    x/x_attr: [B, T_in, N, Fx/Fa],  y/y_attr: [B, T_out, N, Fx/Fa]
    edge_index: [2, E] int32 indices into the flattened B*N nodes.
    Returns: [B, T_out, N, D] with D = Fx + Fa.
    """
    B, Tin, N, _ = x.shape
    Tout = y.shape[1]
    Nn = B * N
    E = edge_index.shape[1]

    # x_input = cat(x, x_attr).permute(1,0,2,3).flatten(1,2)  -> [T_in, B*N, D]
    x_input = jnp.concatenate([x, x_attr], -1).transpose(1, 0, 2, 3).reshape(Tin, Nn, -1)
    y_input = jnp.concatenate([y, y_attr], -1).transpose(1, 0, 2, 3).reshape(Tout, Nn, -1)
    # teacher forcing shift: cat(x_input[-1:], y_input[:-1])   -> [T_out, Nn, D]
    y_input = jnp.concatenate([x_input[-1:], y_input[:-1]], axis=0)
    D = y_input.shape[-1]

    # sublane-friendly padding (exact; padded rows/cols are zero & sliced off)
    Tb = max(1, int(time_block))
    Tpad = _round_up(Tout, Tb)
    Nnp = _round_up(Nn, 8)
    Ep = _round_up(E, 8)
    xn = jnp.pad(y_input, ((0, Tpad - Tout), (0, Nnp - Nn), (0, 0)))    # [Tpad, Nnp, D]

    # one-hot gather (x_i = dst, x_j = src) and scatter-add (aggr='add' at dst)
    src, dst = edge_index[0], edge_index[1]
    node_ids = jnp.arange(Nn, dtype=edge_index.dtype)
    Gd = (dst[:, None] == node_ids[None, :]).astype(compute_dtype)      # [E, Nn]
    Gs = (src[:, None] == node_ids[None, :]).astype(compute_dtype)      # [E, Nn]
    Gd = jnp.pad(Gd, ((0, Ep - E), (0, Nnp - Nn)))                      # padded edges: zero rows
    Gs = jnp.pad(Gs, ((0, Ep - E), (0, Nnp - Nn)))
    A = Gd.T                                                            # [Nnp, Ep] (exact, 0/1)

    pp = prepare_params(params, D, compute_dtype)
    out_t = mpnn_decoder_fused(xn, Gd, Gs, A, pp, time_block=Tb)        # [Tpad, Nnp, D] f32
    out_t = out_t[:Tout, :Nn]

    # out.view(T_out, B, N, D).permute(1, 0, 2, 3)
    return out_t.reshape(Tout, B, N, D).transpose(1, 0, 2, 3)


# pure-JAX reference of the same branch (independent scatter via segment_sum)
def nri_decoder_reference(x, x_attr, y, y_attr, edge_index, params):
    B, Tin, N, _ = x.shape
    Tout = y.shape[1]
    Nn = B * N
    x_input = jnp.concatenate([x, x_attr], -1).transpose(1, 0, 2, 3).reshape(Tin, Nn, -1)
    y_input = jnp.concatenate([y, y_attr], -1).transpose(1, 0, 2, 3).reshape(Tout, Nn, -1)
    y_input = jnp.concatenate([x_input[-1:], y_input[:-1]], axis=0)
    xn = y_input.transpose(1, 0, 2)                                  # [Nn, T, D]
    src, dst = edge_index[0], edge_index[1]
    ef = jnp.concatenate([xn[dst], xn[src]], -1)
    relu = lambda v: jnp.maximum(v, 0.0)
    m = relu(ef @ params["W1"] + params["b1"])
    m = relu(m @ params["W2"] + params["b2"])
    agg = jax.ops.segment_sum(m, dst, num_segments=Nn)
    h = relu(agg @ params["U1"] + params["c1"])
    h = relu(h @ params["U2"] + params["c2"])
    delta = h @ params["U3"] + params["c3"]
    out = xn + delta
    return out.transpose(1, 0, 2).reshape(Tout, B, N, -1).transpose(1, 0, 2, 3)


def init_params(key, D, H):
    def linear(k, fan_in, fan_out):
        k1, k2 = jax.random.split(k)
        bound = 1.0 / jnp.sqrt(jnp.float32(fan_in))
        W = jax.random.uniform(k1, (fan_in, fan_out), jnp.float32, -bound, bound)
        b = jax.random.uniform(k2, (1, fan_out), jnp.float32, -bound, bound)
        return W, b

    keys = jax.random.split(key, 5)
    W1, b1 = linear(keys[0], 2 * D, H)   # message_net Linear(2*input, hidden)
    W2, b2 = linear(keys[1], H, H)       # message_net Linear(hidden, hidden)
    U1, c1 = linear(keys[2], H, H)       # update_net  Linear(hidden, hidden)
    U2, c2 = linear(keys[3], H, H)       # update_net  Linear(hidden, hidden)
    U3, c3 = linear(keys[4], H, D)       # update_net  Linear(hidden, output)
    return dict(W1=W1, b1=b1, W2=W2, b2=b2,
                U1=U1, c1=c1, U2=U2, c2=c2, U3=U3, c3=c3)


if __name__ == "__main__":
    B, N = 2, 4
    Fx, Fa = 3, 1
    D = Fx + Fa           # input_size == output_size (required by the residual)
    H = 32
    Tin, Tout = 4, 12     # Tout pads to 16 -> 2 fused time-blocks on the grid

    key = jax.random.PRNGKey(0)
    kx, kxa, ky, kya, kp = jax.random.split(key, 5)
    x = jax.random.normal(kx, (B, Tin, N, Fx), jnp.float32)
    x_attr = jax.random.normal(kxa, (B, Tin, N, Fa), jnp.float32)
    y = jax.random.normal(ky, (B, Tout, N, Fx), jnp.float32)
    y_attr = jax.random.normal(kya, (B, Tout, N, Fa), jnp.float32)

    # fully-connected (no self-loops) directed edges within each batch block
    edges = []
    for b in range(B):
        for i in range(N):
            for j in range(N):
                if i != j:
                    edges.append((b * N + j, b * N + i))   # (src, dst)
    edge_index = jnp.asarray(edges, dtype=jnp.int32).T      # [2, E], E = 24

    params = init_params(kp, D, H)
    ref = nri_decoder_reference(x, x_attr, y, y_attr, edge_index, params)

    # f32 run: validates structure (one-hot gather/scatter, padding, layout)
    out_f32 = jax.block_until_ready(
        nri_decoder_forward(x, x_attr, y, y_attr, edge_index, params,
                            compute_dtype=jnp.float32))
    assert out_f32.shape == (B, Tout, N, D), out_f32.shape
    assert jnp.allclose(out_f32, ref, atol=1e-4, rtol=1e-4), "f32 mismatch vs reference"

    # bf16 run: performance configuration (bf16 MXU, f32 accumulation)
    out_bf16 = jax.block_until_ready(
        nri_decoder_forward(x, x_attr, y, y_attr, edge_index, params,
                            compute_dtype=jnp.bfloat16))
    assert out_bf16.shape == (B, Tout, N, D), out_bf16.shape
    assert jnp.allclose(out_bf16, ref, atol=5e-2, rtol=5e-2), "bf16 mismatch vs reference"

    # TODO(synk): autoregressive (eval / curriculum-learning) rollout with RNG
    # scheduled sampling is host-side control flow; GRU branch not implemented.
    print("KERNEL_OK")
</pallas_src>

<mosaic_0001>
module attributes {stable_mosaic.version = 11 : i64} {
  func.func @mpnn_fused_kernel(%arg0: i32, %arg1: memref<8x8x4xf32, #tpu.memory_space<vmem>>, %arg2: memref<24x8xf32, #tpu.memory_space<vmem>>, %arg3: memref<24x8xf32, #tpu.memory_space<vmem>>, %arg4: memref<8x24xf32, #tpu.memory_space<vmem>>, %arg5: memref<4x128xf32, #tpu.memory_space<vmem>>, %arg6: memref<4x128xf32, #tpu.memory_space<vmem>>, %arg7: memref<1x128xf32, #tpu.memory_space<vmem>>, %arg8: memref<128x128xf32, #tpu.memory_space<vmem>>, %arg9: memref<1x128xf32, #tpu.memory_space<vmem>>, %arg10: memref<128x128xf32, #tpu.memory_space<vmem>>, %arg11: memref<1x128xf32, #tpu.memory_space<vmem>>, %arg12: memref<128x128xf32, #tpu.memory_space<vmem>>, %arg13: memref<1x128xf32, #tpu.memory_space<vmem>>, %arg14: memref<128x4xf32, #tpu.memory_space<vmem>>, %arg15: memref<1x4xf32, #tpu.memory_space<vmem>>, %arg16: memref<8x8x4xf32, #tpu.memory_space<vmem>>) attributes {dimension_semantics = [#tpu.dimension_semantics<parallel>], iteration_bounds = array<i64: 2>, scalar_prefetch = 0 : i64, scratch_operands = 0 : i64, tpu.core_type = #tpu.core_type<tc>, window_params = [{transform_indices = @transform_0, window_bounds = array<i64: 8, 8, 4>}, {pipeline_mode = #tpu.pipeline_mode<synchronous>, transform_indices = @transform_1, window_bounds = array<i64: 24, 8>}, {pipeline_mode = #tpu.pipeline_mode<synchronous>, transform_indices = @transform_2, window_bounds = array<i64: 24, 8>}, {pipeline_mode = #tpu.pipeline_mode<synchronous>, transform_indices = @transform_3, window_bounds = array<i64: 8, 24>}, {pipeline_mode = #tpu.pipeline_mode<synchronous>, transform_indices = @transform_4, window_bounds = array<i64: 4, 128>}, {pipeline_mode = #tpu.pipeline_mode<synchronous>, transform_indices = @transform_5, window_bounds = array<i64: 4, 128>}, {pipeline_mode = #tpu.pipeline_mode<synchronous>, transform_indices = @transform_6, window_bounds = array<i64: 1, 128>}, {pipeline_mode = #tpu.pipeline_mode<synchronous>, transform_indices = @transform_7, window_bounds = array<i64: 128, 128>}, {pipeline_mode = #tpu.pipeline_mode<synchronous>, transform_indices = @transform_8, window_bounds = array<i64: 1, 128>}, {pipeline_mode = #tpu.pipeline_mode<synchronous>, transform_indices = @transform_9, window_bounds = array<i64: 128, 128>}, {pipeline_mode = #tpu.pipeline_mode<synchronous>, transform_indices = @transform_10, window_bounds = array<i64: 1, 128>}, {pipeline_mode = #tpu.pipeline_mode<synchronous>, transform_indices = @transform_11, window_bounds = array<i64: 128, 128>}, {pipeline_mode = #tpu.pipeline_mode<synchronous>, transform_indices = @transform_12, window_bounds = array<i64: 1, 128>}, {pipeline_mode = #tpu.pipeline_mode<synchronous>, transform_indices = @transform_13, window_bounds = array<i64: 128, 4>}, {pipeline_mode = #tpu.pipeline_mode<synchronous>, transform_indices = @transform_14, window_bounds = array<i64: 1, 4>}, {transform_indices = @transform_15, window_bounds = array<i64: 8, 8, 4>}]} {
    %c0 = arith.constant 0 : index
    %c0_0 = arith.constant 0 : index
    %c0_1 = arith.constant 0 : index
    %0 = vector.load %arg1[%c0, %c0_0, %c0_1] : memref<8x8x4xf32, #tpu.memory_space<vmem>>, vector<8x8x4xf32>
    %1 = vector.shape_cast %0 : vector<8x8x4xf32> to vector<64x4xf32>
    %c0_2 = arith.constant 0 : index
    %c0_3 = arith.constant 0 : index
    %2 = vector.load %arg5[%c0_2, %c0_3] : memref<4x128xf32, #tpu.memory_space<vmem>>, vector<4x128xf32>
    %cst = arith.constant dense<0.000000e+00> : vector<64x128xf32>
    %3 = tpu.matmul %1, %2, %cst {dimension_numbers = #tpu.dot_dimension_numbers<[1], [0], [0], [1], [0, 0, 1, 1], [], []>} : vector<64x4xf32>, vector<4x128xf32>, vector<64x128xf32> -> vector<64x128xf32>
    %c0_4 = arith.constant 0 : index
    %c0_5 = arith.constant 0 : index
    %4 = vector.load %arg7[%c0_4, %c0_5] : memref<1x128xf32, #tpu.memory_space<vmem>>, vector<1x128xf32>
    %5 = vector.broadcast %4 : vector<1x128xf32> to vector<64x128xf32>
    %6 = arith.addf %3, %5 : vector<64x128xf32>
    %c0_6 = arith.constant 0 : index
    %c0_7 = arith.constant 0 : index
    %7 = vector.load %arg6[%c0_6, %c0_7] : memref<4x128xf32, #tpu.memory_space<vmem>>, vector<4x128xf32>
    %cst_8 = arith.constant dense<0.000000e+00> : vector<64x128xf32>
    %8 = tpu.matmul %1, %7, %cst_8 {dimension_numbers = #tpu.dot_dimension_numbers<[1], [0], [0], [1], [0, 0, 1, 1], [], []>} : vector<64x4xf32>, vector<4x128xf32>, vector<64x128xf32> -> vector<64x128xf32>
    %9 = vector.shape_cast %6 : vector<64x128xf32> to vector<8x8x128xf32>
    %10 = vector.shape_cast %8 : vector<64x128xf32> to vector<8x8x128xf32>
    %c0_9 = arith.constant 0 : index
    %c0_10 = arith.constant 0 : index
    %11 = vector.load %arg2[%c0_9, %c0_10] : memref<24x8xf32, #tpu.memory_space<vmem>>, vector<24x8xf32>
    %12 = vector.shape_cast %11 : vector<24x8xf32> to vector<1x24x8xf32>
    %13 = vector.broadcast %12 : vector<1x24x8xf32> to vector<8x24x8xf32>
    %c0_11 = arith.constant 0 : index
    %c0_12 = arith.constant 0 : index
    %14 = vector.load %arg3[%c0_11, %c0_12] : memref<24x8xf32, #tpu.memory_space<vmem>>, vector<24x8xf32>
    %15 = vector.shape_cast %14 : vector<24x8xf32> to vector<1x24x8xf32>
    %16 = vector.broadcast %15 : vector<1x24x8xf32> to vector<8x24x8xf32>
    "tpu.trace_start"() <{level = 10 : i32, message = "ten,tnh->teh"}> : () -> ()
    %cst_13 = arith.constant dense<0.000000e+00> : vector<8x24x128xf32>
    %17 = tpu.matmul %13, %9, %cst_13 {dimension_numbers = #tpu.dot_dimension_numbers<[2], [1], [1], [2], [0, 0, 0, 1, 1, 2], [0], [0]>} : vector<8x24x8xf32>, vector<8x8x128xf32>, vector<8x24x128xf32> -> vector<8x24x128xf32>
    %cst_14 = arith.constant dense<0.000000e+00> : vector<8x24x128xf32>
    %18 = tpu.matmul %16, %10, %cst_14 {dimension_numbers = #tpu.dot_dimension_numbers<[2], [1], [1], [2], [0, 0, 0, 1, 1, 2], [0], [0]>} : vector<8x24x8xf32>, vector<8x8x128xf32>, vector<8x24x128xf32> -> vector<8x24x128xf32>
    "tpu.trace_stop"() : () -> ()
    %19 = arith.addf %17, %18 : vector<8x24x128xf32>
    %cst_15 = arith.constant 0.000000e+00 : f32
    %20 = vector.broadcast %cst_15 : f32 to vector<8x24x128xf32>
    %21 = arith.maximumf %19, %20 : vector<8x24x128xf32>
    %22 = vector.shape_cast %21 : vector<8x24x128xf32> to vector<192x128xf32>
    %c0_16 = arith.constant 0 : index
    %c0_17 = arith.constant 0 : index
    %23 = vector.load %arg8[%c0_16, %c0_17] : memref<128x128xf32, #tpu.memory_space<vmem>>, vector<128x128xf32>
    %cst_18 = arith.constant dense<0.000000e+00> : vector<192x128xf32>
    %24 = tpu.matmul %22, %23, %cst_18 {dimension_numbers = #tpu.dot_dimension_numbers<[1], [0], [0], [1], [0, 0, 1, 1], [], []>} : vector<192x128xf32>, vector<128x128xf32>, vector<192x128xf32> -> vector<192x128xf32>
    %c0_19 = arith.constant 0 : index
    %c0_20 = arith.constant 0 : index
    %25 = vector.load %arg9[%c0_19, %c0_20] : memref<1x128xf32, #tpu.memory_space<vmem>>, vector<1x128xf32>
    %26 = vector.broadcast %25 : vector<1x128xf32> to vector<192x128xf32>
    %27 = arith.addf %24, %26 : vector<192x128xf32>
    %cst_21 = arith.constant 0.000000e+00 : f32
    %28 = vector.broadcast %cst_21 : f32 to vector<192x128xf32>
    %29 = arith.maximumf %27, %28 : vector<192x128xf32>
    %30 = vector.shape_cast %29 : vector<192x128xf32> to vector<8x24x128xf32>
    %c0_22 = arith.constant 0 : index
    %c0_23 = arith.constant 0 : index
    %31 = vector.load %arg4[%c0_22, %c0_23] : memref<8x24xf32, #tpu.memory_space<vmem>>, vector<8x24xf32>
    %32 = vector.shape_cast %31 : vector<8x24xf32> to vector<1x8x24xf32>
    %33 = vector.broadcast %32 : vector<1x8x24xf32> to vector<8x8x24xf32>
    "tpu.trace_start"() <{level = 10 : i32, message = "tne,teh->tnh"}> : () -> ()
    %cst_24 = arith.constant dense<0.000000e+00> : vector<8x8x128xf32>
    %34 = tpu.matmul %33, %30, %cst_24 {dimension_numbers = #tpu.dot_dimension_numbers<[2], [1], [1], [2], [0, 0, 0, 1, 1, 2], [0], [0]>} : vector<8x8x24xf32>, vector<8x24x128xf32>, vector<8x8x128xf32> -> vector<8x8x128xf32>
    "tpu.trace_stop"() : () -> ()
    %35 = vector.shape_cast %34 : vector<8x8x128xf32> to vector<64x128xf32>
    %c0_25 = arith.constant 0 : index
    %c0_26 = arith.constant 0 : index
    %36 = vector.load %arg10[%c0_25, %c0_26] : memref<128x128xf32, #tpu.memory_space<vmem>>, vector<128x128xf32>
    %cst_27 = arith.constant dense<0.000000e+00> : vector<64x128xf32>
    %37 = tpu.matmul %35, %36, %cst_27 {dimension_numbers = #tpu.dot_dimension_numbers<[1], [0], [0], [1], [0, 0, 1, 1], [], []>} : vector<64x128xf32>, vector<128x128xf32>, vector<64x128xf32> -> vector<64x128xf32>
    %c0_28 = arith.constant 0 : index
    %c0_29 = arith.constant 0 : index
    %38 = vector.load %arg11[%c0_28, %c0_29] : memref<1x128xf32, #tpu.memory_space<vmem>>, vector<1x128xf32>
    %39 = vector.broadcast %38 : vector<1x128xf32> to vector<64x128xf32>
    %40 = arith.addf %37, %39 : vector<64x128xf32>
    %cst_30 = arith.constant 0.000000e+00 : f32
    %41 = vector.broadcast %cst_30 : f32 to vector<64x128xf32>
    %42 = arith.maximumf %40, %41 : vector<64x128xf32>
    %c0_31 = arith.constant 0 : index
    %c0_32 = arith.constant 0 : index
    %43 = vector.load %arg12[%c0_31, %c0_32] : memref<128x128xf32, #tpu.memory_space<vmem>>, vector<128x128xf32>
    %cst_33 = arith.constant dense<0.000000e+00> : vector<64x128xf32>
    %44 = tpu.matmul %42, %43, %cst_33 {dimension_numbers = #tpu.dot_dimension_numbers<[1], [0], [0], [1], [0, 0, 1, 1], [], []>} : vector<64x128xf32>, vector<128x128xf32>, vector<64x128xf32> -> vector<64x128xf32>
    %c0_34 = arith.constant 0 : index
    %c0_35 = arith.constant 0 : index
    %45 = vector.load %arg13[%c0_34, %c0_35] : memref<1x128xf32, #tpu.memory_space<vmem>>, vector<1x128xf32>
    %46 = vector.broadcast %45 : vector<1x128xf32> to vector<64x128xf32>
    %47 = arith.addf %44, %46 : vector<64x128xf32>
    %cst_36 = arith.constant 0.000000e+00 : f32
    %48 = vector.broadcast %cst_36 : f32 to vector<64x128xf32>
    %49 = arith.maximumf %47, %48 : vector<64x128xf32>
    %c0_37 = arith.constant 0 : index
    %c0_38 = arith.constant 0 : index
    %50 = vector.load %arg14[%c0_37, %c0_38] : memref<128x4xf32, #tpu.memory_space<vmem>>, vector<128x4xf32>
    %cst_39 = arith.constant dense<0.000000e+00> : vector<64x4xf32>
    %51 = tpu.matmul %49, %50, %cst_39 {dimension_numbers = #tpu.dot_dimension_numbers<[1], [0], [0], [1], [0, 0, 1, 1], [], []>} : vector<64x128xf32>, vector<128x4xf32>, vector<64x4xf32> -> vector<64x4xf32>
    %c0_40 = arith.constant 0 : index
    %c0_41 = arith.constant 0 : index
    %52 = vector.load %arg15[%c0_40, %c0_41] : memref<1x4xf32, #tpu.memory_space<vmem>>, vector<1x4xf32>
    %53 = vector.broadcast %52 : vector<1x4xf32> to vector<64x4xf32>
    %54 = arith.addf %51, %53 : vector<64x4xf32>
    %55 = arith.addf %1, %54 : vector<64x4xf32>
    %56 = vector.shape_cast %55 : vector<64x4xf32> to vector<8x8x4xf32>
    %c0_42 = arith.constant 0 : index
    %c0_43 = arith.constant 0 : index
    %c0_44 = arith.constant 0 : index
    %57 = vector.load %arg16[%c0_42, %c0_43, %c0_44] : memref<8x8x4xf32, #tpu.memory_space<vmem>>, vector<8x8x4xf32>
    tpu.vector_store %arg16[%c0_42, %c0_43, %c0_44], %56 {strides = array<i32>} : memref<8x8x4xf32, #tpu.memory_space<vmem>>, vector<8x8x4xf32>,
    return
  }
  func.func @transform_0(%arg0: i32) -> (i32, i32, i32) {
    %c0_i32 = arith.constant 0 : i32
    %c0_i32_0 = arith.constant 0 : i32
    %c0_i32_1 = arith.constant 0 : i32
    return %arg0, %c0_i32, %c0_i32_0 : i32, i32, i32
  }
  func.func @transform_1(%arg0: i32) -> (i32, i32) {
    %c0_i32 = arith.constant 0 : i32
    %c0_i32_0 = arith.constant 0 : i32
    %c0_i32_1 = arith.constant 0 : i32
    return %c0_i32, %c0_i32_0 : i32, i32
  }
  func.func @transform_2(%arg0: i32) -> (i32, i32) {
    %c0_i32 = arith.constant 0 : i32
    %c0_i32_0 = arith.constant 0 : i32
    %c0_i32_1 = arith.constant 0 : i32
    return %c0_i32, %c0_i32_0 : i32, i32
  }
  func.func @transform_3(%arg0: i32) -> (i32, i32) {
    %c0_i32 = arith.constant 0 : i32
    %c0_i32_0 = arith.constant 0 : i32
    %c0_i32_1 = arith.constant 0 : i32
    return %c0_i32, %c0_i32_0 : i32, i32
  }
  func.func @transform_4(%arg0: i32) -> (i32, i32) {
    %c0_i32 = arith.constant 0 : i32
    %c0_i32_0 = arith.constant 0 : i32
    %c0_i32_1 = arith.constant 0 : i32
    return %c0_i32, %c0_i32_0 : i32, i32
  }
  func.func @transform_5(%arg0: i32) -> (i32, i32) {
    %c0_i32 = arith.constant 0 : i32
    %c0_i32_0 = arith.constant 0 : i32
    %c0_i32_1 = arith.constant 0 : i32
    return %c0_i32, %c0_i32_0 : i32, i32
  }
  func.func @transform_6(%arg0: i32) -> (i32, i32) {
    %c0_i32 = arith.constant 0 : i32
    %c0_i32_0 = arith.constant 0 : i32
    %c0_i32_1 = arith.constant 0 : i32
    return %c0_i32, %c0_i32_0 : i32, i32
  }
  func.func @transform_7(%arg0: i32) -> (i32, i32) {
    %c0_i32 = arith.constant 0 : i32
    %c0_i32_0 = arith.constant 0 : i32
    %c0_i32_1 = arith.constant 0 : i32
    return %c0_i32, %c0_i32_0 : i32, i32
  }
  func.func @transform_8(%arg0: i32) -> (i32, i32) {
    %c0_i32 = arith.constant 0 : i32
    %c0_i32_0 = arith.constant 0 : i32
    %c0_i32_1 = arith.constant 0 : i32
    return %c0_i32, %c0_i32_0 : i32, i32
  }
  func.func @transform_9(%arg0: i32) -> (i32, i32) {
    %c0_i32 = arith.constant 0 : i32
    %c0_i32_0 = arith.constant 0 : i32
    %c0_i32_1 = arith.constant 0 : i32
    return %c0_i32, %c0_i32_0 : i32, i32
  }
  func.func @transform_10(%arg0: i32) -> (i32, i32) {
    %c0_i32 = arith.constant 0 : i32
    %c0_i32_0 = arith.constant 0 : i32
    %c0_i32_1 = arith.constant 0 : i32
    return %c0_i32, %c0_i32_0 : i32, i32
  }
  func.func @transform_11(%arg0: i32) -> (i32, i32) {
    %c0_i32 = arith.constant 0 : i32
    %c0_i32_0 = arith.constant 0 : i32
    %c0_i32_1 = arith.constant 0 : i32
    return %c0_i32, %c0_i32_0 : i32, i32
  }
  func.func @transform_12(%arg0: i32) -> (i32, i32) {
    %c0_i32 = arith.constant 0 : i32
    %c0_i32_0 = arith.constant 0 : i32
    %c0_i32_1 = arith.constant 0 : i32
    return %c0_i32, %c0_i32_0 : i32, i32
  }
  func.func @transform_13(%arg0: i32) -> (i32, i32) {
    %c0_i32 = arith.constant 0 : i32
    %c0_i32_0 = arith.constant 0 : i32
    %c0_i32_1 = arith.constant 0 : i32
    return %c0_i32, %c0_i32_0 : i32, i32
  }
  func.func @transform_14(%arg0: i32) -> (i32, i32) {
    %c0_i32 = arith.constant 0 : i32
    %c0_i32_0 = arith.constant 0 : i32
    %c0_i32_1 = arith.constant 0 : i32
    return %c0_i32, %c0_i32_0 : i32, i32
  }
  func.func @transform_15(%arg0: i32) -> (i32, i32, i32) {
    %c0_i32 = arith.constant 0 : i32
    %c0_i32_0 = arith.constant 0 : i32
    %c0_i32_1 = arith.constant 0 : i32
    return %arg0, %c0_i32, %c0_i32_0 : i32, i32, i32
  }
}

</mosaic_0001>

<llo_original>
// kernel: tpu_custom_call.1
$region0: #{tpu_custom_call.1}
  #allocation0 [shape = 'u32[]', space=smem, size = 0x4, offset = 0x4, fixed_abs, tag = 'smem constant byte address 0x4 - core index']
  #allocation1 [shape = 'u32[144,128]{1,0:T(1,128)}', space=vmem, size = 0x12000, scoped, tag = 'internal scratch']
  %s0 = inlined_call_operand.vmem [shape: f32[16,8,4], index: 0, kind: input, shape index: {}]
  %s1 = inlined_call_operand.vmem [shape: f32[24,8], index: 1, kind: input, shape index: {}]
  %s2 = inlined_call_operand.vmem [shape: f32[24,8], index: 2, kind: input, shape index: {}]
  %s3 = inlined_call_operand.hbm [shape: f32[8,24], index: 3, kind: input, shape index: {}]
  %s4 = inlined_call_operand.hbm [shape: f32[4,128], index: 4, kind: input, shape index: {}]
  %s5 = inlined_call_operand.hbm [shape: f32[4,128], index: 5, kind: input, shape index: {}]
  %s6 = inlined_call_operand.vmem [shape: f32[1,128], index: 6, kind: input, shape index: {}]
  %s7 = inlined_call_operand.vmem [shape: f32[128,128], index: 7, kind: input, shape index: {}]
  %s8 = inlined_call_operand.vmem [shape: f32[1,128], index: 8, kind: input, shape index: {}]
  %s9 = inlined_call_operand.vmem [shape: f32[128,128], index: 9, kind: input, shape index: {}]
  %s10 = inlined_call_operand.vmem [shape: f32[1,128], index: 10, kind: input, shape index: {}]
  %s11 = inlined_call_operand.vmem [shape: f32[128,128], index: 11, kind: input, shape index: {}]
  %s12 = inlined_call_operand.vmem [shape: f32[1,128], index: 12, kind: input, shape index: {}]
  %s13 = inlined_call_operand.vmem [shape: f32[128,4], index: 13, kind: input, shape index: {}]
  %s14 = inlined_call_operand.vmem [shape: f32[1,4], index: 14, kind: input, shape index: {}]
  %s15 = inlined_call_operand.vmem [shape: f32[16,8,4], index: 15, kind: output, shape index: {}]
  %s16 = sld [smem:[#allocation0]]
  $region105: #{tpu_custom_call.1} parent=0
    _
  %s18 = ssub.s32 1, %s16
  %s19 = scalar_select 0, %s18, %s16
  $region1: #{tpu_custom_call.1} parent=0
    #allocation2 [shape = 'u8[4096]{0}', space=vmem, size = 0x1000, scoped, tag = 'input window, operand 3, single buffered']
    #allocation3 [shape = 's32[2]{0}', space=sflag, size = 0x8, scoped, tag = 'scoped memory for tpu_custom_call.1']
    #allocation4 [shape = 'u8[2048]{0}', space=vmem, size = 0x800, scoped, tag = 'input window, operand 4, single buffered']
    #allocation5 [shape = 's32[1]{0}', space=sflag, size = 0x4, scoped, tag = 'scoped memory for tpu_custom_call.1']
    #allocation6 [shape = 'u8[2048]{0}', space=vmem, size = 0x800, scoped, tag = 'input window, operand 5, single buffered']
    %20 = vsyncpa [#allocation3], 0
    %21 = vsyncpa [#allocation5], 0
    loop: start=0, step=1, limit=4
    $region2: #{tpu_custom_call.1} parent=1 // loop_pre_header
      _
    $region3: #{tpu_custom_call.1} parent=1 // loop_header
      %s23 = sphi 0, %s27
      %p24 = scmp.ge.s32.totalorder %s23, 4
      %s33 = sphi 0, %s35
      %s36 = sphi 0, %s33
      %s37 = sphi 0, %s36
      %s53 = sphi 0, %s37
      %s57 = sphi 0, %s57
      %s59 = sphi 0, %s57
      %s60 = sphi 0, %s59
      %s74 = sphi 0, %s60
      %s78 = sphi 0, %s78
      %s80 = sphi 0, %s78
      %s81 = sphi 0, %s80
      %s95 = sphi 0, %s81
      %s99 = sphi 0, %s99
      %s101 = sphi 0, %s99
      %s102 = sphi 0, %s101
      %s116 = sphi 0, %s102
      %s120 = sphi 0, %s120
      %s122 = sphi 0, %s120
      %s123 = sphi 0, %s122
      %s137 = sphi 0, %s123
      %s141 = sphi 0, %s141
      %s143 = sphi 0, %s141
      %s144 = sphi 0, %s143
      %s158 = sphi 0, %s144
      %s162 = sphi 0, %s162
      %s164 = sphi 0, %s162
      %s165 = sphi 0, %s164
      %s179 = sphi 0, %s165
      %s183 = sphi 0, %s183
      %s185 = sphi 0, %s183
      %s186 = sphi 0, %s185
      %s200 = sphi 0, %s186
      %s204 = sphi 0, %s204
      %s206 = sphi 0, %s204
      %s207 = sphi 0, %s206
      %s221 = sphi 0, %s207
      %s225 = sphi 0, %s225
      %s227 = sphi 0, %s225
      %s228 = sphi 0, %s227
      %s242 = sphi 0, %s228
      %s246 = sphi 0, %s246
      %s248 = sphi 0, %s246
      %s249 = sphi 0, %s248
      %s263 = sphi 0, %s249
      %s267 = sphi 0, %s267
      %s269 = sphi 0, %s267
      %s270 = sphi 0, %s269
      %s284 = sphi 0, %s270
      %s288 = sphi 0, %s288
      %s290 = sphi 0, %s288
      %s291 = sphi 0, %s290
      %s305 = sphi 0, %s291
      %s309 = sphi 0, %s309
      %s311 = sphi 0, %s309
      %s312 = sphi 0, %s311
      %s326 = sphi 0, %s312
      %s330 = sphi 0, %s330
      %s332 = sphi 0, %s330
      %s333 = sphi 0, %s332
      %s347 = sphi 0, %s333
      %s353 = sphi 0, %s355
      %s356 = sphi 0, %s353
      %s357 = sphi 0, %s356
      %s373 = sphi 0, %s357
    $region4: #{tpu_custom_call.1} parent=1 // loop_header_branch
      %26 = sbr.rel (%p24) target = $region8
    $region5: #{tpu_custom_call.1} parent=1 // loop_body
      %s28 = ssub.s32 %s23, 1
      %s29 = ssub.s32 %s23, 2
      %s30 = sadd.s32 %s23, 1
      %s31 = ssub.s32 %s23, %s30
      %p32 = scmp.eq.s32.totalorder %s31, 0
      %s34 = sadd.s32 %s33, 1
      %s35 = scalar_select %p32, %s33, %s34
      %p38 = pneg %p32
      %p39 = scmp.eq.s32.totalorder %s23, 1
      %p40 = por %p38, %p39
      %p41 = scmp.ne.s32.totalorder %s33, %s36
      %p42 = scmp.eq.s32.totalorder %s23, 0
      %p43 = por %p41, %p42
      %p44 = scmp.ne.s32.totalorder %s33, %s36
      %p45 = scmp.eq.s32.totalorder %s28, 1
      %p46 = por %p44, %p45
      %p47 = scmp.ne.s32.totalorder %s36, %s37
      %p48 = scmp.eq.s32.totalorder %s28, 0
      %p49 = por %p47, %p48
      %p50 = scmp.ne.s32.totalorder %s36, %s37
      %p51 = scmp.eq.s32.totalorder %s29, 1
      %p52 = por %p50, %p51
      %p54 = scmp.ne.s32.totalorder %s37, %s53
      %p55 = scmp.eq.s32.totalorder %s29, 0
      %p56 = por %p54, %p55
      %s58 = sadd.s32 %s57, 1
      %p61 = scmp.eq.s32.totalorder %s23, 1
      %p62 = scmp.ne.s32.totalorder %s57, %s59
      %p63 = scmp.eq.s32.totalorder %s23, 0
      %p64 = por %p62, %p63
      %p65 = scmp.ne.s32.totalorder %s57, %s59
      %p66 = scmp.eq.s32.totalorder %s28, 1
      %p67 = por %p65, %p66
      %p68 = scmp.ne.s32.totalorder %s59, %s60
      %p69 = scmp.eq.s32.totalorder %s28, 0
      %p70 = por %p68, %p69
      %p71 = scmp.ne.s32.totalorder %s59, %s60
      %p72 = scmp.eq.s32.totalorder %s29, 1
      %p73 = por %p71, %p72
      %p75 = scmp.ne.s32.totalorder %s60, %s74
      %p76 = scmp.eq.s32.totalorder %s29, 0
      %p77 = por %p75, %p76
      %s79 = sadd.s32 %s78, 1
      %p82 = scmp.eq.s32.totalorder %s23, 1
      %p83 = scmp.ne.s32.totalorder %s78, %s80
      %p84 = scmp.eq.s32.totalorder %s23, 0
      %p85 = por %p83, %p84
      %p86 = scmp.ne.s32.totalorder %s78, %s80
      %p87 = scmp.eq.s32.totalorder %s28, 1
      %p88 = por %p86, %p87
      %p89 = scmp.ne.s32.totalorder %s80, %s81
      %p90 = scmp.eq.s32.totalorder %s28, 0
      %p91 = por %p89, %p90
      %p92 = scmp.ne.s32.totalorder %s80, %s81
      %p93 = scmp.eq.s32.totalorder %s29, 1
      %p94 = por %p92, %p93
      %p96 = scmp.ne.s32.totalorder %s81, %s95
      %p97 = scmp.eq.s32.totalorder %s29, 0
      %p98 = por %p96, %p97
      %s100 = sadd.s32 %s99, 1
      %p103 = scmp.eq.s32.totalorder %s23, 1
      %p104 = scmp.ne.s32.totalorder %s99, %s101
      %p105 = scmp.eq.s32.totalorder %s23, 0
      %p106 = por %p104, %p105
      %p107 = scmp.ne.s32.totalorder %s99, %s101
      %p108 = scmp.eq.s32.totalorder %s28, 1
      %p109 = por %p107, %p108
      %p110 = scmp.ne.s32.totalorder %s101, %s102
      %p111 = scmp.eq.s32.totalorder %s28, 0
      %p112 = por %p110, %p111
      %p113 = scmp.ne.s32.totalorder %s101, %s102
      %p114 = scmp.eq.s32.totalorder %s29, 1
      %p115 = por %p113, %p114
      %p117 = scmp.ne.s32.totalorder %s102, %s116
      %p118 = scmp.eq.s32.totalorder %s29, 0
      %p119 = por %p117, %p118
      %s121 = sadd.s32 %s120, 1
      %p124 = scmp.eq.s32.totalorder %s23, 1
      %p125 = scmp.ne.s32.totalorder %s120, %s122
      %p126 = scmp.eq.s32.totalorder %s23, 0
      %p127 = por %p125, %p126
      %p128 = scmp.ne.s32.totalorder %s120, %s122
      %p129 = scmp.eq.s32.totalorder %s28, 1
      %p130 = por %p128, %p129
      %p131 = scmp.ne.s32.totalorder %s122, %s123
      %p132 = scmp.eq.s32.totalorder %s28, 0
      %p133 = por %p131, %p132
      %p134 = scmp.ne.s32.totalorder %s122, %s123
      %p135 = scmp.eq.s32.totalorder %s29, 1
      %p136 = por %p134, %p135
      %p138 = scmp.ne.s32.totalorder %s123, %s137
      %p139 = scmp.eq.s32.totalorder %s29, 0
      %p140 = por %p138, %p139
      %s142 = sadd.s32 %s141, 1
      %p145 = scmp.eq.s32.totalorder %s23, 1
      %p146 = scmp.ne.s32.totalorder %s141, %s143
      %p147 = scmp.eq.s32.totalorder %s23, 0
      %p148 = por %p146, %p147
      %p149 = scmp.ne.s32.totalorder %s141, %s143
      %p150 = scmp.eq.s32.totalorder %s28, 1
      %p151 = por %p149, %p150
      %p152 = scmp.ne.s32.totalorder %s143, %s144
      %p153 = scmp.eq.s32.totalorder %s28, 0
      %p154 = por %p152, %p153
      %p155 = scmp.ne.s32.totalorder %s143, %s144
      %p156 = scmp.eq.s32.totalorder %s29, 1
      %p157 = por %p155, %p156
      %p159 = scmp.ne.s32.totalorder %s144, %s158
      %p160 = scmp.eq.s32.totalorder %s29, 0
      %p161 = por %p159, %p160
      %s163 = sadd.s32 %s162, 1
      %p166 = scmp.eq.s32.totalorder %s23, 1
      %p167 = scmp.ne.s32.totalorder %s162, %s164
      %p168 = scmp.eq.s32.totalorder %s23, 0
      %p169 = por %p167, %p168
      %p170 = scmp.ne.s32.totalorder %s162, %s164
      %p171 = scmp.eq.s32.totalorder %s28, 1
      %p172 = por %p170, %p171
      %p173 = scmp.ne.s32.totalorder %s164, %s165
      %p174 = scmp.eq.s32.totalorder %s28, 0
      %p175 = por %p173, %p174
      %p176 = scmp.ne.s32.totalorder %s164, %s165
      %p177 = scmp.eq.s32.totalorder %s29, 1
      %p178 = por %p176, %p177
      %p180 = scmp.ne.s32.totalorder %s165, %s179
      %p181 = scmp.eq.s32.totalorder %s29, 0
      %p182 = por %p180, %p181
      %s184 = sadd.s32 %s183, 1
      %p187 = scmp.eq.s32.totalorder %s23, 1
      %p188 = scmp.ne.s32.totalorder %s183, %s185
      %p189 = scmp.eq.s32.totalorder %s23, 0
      %p190 = por %p188, %p189
      %p191 = scmp.ne.s32.totalorder %s183, %s185
      %p192 = scmp.eq.s32.totalorder %s28, 1
      %p193 = por %p191, %p192
      %p194 = scmp.ne.s32.totalorder %s185, %s186
      %p195 = scmp.eq.s32.totalorder %s28, 0
      %p196 = por %p194, %p195
      %p197 = scmp.ne.s32.totalorder %s185, %s186
      %p198 = scmp.eq.s32.totalorder %s29, 1
      %p199 = por %p197, %p198
      %p201 = scmp.ne.s32.totalorder %s186, %s200
      %p202 = scmp.eq.s32.totalorder %s29, 0
      %p203 = por %p201, %p202
      %s205 = sadd.s32 %s204, 1
      %p208 = scmp.eq.s32.totalorder %s23, 1
      %p209 = scmp.ne.s32.totalorder %s204, %s206
      %p210 = scmp.eq.s32.totalorder %s23, 0
      %p211 = por %p209, %p210
      %p212 = scmp.ne.s32.totalorder %s204, %s206
      %p213 = scmp.eq.s32.totalorder %s28, 1
      %p214 = por %p212, %p213
      %p215 = scmp.ne.s32.totalorder %s206, %s207
      %p216 = scmp.eq.s32.totalorder %s28, 0
      %p217 = por %p215, %p216
      %p218 = scmp.ne.s32.totalorder %s206, %s207
      %p219 = scmp.eq.s32.totalorder %s29, 1
      %p220 = por %p218, %p219
      %p222 = scmp.ne.s32.totalorder %s207, %s221
      %p223 = scmp.eq.s32.totalorder %s29, 0
      %p224 = por %p222, %p223
      %s226 = sadd.s32 %s225, 1
      %p229 = scmp.eq.s32.totalorder %s23, 1
      %p230 = scmp.ne.s32.totalorder %s225, %s227
      %p231 = scmp.eq.s32.totalorder %s23, 0
      %p232 = por %p230, %p231
      %p233 = scmp.ne.s32.totalorder %s225, %s227
      %p234 = scmp.eq.s32.totalorder %s28, 1
      %p235 = por %p233, %p234
      %p236 = scmp.ne.s32.totalorder %s227, %s228
      %p237 = scmp.eq.s32.totalorder %s28, 0
      %p238 = por %p236, %p237
      %p239 = scmp.ne.s32.totalorder %s227, %s228
      %p240 = scmp.eq.s32.totalorder %s29, 1
      %p241 = por %p239, %p240
      %p243 = scmp.ne.s32.totalorder %s228, %s242
      %p244 = scmp.eq.s32.totalorder %s29, 0
      %p245 = por %p243, %p244
      %s247 = sadd.s32 %s246, 1
      %p250 = scmp.eq.s32.totalorder %s23, 1
      %p251 = scmp.ne.s32.totalorder %s246, %s248
      %p252 = scmp.eq.s32.totalorder %s23, 0
      %p253 = por %p251, %p252
      %p254 = scmp.ne.s32.totalorder %s246, %s248
      %p255 = scmp.eq.s32.totalorder %s28, 1
      %p256 = por %p254, %p255
      %p257 = scmp.ne.s32.totalorder %s248, %s249
      %p258 = scmp.eq.s32.totalorder %s28, 0
      %p259 = por %p257, %p258
      %p260 = scmp.ne.s32.totalorder %s248, %s249
      %p261 = scmp.eq.s32.totalorder %s29, 1
      %p262 = por %p260, %p261
      %p264 = scmp.ne.s32.totalorder %s249, %s263
      %p265 = scmp.eq.s32.totalorder %s29, 0
      %p266 = por %p264, %p265
      %s268 = sadd.s32 %s267, 1
      %p271 = scmp.eq.s32.totalorder %s23, 1
      %p272 = scmp.ne.s32.totalorder %s267, %s269
      %p273 = scmp.eq.s32.totalorder %s23, 0
      %p274 = por %p272, %p273
      %p275 = scmp.ne.s32.totalorder %s267, %s269
      %p276 = scmp.eq.s32.totalorder %s28, 1
      %p277 = por %p275, %p276
      %p278 = scmp.ne.s32.totalorder %s269, %s270
      %p279 = scmp.eq.s32.totalorder %s28, 0
      %p280 = por %p278, %p279
      %p281 = scmp.ne.s32.totalorder %s269, %s270
      %p282 = scmp.eq.s32.totalorder %s29, 1
      %p283 = por %p281, %p282
      %p285 = scmp.ne.s32.totalorder %s270, %s284
      %p286 = scmp.eq.s32.totalorder %s29, 0
      %p287 = por %p285, %p286
      %s289 = sadd.s32 %s288, 1
      %p292 = scmp.eq.s32.totalorder %s23, 1
      %p293 = scmp.ne.s32.totalorder %s288, %s290
      %p294 = scmp.eq.s32.totalorder %s23, 0
      %p295 = por %p293, %p294
      %p296 = scmp.ne.s32.totalorder %s288, %s290
      %p297 = scmp.eq.s32.totalorder %s28, 1
      %p298 = por %p296, %p297
      %p299 = scmp.ne.s32.totalorder %s290, %s291
      %p300 = scmp.eq.s32.totalorder %s28, 0
      %p301 = por %p299, %p300
      %p302 = scmp.ne.s32.totalorder %s290, %s291
      %p303 = scmp.eq.s32.totalorder %s29, 1
      %p304 = por %p302, %p303
      %p306 = scmp.ne.s32.totalorder %s291, %s305
      %p307 = scmp.eq.s32.totalorder %s29, 0
      %p308 = por %p306, %p307
      %s310 = sadd.s32 %s309, 1
      %p313 = scmp.eq.s32.totalorder %s23, 1
      %p314 = scmp.ne.s32.totalorder %s309, %s311
      %p315 = scmp.eq.s32.totalorder %s23, 0
      %p316 = por %p314, %p315
      %p317 = scmp.ne.s32.totalorder %s309, %s311
      %p318 = scmp.eq.s32.totalorder %s28, 1
      %p319 = por %p317, %p318
      %p320 = scmp.ne.s32.totalorder %s311, %s312
      %p321 = scmp.eq.s32.totalorder %s28, 0
      %p322 = por %p320, %p321
      %p323 = scmp.ne.s32.totalorder %s311, %s312
      %p324 = scmp.eq.s32.totalorder %s29, 1
      %p325 = por %p323, %p324
      %p327 = scmp.ne.s32.totalorder %s312, %s326
      %p328 = scmp.eq.s32.totalorder %s29, 0
      %p329 = por %p327, %p328
      %s331 = sadd.s32 %s330, 1
      %p334 = scmp.eq.s32.totalorder %s23, 1
      %p335 = scmp.ne.s32.totalorder %s330, %s332
      %p336 = scmp.eq.s32.totalorder %s23, 0
      %p337 = por %p335, %p336
      %p338 = scmp.ne.s32.totalorder %s330, %s332
      %p339 = scmp.eq.s32.totalorder %s28, 1
      %p340 = por %p338, %p339
      %p341 = scmp.ne.s32.totalorder %s332, %s333
      %p342 = scmp.eq.s32.totalorder %s28, 0
      %p343 = por %p341, %p342
      %p344 = scmp.ne.s32.totalorder %s332, %s333
      %p345 = scmp.eq.s32.totalorder %s29, 1
      %p346 = por %p344, %p345
      %p348 = scmp.ne.s32.totalorder %s333, %s347
      %p349 = scmp.eq.s32.totalorder %s29, 0
      %p350 = por %p348, %p349
      %s351 = ssub.s32 %s23, %s30
      %p352 = scmp.eq.s32.totalorder %s351, 0
      %s354 = sadd.s32 %s353, 1
      %s355 = scalar_select %p352, %s353, %s354
      %p358 = pneg %p352
      %p359 = scmp.eq.s32.totalorder %s23, 1
      %p360 = por %p358, %p359
      %p361 = scmp.ne.s32.totalorder %s353, %s356
      %p362 = scmp.eq.s32.totalorder %s23, 0
      %p363 = por %p361, %p362
      %p364 = scmp.ne.s32.totalorder %s353, %s356
      %p365 = scmp.eq.s32.totalorder %s28, 1
      %p366 = por %p364, %p365
      %p367 = scmp.ne.s32.totalorder %s356, %s357
      %p368 = scmp.eq.s32.totalorder %s28, 0
      %p369 = por %p367, %p368
      %p370 = scmp.ne.s32.totalorder %s356, %s357
      %p371 = scmp.eq.s32.totalorder %s29, 1
      %p372 = por %p370, %p371
      %p374 = scmp.ne.s32.totalorder %s357, %s373
      %p375 = scmp.eq.s32.totalorder %s29, 0
      %p376 = por %p374, %p375
      %p377 = scmp.le.s32.totalorder 1, %s23
      %p378 = scmp.lt.s32.totalorder %s23, 3
      %p379 = pnand %p377, %p378
      %p380 = pneg %p379
      // Predicated region
      $region9: #{tpu_custom_call.1} parent=5 // pred_check
        _
      $region10: #{tpu_custom_call.1} parent=5 // pred_check_branch
        %382 = sbr.rel (%p379) target = $region12
      $region11: #{tpu_custom_call.1} parent=5 // pred_region
        %s383 = ssub.s32 %s23, 1
        // Predicated region
        $region13: #{tpu_custom_call.1} parent=11 // pred_check
          %p384 = pneg %p70
        $region14: #{tpu_custom_call.1} parent=11 // pred_check_branch
          %386 = sbr.rel (%p384) target = $region16
        $region15: #{tpu_custom_call.1} parent=11 // pred_region
          _
        $region16: #{tpu_custom_call.1} parent=11 // pred_fallthru
          _
        // Predicated region
        $region17: #{tpu_custom_call.1} parent=11 // pred_check
          %p387 = pneg %p91
        $region18: #{tpu_custom_call.1} parent=11 // pred_check_branch
          %389 = sbr.rel (%p387) target = $region20
        $region19: #{tpu_custom_call.1} parent=11 // pred_region
          _
        $region20: #{tpu_custom_call.1} parent=11 // pred_fallthru
          _
        // Predicated region
        $region21: #{tpu_custom_call.1} parent=11 // pred_check
          %p390 = pneg %p112
        $region22: #{tpu_custom_call.1} parent=11 // pred_check_branch
          %392 = sbr.rel (%p390) target = $region24
        $region23: #{tpu_custom_call.1} parent=11 // pred_region
          %s394 = ssub.s32 128, 128
          %395 = vsyncadd [#allocation3], %s394
          %s397 = sshll.u32 [#allocation2], 4
          %s398 = int_to_ptr.vmem [resolvable:$true] %s397
          %400 = dma.hbm_to_vmem [thread:$0]  %s3, 128, %s398, [#allocation3]
        $region24: #{tpu_custom_call.1} parent=11 // pred_fallthru
          _
        // Predicated region
        $region25: #{tpu_custom_call.1} parent=11 // pred_check
          %p401 = pneg %p133
        $region26: #{tpu_custom_call.1} parent=11 // pred_check_branch
          %403 = sbr.rel (%p401) target = $region28
        $region27: #{tpu_custom_call.1} parent=11 // pred_region
          %s405 = ssub.s32 64, 64
          %406 = vsyncadd [#allocation5], %s405
          %s408 = sshll.u32 [#allocation4], 4
          %s409 = int_to_ptr.vmem [resolvable:$true] %s408
          %411 = dma.hbm_to_vmem [thread:$0]  %s4, 64, %s409, [#allocation5]
        $region28: #{tpu_custom_call.1} parent=11 // pred_fallthru
          _
        // Predicated region
        $region29: #{tpu_custom_call.1} parent=11 // pred_check
          %p412 = pneg %p154
        $region30: #{tpu_custom_call.1} parent=11 // pred_check_branch
          %414 = sbr.rel (%p412) target = $region32
        $region31: #{tpu_custom_call.1} parent=11 // pred_region
          %s416 = ssub.s32 64, 64
          %417 = vsyncadd [#allocation5], %s416
          %s419 = sshll.u32 [#allocation6], 4
          %s420 = int_to_ptr.vmem [resolvable:$true] %s419
          %422 = dma.hbm_to_vmem [thread:$0]  %s5, 64, %s420, [#allocation5]
        $region32: #{tpu_custom_call.1} parent=11 // pred_fallthru
          _
        // Predicated region
        $region33: #{tpu_custom_call.1} parent=11 // pred_check
          %p423 = pneg %p175
        $region34: #{tpu_custom_call.1} parent=11 // pred_check_branch
          %425 = sbr.rel (%p423) target = $region36
        $region35: #{tpu_custom_call.1} parent=11 // pred_region
          _
        $region36: #{tpu_custom_call.1} parent=11 // pred_fallthru
          _
        // Predicated region
        $region37: #{tpu_custom_call.1} parent=11 // pred_check
          %p426 = pneg %p196
        $region38: #{tpu_custom_call.1} parent=11 // pred_check_branch
          %428 = sbr.rel (%p426) target = $region40
        $region39: #{tpu_custom_call.1} parent=11 // pred_region
          _
        $region40: #{tpu_custom_call.1} parent=11 // pred_fallthru
          _
        // Predicated region
        $region41: #{tpu_custom_call.1} parent=11 // pred_check
          %p429 = pneg %p217
        $region42: #{tpu_custom_call.1} parent=11 // pred_check_branch
          %431 = sbr.rel (%p429) target = $region44
        $region43: #{tpu_custom_call.1} parent=11 // pred_region
          _
        $region44: #{tpu_custom_call.1} parent=11 // pred_fallthru
          _
        // Predicated region
        $region45: #{tpu_custom_call.1} parent=11 // pred_check
          %p432 = pneg %p238
        $region46: #{tpu_custom_call.1} parent=11 // pred_check_branch
          %434 = sbr.rel (%p432) target = $region48
        $region47: #{tpu_custom_call.1} parent=11 // pred_region
          _
        $region48: #{tpu_custom_call.1} parent=11 // pred_fallthru
          _
        // Predicated region
        $region49: #{tpu_custom_call.1} parent=11 // pred_check
          %p435 = pneg %p259
        $region50: #{tpu_custom_call.1} parent=11 // pred_check_branch
          %437 = sbr.rel (%p435) target = $region52
        $region51: #{tpu_custom_call.1} parent=11 // pred_region
          _
        $region52: #{tpu_custom_call.1} parent=11 // pred_fallthru
          _
        // Predicated region
        $region53: #{tpu_custom_call.1} parent=11 // pred_check
          %p438 = pneg %p280
        $region54: #{tpu_custom_call.1} parent=11 // pred_check_branch
          %440 = sbr.rel (%p438) target = $region56
        $region55: #{tpu_custom_call.1} parent=11 // pred_region
          _
        $region56: #{tpu_custom_call.1} parent=11 // pred_fallthru
          _
        // Predicated region
        $region57: #{tpu_custom_call.1} parent=11 // pred_check
          %p441 = pneg %p301
        $region58: #{tpu_custom_call.1} parent=11 // pred_check_branch
          %443 = sbr.rel (%p441) target = $region60
        $region59: #{tpu_custom_call.1} parent=11 // pred_region
          _
        $region60: #{tpu_custom_call.1} parent=11 // pred_fallthru
          _
        // Predicated region
        $region61: #{tpu_custom_call.1} parent=11 // pred_check
          %p444 = pneg %p322
        $region62: #{tpu_custom_call.1} parent=11 // pred_check_branch
          %446 = sbr.rel (%p444) target = $region64
        $region63: #{tpu_custom_call.1} parent=11 // pred_region
          _
        $region64: #{tpu_custom_call.1} parent=11 // pred_fallthru
          _
        // Predicated region
        $region65: #{tpu_custom_call.1} parent=11 // pred_check
          %p447 = pneg %p343
        $region66: #{tpu_custom_call.1} parent=11 // pred_check_branch
          %449 = sbr.rel (%p447) target = $region68
        $region67: #{tpu_custom_call.1} parent=11 // pred_region
          _
        $region68: #{tpu_custom_call.1} parent=11 // pred_fallthru
          _
      $region12: #{tpu_custom_call.1} parent=5 // pred_fallthru
        _
      %p450 = scmp.lt.s32.totalorder %s23, 2
      // Predicated region
      $region69: #{tpu_custom_call.1} parent=5 // pred_check
        %p451 = pneg %p450
      $region70: #{tpu_custom_call.1} parent=5 // pred_check_branch
        %453 = sbr.rel (%p451) target = $region72
      $region71: #{tpu_custom_call.1} parent=5 // pred_region
        // Predicated region
        $region73: #{tpu_custom_call.1} parent=71 // pred_check
          %p454 = pneg %p43
        $region74: #{tpu_custom_call.1} parent=71 // pred_check_branch
          %456 = sbr.rel (%p454) target = $region76
        $region75: #{tpu_custom_call.1} parent=71 // pred_region
          %s457 = smul.u32 8, %s23
          %p458 = scmp.lt.s32.totalorder %s457, 15
          %s459 = scalar_select %p458, %s457, 15
          %s460 = smul.addr %s459, 8
          %s461 = scalar_lea.vmem %s0, %s460
          %s462 = smul.u32 8, %s23
        $region76: #{tpu_custom_call.1} parent=71 // pred_fallthru
          _
      $region72: #{tpu_custom_call.1} parent=5 // pred_fallthru
        _
      %p463 = scmp.le.s32.totalorder 1, %s23
      %p464 = scmp.lt.s32.totalorder %s23, 3
      %p465 = pnand %p463, %p464
      %p466 = pneg %p465
      // Predicated region
      $region77: #{tpu_custom_call.1} parent=5 // pred_check
        _
      $region78: #{tpu_custom_call.1} parent=5 // pred_check_branch
        %468 = sbr.rel (%p465) target = $region80
      $region79: #{tpu_custom_call.1} parent=5 // pred_region
        %s469 = ssub.s32 %s23, 1
        // Predicated region
        $region81: #{tpu_custom_call.1} parent=79 // pred_check
          %p470 = pneg %p112
        $region82: #{tpu_custom_call.1} parent=79 // pred_check_branch
          %472 = sbr.rel (%p470) target = $region84
        $region83: #{tpu_custom_call.1} parent=79 // pred_region
          %473 = dma.done [#allocation3], 128
        $region84: #{tpu_custom_call.1} parent=79 // pred_fallthru
          _
        // Predicated region
        $region85: #{tpu_custom_call.1} parent=79 // pred_check
          %p474 = pneg %p133
        $region86: #{tpu_custom_call.1} parent=79 // pred_check_branch
          %476 = sbr.rel (%p474) target = $region88
        $region87: #{tpu_custom_call.1} parent=79 // pred_region
          %477 = dma.done [#allocation5], 64
        $region88: #{tpu_custom_call.1} parent=79 // pred_fallthru
          _
        // Predicated region
        $region89: #{tpu_custom_call.1} parent=79 // pred_check
          %p478 = pneg %p154
        $region90: #{tpu_custom_call.1} parent=79 // pred_check_branch
          %480 = sbr.rel (%p478) target = $region92
        $region91: #{tpu_custom_call.1} parent=79 // pred_region
          %481 = dma.done [#allocation5], 64
        $region92: #{tpu_custom_call.1} parent=79 // pred_fallthru
          _
        %s482 = smul.u32 8, %s28
        %p483 = scmp.lt.s32.totalorder %s482, 15
        %s484 = scalar_select %p483, %s482, 15
        %s485 = smul.addr %s484, 8
        %s486 = scalar_lea.vmem %s0, %s485
        %p487 = pneg %p49
        %p488 = pneg %p46
        %p489 = pneg %p70
        %p490 = pneg %p67
        %p491 = pneg %p91
        %p492 = pneg %p88
        %p493 = pneg %p112
        %p494 = pneg %p109
        %p495 = pneg %p133
        %p496 = pneg %p130
        %p497 = pneg %p154
        %p498 = pneg %p151
        %p499 = pneg %p175
        %p500 = pneg %p172
        %p501 = pneg %p196
        %p502 = pneg %p193
        %p503 = pneg %p217
        %p504 = pneg %p214
        %p505 = pneg %p238
        %p506 = pneg %p235
        %p507 = pneg %p259
        %p508 = pneg %p256
        %p509 = pneg %p280
        %p510 = pneg %p277
        %p511 = pneg %p301
        %p512 = pneg %p298
        %p513 = pneg %p322
        %p514 = pneg %p319
        %p515 = pneg %p343
        %p516 = pneg %p340
        %p517 = pneg %p369
        %p518 = pneg %p366
        %s519 = smul.u32 8, %s28
        %p520 = scmp.lt.s32.totalorder %s519, 15
        %s521 = scalar_select %p520, %s519, 15
        %s522 = smul.addr %s521, 8
        %s523 = scalar_lea.vmem %s15, %s522
        %s524 = smul.u32 8, %s28
        %p525 = scmp.lt.s32.totalorder %s524, 15
        %s526 = scalar_select %p525, %s524, 15
        %s527 = smul.addr %s526, 8
        %s528 = scalar_lea.vmem %s0, %s527
        %s529 = smul.u32 8, %s28
        %s530 = smul.u32 8, %s28
        %p531 = scmp.lt.s32.totalorder %s530, 15
        %s532 = scalar_select %p531, %s530, 15
        %s533 = smul.addr %s532, 8
        %s534 = scalar_lea.vmem %s15, %s533
        %s535 = smul.u32 8, %s28
        %v536 = vld [vmem:[%s528] sm:$0xff]
        %v537 = vld [vmem:[%s528 + $0x8] sm:$0xff]
        %v538 = vld [vmem:[%s528 + $0x10] sm:$0xff]
        %v539 = vld [vmem:[%s528 + $0x18] sm:$0xff]
        %v540 = vld [vmem:[%s528 + $0x20] sm:$0xff]
        %v541 = vld [vmem:[%s528 + $0x28] sm:$0xff]
        %v542 = vld [vmem:[%s528 + $0x30] sm:$0xff]
        %v543 = vld [vmem:[%s528 + $0x38] sm:$0xff]
        %v544 = vld [vmem:[#allocation4] sm:$0xf]
        %v545 = vld [vmem:[%s6] sm:$0x1]
        %v547 = vlaneseq
        %v548 = vshrl.u32 %v547, 7
        %v549 = vsub.s32 0, %v548
        %v550 = vrot.slane %v545, %v549
        %vm552 = vcmask 31744
        %v554 = vsel %vm552, %v536, 0
        %v557 = vsel %vm552, %v537, 0
        %v560 = vsel %vm552, %v538, 0
        %v563 = vsel %vm552, %v539, 0
        %v566 = vsel %vm552, %v540, 0
        %v569 = vsel %vm552, %v541, 0
        %v572 = vsel %vm552, %v542, 0
        %v575 = vsel %vm552, %v543, 0
        %vm577 = vcmask 1043456
        %v579 = vsel %vm577, %v544, 0
        %581 = vmatprep.subr.mxu0 0.0
        %582 = vmatpush1.msra.mxu0 %v579
        %583 = vmatprep.subr.mxu0 0.0
        %584 = vmatpush1.msra.mxu0 0.0
        %585 = vmatprep.subr.mxu0 0.0
        %586 = vmatpush1.msra.mxu0 0.0
        %587 = vmatprep.subr.mxu0 0.0
        %588 = vmatpush1.msra.mxu0 0.0
        %589 = vmatprep.subr.mxu0 0.0
        %590 = vmatpush1.msra.mxu0 0.0
        %591 = vmatprep.subr.mxu0 0.0
        %592 = vmatpush1.msra.mxu0 0.0
        %593 = vmatprep.subr.mxu0 0.0
        %594 = vmatpush1.msra.mxu0 0.0
        %595 = vmatprep.subr.mxu0 0.0
        %596 = vmatpush1.msra.mxu0 0.0
        %597 = vmatprep.subr.mxu0 0.0
        %598 = vmatpush1.msra.mxu0 0.0
        %599 = vmatprep.subr.mxu0 0.0
        %600 = vmatpush1.msra.mxu0 0.0
        %601 = vmatprep.subr.mxu0 0.0
        %602 = vmatpush1.msra.mxu0 0.0
        %603 = vmatprep.subr.mxu0 0.0
        %604 = vmatpush1.msra.mxu0 0.0
        %605 = vmatprep.subr.mxu0 0.0
        %606 = vmatpush1.msra.mxu0 0.0
        %607 = vmatprep.subr.mxu0 0.0
        %608 = vmatpush1.msra.mxu0 0.0
        %609 = vmatprep.subr.mxu0 0.0
        %610 = vmatpush1.msra.mxu0 0.0
        %611 = vmatprep.subr.mxu0 0.0
        %612 = vmatpush1.msra.mxu0 0.0
        %613 = vmatprep.subr.mxu0 0.0
        %614 = vmatpush1.msra.mxu0 0.0
        %615 = vmatprep.subr.mxu0 0.0
        %616 = vmatpush1.msra.mxu0 0.0
        %617 = vmatprep.subr.mxu0 0.0
        %618 = vmatpush1.msra.mxu0 0.0
        %619 = vmatprep.subr.mxu0 0.0
        %620 = vmatpush1.msra.mxu0 0.0
        %621 = vmatprep.subr.mxu0 0.0
        %622 = vmatpush1.msra.mxu0 0.0
        %623 = vmatprep.subr.mxu0 0.0
        %624 = vmatpush1.msra.mxu0 0.0
        %625 = vmatprep.subr.mxu0 0.0
        %626 = vmatpush1.msra.mxu0 0.0
        %627 = vmatprep.subr.mxu0 0.0
        %628 = vmatpush1.msra.mxu0 0.0
        %629 = vmatprep.subr.mxu0 0.0
        %630 = vmatpush1.msra.mxu0 0.0
        %631 = vmatprep.subr.mxu0 0.0
        %632 = vmatpush1.msra.mxu0 0.0
        %633 = vmatprep.subr.mxu0 0.0
        %634 = vmatpush1.msra.mxu0 0.0
        %635 = vmatprep.subr.mxu0 0.0
        %636 = vmatpush1.msra.mxu0 0.0
        %637 = vmatprep.subr.mxu0 0.0
        %638 = vmatpush1.msra.mxu0 0.0
        %639 = vmatprep.subr.mxu0 0.0
        %640 = vmatpush1.msra.mxu0 0.0
        %641 = vmatprep.subr.mxu0 0.0
        %642 = vmatpush1.msra.mxu0 0.0
        %643 = vmatprep.subr.mxu0 0.0
        %644 = vmatpush1.msra.mxu0 0.0
        %645 = vmatprep.mubr.f32.mxu0 0.0
        %646 = vmatmul.mubr.f32.gmra.mrb[0].mxu0 %v554
        %v647 = vpop.f32.mrb[0].mxu0
        %v648 = vadd.f32 %v550, %v647
        %v649 = vpop.f32.mrb[0].mxu0
        %650 = vmatprep.mubr.f32.mxu0 0.0
        %651 = vmatmul.mubr.f32.gmra.mrb[0].mxu0 %v557
        %v652 = vpop.f32.mrb[0].mxu0
        %v653 = vadd.f32 %v550, %v652
        %v654 = vpop.f32.mrb[0].mxu0
        %655 = vmatprep.mubr.f32.mxu0 0.0
        %656 = vmatmul.mubr.f32.gmra.mrb[0].mxu0 %v560
        %v657 = vpop.f32.mrb[0].mxu0
        %v658 = vadd.f32 %v550, %v657
        %v659 = vpop.f32.mrb[0].mxu0
        %660 = vmatprep.mubr.f32.mxu0 0.0
        %661 = vmatmul.mubr.f32.gmra.mrb[0].mxu0 %v563
        %v662 = vpop.f32.mrb[0].mxu0
        %v663 = vadd.f32 %v550, %v662
        %v664 = vpop.f32.mrb[0].mxu0
        %665 = vmatprep.mubr.f32.mxu0 0.0
        %666 = vmatmul.mubr.f32.gmra.mrb[0].mxu0 %v566
        %v667 = vpop.f32.mrb[0].mxu0
        %v668 = vadd.f32 %v550, %v667
        %v669 = vpop.f32.mrb[0].mxu0
        %670 = vmatprep.mubr.f32.mxu0 0.0
        %671 = vmatmul.mubr.f32.gmra.mrb[0].mxu0 %v569
        %v672 = vpop.f32.mrb[0].mxu0
        %v673 = vadd.f32 %v550, %v672
        %v674 = vpop.f32.mrb[0].mxu0
        %675 = vmatprep.mubr.f32.mxu0 0.0
        %676 = vmatmul.mubr.f32.gmra.mrb[0].mxu0 %v572
        %v677 = vpop.f32.mrb[0].mxu0
        %v678 = vadd.f32 %v550, %v677
        %v679 = vpop.f32.mrb[0].mxu0
        %680 = vmatprep.mubr.f32.mxu0 0.0
        %681 = vmatmul.mubr.f32.gmra.mrb[0].mxu0 %v575
        %v682 = vpop.f32.mrb[0].mxu0
        %v683 = vadd.f32 %v550, %v682
        %v684 = vpop.f32.mrb[0].mxu0
        %685 = vdwg.mxu0
        %v686 = vld [vmem:[#allocation6] sm:$0xf]
        %v688 = vsel %vm577, %v686, 0
        %690 = vmatprep.subr.mxu0 0.0
        %691 = vmatpush1.msra.mxu0 %v688
        %692 = vmatprep.subr.mxu0 0.0
        %693 = vmatpush1.msra.mxu0 0.0
        %694 = vmatprep.subr.mxu0 0.0
        %695 = vmatpush1.msra.mxu0 0.0
        %696 = vmatprep.subr.mxu0 0.0
        %697 = vmatpush1.msra.mxu0 0.0
        %698 = vmatprep.subr.mxu0 0.0
        %699 = vmatpush1.msra.mxu0 0.0
        %700 = vmatprep.subr.mxu0 0.0
        %701 = vmatpush1.msra.mxu0 0.0
        %702 = vmatprep.subr.mxu0 0.0
        %703 = vmatpush1.msra.mxu0 0.0
        %704 = vmatprep.subr.mxu0 0.0
        %705 = vmatpush1.msra.mxu0 0.0
        %706 = vmatprep.subr.mxu0 0.0
        %707 = vmatpush1.msra.mxu0 0.0
        %708 = vmatprep.subr.mxu0 0.0
        %709 = vmatpush1.msra.mxu0 0.0
        %710 = vmatprep.subr.mxu0 0.0
        %711 = vmatpush1.msra.mxu0 0.0
        %712 = vmatprep.subr.mxu0 0.0
        %713 = vmatpush1.msra.mxu0 0.0
        %714 = vmatprep.subr.mxu0 0.0
        %715 = vmatpush1.msra.mxu0 0.0
        %716 = vmatprep.subr.mxu0 0.0
        %717 = vmatpush1.msra.mxu0 0.0
        %718 = vmatprep.subr.mxu0 0.0
        %719 = vmatpush1.msra.mxu0 0.0
        %720 = vmatprep.subr.mxu0 0.0
        %721 = vmatpush1.msra.mxu0 0.0
        %722 = vmatprep.subr.mxu0 0.0
        %723 = vmatpush1.msra.mxu0 0.0
        %724 = vmatprep.subr.mxu0 0.0
        %725 = vmatpush1.msra.mxu0 0.0
        %726 = vmatprep.subr.mxu0 0.0
        %727 = vmatpush1.msra.mxu0 0.0
        %728 = vmatprep.subr.mxu0 0.0
        %729 = vmatpush1.msra.mxu0 0.0
        %730 = vmatprep.subr.mxu0 0.0
        %731 = vmatpush1.msra.mxu0 0.0
        %732 = vmatprep.subr.mxu0 0.0
        %733 = vmatpush1.msra.mxu0 0.0
        %734 = vmatprep.subr.mxu0 0.0
        %735 = vmatpush1.msra.mxu0 0.0
        %736 = vmatprep.subr.mxu0 0.0
        %737 = vmatpush1.msra.mxu0 0.0
        %738 = vmatprep.subr.mxu0 0.0
        %739 = vmatpush1.msra.mxu0 0.0
        %740 = vmatprep.subr.mxu0 0.0
        %741 = vmatpush1.msra.mxu0 0.0
        %742 = vmatprep.subr.mxu0 0.0
        %743 = vmatpush1.msra.mxu0 0.0
        %744 = vmatprep.subr.mxu0 0.0
        %745 = vmatpush1.msra.mxu0 0.0
        %746 = vmatprep.subr.mxu0 0.0
        %747 = vmatpush1.msra.mxu0 0.0
        %748 = vmatprep.subr.mxu0 0.0
        %749 = vmatpush1.msra.mxu0 0.0
        %750 = vmatprep.subr.mxu0 0.0
        %751 = vmatpush1.msra.mxu0 0.0
        %752 = vmatprep.subr.mxu0 0.0
        %753 = vmatpush1.msra.mxu0 0.0
        %754 = vmatprep.mubr.f32.mxu0 0.0
        %755 = vmatmul.mubr.f32.gmra.mrb[0].mxu0 %v554
        %v756 = vpop.f32.mrb[0].mxu0
        %v757 = vadd.f32 0.0, %v756
        %v758 = vpop.f32.mrb[0].mxu0
        %759 = vmatprep.mubr.f32.mxu0 0.0
        %760 = vmatmul.mubr.f32.gmra.mrb[0].mxu0 %v557
        %v761 = vpop.f32.mrb[0].mxu0
        %v762 = vadd.f32 0.0, %v761
        %v763 = vpop.f32.mrb[0].mxu0
        %764 = vmatprep.mubr.f32.mxu0 0.0
        %765 = vmatmul.mubr.f32.gmra.mrb[0].mxu0 %v560
        %v766 = vpop.f32.mrb[0].mxu0
        %v767 = vadd.f32 0.0, %v766
        %v768 = vpop.f32.mrb[0].mxu0
        %769 = vmatprep.mubr.f32.mxu0 0.0
        %770 = vmatmul.mubr.f32.gmra.mrb[0].mxu0 %v563
        %v771 = vpop.f32.mrb[0].mxu0
        %v772 = vadd.f32 0.0, %v771
        %v773 = vpop.f32.mrb[0].mxu0
        %774 = vmatprep.mubr.f32.mxu0 0.0
        %775 = vmatmul.mubr.f32.gmra.mrb[0].mxu0 %v566
        %v776 = vpop.f32.mrb[0].mxu0
        %v777 = vadd.f32 0.0, %v776
        %v778 = vpop.f32.mrb[0].mxu0
        %779 = vmatprep.mubr.f32.mxu0 0.0
        %780 = vmatmul.mubr.f32.gmra.mrb[0].mxu0 %v569
        %v781 = vpop.f32.mrb[0].mxu0
        %v782 = vadd.f32 0.0, %v781
        %v783 = vpop.f32.mrb[0].mxu0
        %784 = vmatprep.mubr.f32.mxu0 0.0
        %785 = vmatmul.mubr.f32.gmra.mrb[0].mxu0 %v572
        %v786 = vpop.f32.mrb[0].mxu0
        %v787 = vadd.f32 0.0, %v786
        %v788 = vpop.f32.mrb[0].mxu0
        %789 = vmatprep.mubr.f32.mxu0 0.0
        %790 = vmatmul.mubr.f32.gmra.mrb[0].mxu0 %v575
        %v791 = vpop.f32.mrb[0].mxu0
        %v792 = vadd.f32 0.0, %v791
        %v793 = vpop.f32.mrb[0].mxu0
        %794 = vdwg.mxu0
        %v795 = vld [vmem:[%s1] sm:$0xff]
        %v796 = vld [vmem:[%s1 + $0x8] sm:$0xff]
        %v797 = vld [vmem:[%s1 + $0x10] sm:$0xff]
        %v798 = vld [vmem:[%s2] sm:$0xff]
        %v799 = vld [vmem:[%s2 + $0x8] sm:$0xff]
        %v800 = vld [vmem:[%s2 + $0x10] sm:$0xff]
        %vm801 = vcmask 64512
        %v803 = vsel %vm801, %v798, 0
        %v806 = vsel %vm801, %v799, 0
        %v809 = vsel %vm801, %v800, 0
        %811 = vmatprep.subr.mxu0 0.0
        %812 = vmatpush1.msra.mxu0 %v757
        %813 = vmatprep.subr.mxu0 0.0
        %814 = vmatpush1.msra.mxu0 0.0
        %815 = vmatprep.subr.mxu0 0.0
        %816 = vmatpush1.msra.mxu0 0.0
        %817 = vmatprep.subr.mxu0 0.0
        %818 = vmatpush1.msra.mxu0 0.0
        %819 = vmatprep.subr.mxu0 0.0
        %820 = vmatpush1.msra.mxu0 0.0
        %821 = vmatprep.subr.mxu0 0.0
        %822 = vmatpush1.msra.mxu0 0.0
        %823 = vmatprep.subr.mxu0 0.0
        %824 = vmatpush1.msra.mxu0 0.0
        %825 = vmatprep.subr.mxu0 0.0
        %826 = vmatpush1.msra.mxu0 0.0
        %827 = vmatprep.subr.mxu0 0.0
        %828 = vmatpush1.msra.mxu0 0.0
        %829 = vmatprep.subr.mxu0 0.0
        %830 = vmatpush1.msra.mxu0 0.0
        %831 = vmatprep.subr.mxu0 0.0
        %832 = vmatpush1.msra.mxu0 0.0
        %833 = vmatprep.subr.mxu0 0.0
        %834 = vmatpush1.msra.mxu0 0.0
        %835 = vmatprep.subr.mxu0 0.0
        %836 = vmatpush1.msra.mxu0 0.0
        %837 = vmatprep.subr.mxu0 0.0
        %838 = vmatpush1.msra.mxu0 0.0
        %839 = vmatprep.subr.mxu0 0.0
        %840 = vmatpush1.msra.mxu0 0.0
        %841 = vmatprep.subr.mxu0 0.0
        %842 = vmatpush1.msra.mxu0 0.0
        %843 = vmatprep.subr.mxu0 0.0
        %844 = vmatpush1.msra.mxu0 0.0
        %845 = vmatprep.subr.mxu0 0.0
        %846 = vmatpush1.msra.mxu0 0.0
        %847 = vmatprep.subr.mxu0 0.0
        %848 = vmatpush1.msra.mxu0 0.0
        %849 = vmatprep.subr.mxu0 0.0
        %850 = vmatpush1.msra.mxu0 0.0
        %851 = vmatprep.subr.mxu0 0.0
        %852 = vmatpush1.msra.mxu0 0.0
        %853 = vmatprep.subr.mxu0 0.0
        %854 = vmatpush1.msra.mxu0 0.0
        %855 = vmatprep.subr.mxu0 0.0
        %856 = vmatpush1.msra.mxu0 0.0
        %857 = vmatprep.subr.mxu0 0.0
        %858 = vmatpush1.msra.mxu0 0.0
        %859 = vmatprep.subr.mxu0 0.0
        %860 = vmatpush1.msra.mxu0 0.0
        %861 = vmatprep.subr.mxu0 0.0
        %862 = vmatpush1.msra.mxu0 0.0
        %863 = vmatprep.subr.mxu0 0.0
        %864 = vmatpush1.msra.mxu0 0.0
        %865 = vmatprep.subr.mxu0 0.0
        %866 = vmatpush1.msra.mxu0 0.0
        %867 = vmatprep.subr.mxu0 0.0
        %868 = vmatpush1.msra.mxu0 0.0
        %869 = vmatprep.subr.mxu0 0.0
        %870 = vmatpush1.msra.mxu0 0.0
        %871 = vmatprep.subr.mxu0 0.0
        %872 = vmatpush1.msra.mxu0 0.0
        %873 = vmatprep.subr.mxu0 0.0
        %874 = vmatpush1.msra.mxu0 0.0
        %875 = vmatprep.mubr.f32.mxu0 0.0
        %876 = vmatmul.mubr.f32.gmra.mrb[0].mxu0 %v803
        %v877 = vpop.f32.mrb[0].mxu0
        %v878 = vadd.f32 0.0, %v877
        %v879 = vpop.f32.mrb[0].mxu0
        %880 = vmatprep.mubr.f32.mxu0 0.0
        %881 = vmatmul.mubr.f32.gmra.mrb[0].mxu0 %v806
        %v882 = vpop.f32.mrb[0].mxu0
        %v883 = vadd.f32 0.0, %v882
        %v884 = vpop.f32.mrb[0].mxu0
        %885 = vmatprep.mubr.f32.mxu0 0.0
        %886 = vmatmul.mubr.f32.gmra.mrb[0].mxu0 %v809
        %v887 = vpop.f32.mrb[0].mxu0
        %v888 = vadd.f32 0.0, %v887
        %v889 = vpop.f32.mrb[0].mxu0
        %890 = vdwg.mxu0
        %891 = vmatprep.subr.mxu0 0.0
        %892 = vmatpush1.msra.mxu0 %v762
        %893 = vmatprep.subr.mxu0 0.0
        %894 = vmatpush1.msra.mxu0 0.0
        %895 = vmatprep.subr.mxu0 0.0
        %896 = vmatpush1.msra.mxu0 0.0
        %897 = vmatprep.subr.mxu0 0.0
        %898 = vmatpush1.msra.mxu0 0.0
        %899 = vmatprep.subr.mxu0 0.0
        %900 = vmatpush1.msra.mxu0 0.0
        %901 = vmatprep.subr.mxu0 0.0
        %902 = vmatpush1.msra.mxu0 0.0
        %903 = vmatprep.subr.mxu0 0.0
        %904 = vmatpush1.msra.mxu0 0.0
        %905 = vmatprep.subr.mxu0 0.0
        %906 = vmatpush1.msra.mxu0 0.0
        %907 = vmatprep.subr.mxu0 0.0
        %908 = vmatpush1.msra.mxu0 0.0
        %909 = vmatprep.subr.mxu0 0.0
        %910 = vmatpush1.msra.mxu0 0.0
        %911 = vmatprep.subr.mxu0 0.0
        %912 = vmatpush1.msra.mxu0 0.0
        %913 = vmatprep.subr.mxu0 0.0
        %914 = vmatpush1.msra.mxu0 0.0
        %915 = vmatprep.subr.mxu0 0.0
        %916 = vmatpush1.msra.mxu0 0.0
        %917 = vmatprep.subr.mxu0 0.0
        %918 = vmatpush1.msra.mxu0 0.0
        %919 = vmatprep.subr.mxu0 0.0
        %920 = vmatpush1.msra.mxu0 0.0
        %921 = vmatprep.subr.mxu0 0.0
        %922 = vmatpush1.msra.mxu0 0.0
        %923 = vmatprep.subr.mxu0 0.0
        %924 = vmatpush1.msra.mxu0 0.0
        %925 = vmatprep.subr.mxu0 0.0
        %926 = vmatpush1.msra.mxu0 0.0
        %927 = vmatprep.subr.mxu0 0.0
        %928 = vmatpush1.msra.mxu0 0.0
        %929 = vmatprep.subr.mxu0 0.0
        %930 = vmatpush1.msra.mxu0 0.0
        %931 = vmatprep.subr.mxu0 0.0
        %932 = vmatpush1.msra.mxu0 0.0
        %933 = vmatprep.subr.mxu0 0.0
        %934 = vmatpush1.msra.mxu0 0.0
        %935 = vmatprep.subr.mxu0 0.0
        %936 = vmatpush1.msra.mxu0 0.0
        %937 = vmatprep.subr.mxu0 0.0
        %938 = vmatpush1.msra.mxu0 0.0
        %939 = vmatprep.subr.mxu0 0.0
        %940 = vmatpush1.msra.mxu0 0.0
        %941 = vmatprep.subr.mxu0 0.0
        %942 = vmatpush1.msra.mxu0 0.0
        %943 = vmatprep.subr.mxu0 0.0
        %944 = vmatpush1.msra.mxu0 0.0
        %945 = vmatprep.subr.mxu0 0.0
        %946 = vmatpush1.msra.mxu0 0.0
        %947 = vmatprep.subr.mxu0 0.0
        %948 = vmatpush1.msra.mxu0 0.0
        %949 = vmatprep.subr.mxu0 0.0
        %950 = vmatpush1.msra.mxu0 0.0
        %951 = vmatprep.subr.mxu0 0.0
        %952 = vmatpush1.msra.mxu0 0.0
        %953 = vmatprep.subr.mxu0 0.0
        %954 = vmatpush1.msra.mxu0 0.0
        %955 = vmatprep.mubr.f32.mxu0 0.0
        %956 = vmatmul.mubr.f32.gmra.mrb[0].mxu0 %v803
        %v957 = vpop.f32.mrb[0].mxu0
        %v958 = vadd.f32 0.0, %v957
        %v959 = vpop.f32.mrb[0].mxu0
        %960 = vmatprep.mubr.f32.mxu0 0.0
        %961 = vmatmul.mubr.f32.gmra.mrb[0].mxu0 %v806
        %v962 = vpop.f32.mrb[0].mxu0
        %v963 = vadd.f32 0.0, %v962
        %v964 = vpop.f32.mrb[0].mxu0
        %965 = vmatprep.mubr.f32.mxu0 0.0
        %966 = vmatmul.mubr.f32.gmra.mrb[0].mxu0 %v809
        %v967 = vpop.f32.mrb[0].mxu0
        %v968 = vadd.f32 0.0, %v967
        %v969 = vpop.f32.mrb[0].mxu0
        %970 = vdwg.mxu0
        %971 = vmatprep.subr.mxu0 0.0
        %972 = vmatpush1.msra.mxu0 %v767
        %973 = vmatprep.subr.mxu0 0.0
        %974 = vmatpush1.msra.mxu0 0.0
        %975 = vmatprep.subr.mxu0 0.0
        %976 = vmatpush1.msra.mxu0 0.0
        %977 = vmatprep.subr.mxu0 0.0
        %978 = vmatpush1.msra.mxu0 0.0
        %979 = vmatprep.subr.mxu0 0.0
        %980 = vmatpush1.msra.mxu0 0.0
        %981 = vmatprep.subr.mxu0 0.0
        %982 = vmatpush1.msra.mxu0 0.0
        %983 = vmatprep.subr.mxu0 0.0
        %984 = vmatpush1.msra.mxu0 0.0
        %985 = vmatprep.subr.mxu0 0.0
        %986 = vmatpush1.msra.mxu0 0.0
        %987 = vmatprep.subr.mxu0 0.0
        %988 = vmatpush1.msra.mxu0 0.0
        %989 = vmatprep.subr.mxu0 0.0
        %990 = vmatpush1.msra.mxu0 0.0
        %991 = vmatprep.subr.mxu0 0.0
        %992 = vmatpush1.msra.mxu0 0.0
        %993 = vmatprep.subr.mxu0 0.0
        %994 = vmatpush1.msra.mxu0 0.0
        %995 = vmatprep.subr.mxu0 0.0
        %996 = vmatpush1.msra.mxu0 0.0
        %997 = vmatprep.subr.mxu0 0.0
        %998 = vmatpush1.msra.mxu0 0.0
        %999 = vmatprep.subr.mxu0 0.0
        %1000 = vmatpush1.msra.mxu0 0.0
        %1001 = vmatprep.subr.mxu0 0.0
        %1002 = vmatpush1.msra.mxu0 0.0
        %1003 = vmatprep.subr.mxu0 0.0
        %1004 = vmatpush1.msra.mxu0 0.0
        %1005 = vmatprep.subr.mxu0 0.0
        %1006 = vmatpush1.msra.mxu0 0.0
        %1007 = vmatprep.subr.mxu0 0.0
        %1008 = vmatpush1.msra.mxu0 0.0
        %1009 = vmatprep.subr.mxu0 0.0
        %1010 = vmatpush1.msra.mxu0 0.0
        %1011 = vmatprep.subr.mxu0 0.0
        %1012 = vmatpush1.msra.mxu0 0.0
        %1013 = vmatprep.subr.mxu0 0.0
        %1014 = vmatpush1.msra.mxu0 0.0
        %1015 = vmatprep.subr.mxu0 0.0
        %1016 = vmatpush1.msra.mxu0 0.0
        %1017 = vmatprep.subr.mxu0 0.0
        %1018 = vmatpush1.msra.mxu0 0.0
        %1019 = vmatprep.subr.mxu0 0.0
        %1020 = vmatpush1.msra.mxu0 0.0
        %1021 = vmatprep.subr.mxu0 0.0
        %1022 = vmatpush1.msra.mxu0 0.0
        %1023 = vmatprep.subr.mxu0 0.0
        %1024 = vmatpush1.msra.mxu0 0.0
        %1025 = vmatprep.subr.mxu0 0.0
        %1026 = vmatpush1.msra.mxu0 0.0
        %1027 = vmatprep.subr.mxu0 0.0
        %1028 = vmatpush1.msra.mxu0 0.0
        %1029 = vmatprep.subr.mxu0 0.0
        %1030 = vmatpush1.msra.mxu0 0.0
        %1031 = vmatprep.subr.mxu0 0.0
        %1032 = vmatpush1.msra.mxu0 0.0
        %1033 = vmatprep.subr.mxu0 0.0
        %1034 = vmatpush1.msra.mxu0 0.0
        %1035 = vmatprep.mubr.f32.mxu0 0.0
        %1036 = vmatmul.mubr.f32.gmra.mrb[0].mxu0 %v803
        %v1037 = vpop.f32.mrb[0].mxu0
        %v1038 = vadd.f32 0.0, %v1037
        %v1039 = vpop.f32.mrb[0].mxu0
        %1040 = vmatprep.mubr.f32.mxu0 0.0
        %1041 = vmatmul.mubr.f32.gmra.mrb[0].mxu0 %v806
        %v1042 = vpop.f32.mrb[0].mxu0
        %v1043 = vadd.f32 0.0, %v1042
        %v1044 = vpop.f32.mrb[0].mxu0
        %1045 = vmatprep.mubr.f32.mxu0 0.0
        %1046 = vmatmul.mubr.f32.gmra.mrb[0].mxu0 %v809
        %v1047 = vpop.f32.mrb[0].mxu0
        %v1048 = vadd.f32 0.0, %v1047
        %v1049 = vpop.f32.mrb[0].mxu0
        %1050 = vdwg.mxu0
        %1051 = vmatprep.subr.mxu0 0.0
        %1052 = vmatpush1.msra.mxu0 %v772
        %1053 = vmatprep.subr.mxu0 0.0
        %1054 = vmatpush1.msra.mxu0 0.0
        %1055 = vmatprep.subr.mxu0 0.0
        %1056 = vmatpush1.msra.mxu0 0.0
        %1057 = vmatprep.subr.mxu0 0.0
        %1058 = vmatpush1.msra.mxu0 0.0
        %1059 = vmatprep.subr.mxu0 0.0
        %1060 = vmatpush1.msra.mxu0 0.0
        %1061 = vmatprep.subr.mxu0 0.0
        %1062 = vmatpush1.msra.mxu0 0.0
        %1063 = vmatprep.subr.mxu0 0.0
        %1064 = vmatpush1.msra.mxu0 0.0
        %1065 = vmatprep.subr.mxu0 0.0
        %1066 = vmatpush1.msra.mxu0 0.0
        %1067 = vmatprep.subr.mxu0 0.0
        %1068 = vmatpush1.msra.mxu0 0.0
        %1069 = vmatprep.subr.mxu0 0.0
        %1070 = vmatpush1.msra.mxu0 0.0
        %1071 = vmatprep.subr.mxu0 0.0
        %1072 = vmatpush1.msra.mxu0 0.0
        %1073 = vmatprep.subr.mxu0 0.0
        %1074 = vmatpush1.msra.mxu0 0.0
        %1075 = vmatprep.subr.mxu0 0.0
        %1076 = vmatpush1.msra.mxu0 0.0
        %1077 = vmatprep.subr.mxu0 0.0
        %1078 = vmatpush1.msra.mxu0 0.0
        %1079 = vmatprep.subr.mxu0 0.0
        %1080 = vmatpush1.msra.mxu0 0.0
        %1081 = vmatprep.subr.mxu0 0.0
        %1082 = vmatpush1.msra.mxu0 0.0
        %1083 = vmatprep.subr.mxu0 0.0
        %1084 = vmatpush1.msra.mxu0 0.0
        %1085 = vmatprep.subr.mxu0 0.0
        %1086 = vmatpush1.msra.mxu0 0.0
        %1087 = vmatprep.subr.mxu0 0.0
        %1088 = vmatpush1.msra.mxu0 0.0
        %1089 = vmatprep.subr.mxu0 0.0
        %1090 = vmatpush1.msra.mxu0 0.0
        %1091 = vmatprep.subr.mxu0 0.0
        %1092 = vmatpush1.msra.mxu0 0.0
        %1093 = vmatprep.subr.mxu0 0.0
        %1094 = vmatpush1.msra.mxu0 0.0
        %1095 = vmatprep.subr.mxu0 0.0
        %1096 = vmatpush1.msra.mxu0 0.0
        %1097 = vmatprep.subr.mxu0 0.0
        %1098 = vmatpush1.msra.mxu0 0.0
        %1099 = vmatprep.subr.mxu0 0.0
        %1100 = vmatpush1.msra.mxu0 0.0
        %1101 = vmatprep.subr.mxu0 0.0
        %1102 = vmatpush1.msra.mxu0 0.0
        %1103 = vmatprep.subr.mxu0 0.0
        %1104 = vmatpush1.msra.mxu0 0.0
        %1105 = vmatprep.subr.mxu0 0.0
        %1106 = vmatpush1.msra.mxu0 0.0
        %1107 = vmatprep.subr.mxu0 0.0
        %1108 = vmatpush1.msra.mxu0 0.0
        %1109 = vmatprep.subr.mxu0 0.0
        %1110 = vmatpush1.msra.mxu0 0.0
        %1111 = vmatprep.subr.mxu0 0.0
        %1112 = vmatpush1.msra.mxu0 0.0
        %1113 = vmatprep.subr.mxu0 0.0
        %1114 = vmatpush1.msra.mxu0 0.0
        %1115 = vmatprep.mubr.f32.mxu0 0.0
        %1116 = vmatmul.mubr.f32.gmra.mrb[0].mxu0 %v803
        %v1117 = vpop.f32.mrb[0].mxu0
        %v1118 = vadd.f32 0.0, %v1117
        %v1119 = vpop.f32.mrb[0].mxu0
        %1120 = vmatprep.mubr.f32.mxu0 0.0
        %1121 = vmatmul.mubr.f32.gmra.mrb[0].mxu0 %v806
        %v1122 = vpop.f32.mrb[0].mxu0
        %v1123 = vadd.f32 0.0, %v1122
        %v1124 = vpop.f32.mrb[0].mxu0
        %1125 = vmatprep.mubr.f32.mxu0 0.0
        %1126 = vmatmul.mubr.f32.gmra.mrb[0].mxu0 %v809
        %v1127 = vpop.f32.mrb[0].mxu0
        %v1128 = vadd.f32 0.0, %v1127
        %v1129 = vpop.f32.mrb[0].mxu0
        %1130 = vdwg.mxu0
        %1131 = vmatprep.subr.mxu0 0.0
        %1132 = vmatpush1.msra.mxu0 %v777
        %1133 = vmatprep.subr.mxu0 0.0
        %1134 = vmatpush1.msra.mxu0 0.0
        %1135 = vmatprep.subr.mxu0 0.0
        %1136 = vmatpush1.msra.mxu0 0.0
        %1137 = vmatprep.subr.mxu0 0.0
        %1138 = vmatpush1.msra.mxu0 0.0
        %1139 = vmatprep.subr.mxu0 0.0
        %1140 = vmatpush1.msra.mxu0 0.0
        %1141 = vmatprep.subr.mxu0 0.0
        %1142 = vmatpush1.msra.mxu0 0.0
        %1143 = vmatprep.subr.mxu0 0.0
        %1144 = vmatpush1.msra.mxu0 0.0
        %1145 = vmatprep.subr.mxu0 0.0
        %1146 = vmatpush1.msra.mxu0 0.0
        %1147 = vmatprep.subr.mxu0 0.0
        %1148 = vmatpush1.msra.mxu0 0.0
        %1149 = vmatprep.subr.mxu0 0.0
        %1150 = vmatpush1.msra.mxu0 0.0
        %1151 = vmatprep.subr.mxu0 0.0
        %1152 = vmatpush1.msra.mxu0 0.0
        %1153 = vmatprep.subr.mxu0 0.0
        %1154 = vmatpush1.msra.mxu0 0.0
        %1155 = vmatprep.subr.mxu0 0.0
        %1156 = vmatpush1.msra.mxu0 0.0
        %1157 = vmatprep.subr.mxu0 0.0
        %1158 = vmatpush1.msra.mxu0 0.0
        %1159 = vmatprep.subr.mxu0 0.0
        %1160 = vmatpush1.msra.mxu0 0.0
        %1161 = vmatprep.subr.mxu0 0.0
        %1162 = vmatpush1.msra.mxu0 0.0
        %1163 = vmatprep.subr.mxu0 0.0
        %1164 = vmatpush1.msra.mxu0 0.0
        %1165 = vmatprep.subr.mxu0 0.0
        %1166 = vmatpush1.msra.mxu0 0.0
        %1167 = vmatprep.subr.mxu0 0.0
        %1168 = vmatpush1.msra.mxu0 0.0
        %1169 = vmatprep.subr.mxu0 0.0
        %1170 = vmatpush1.msra.mxu0 0.0
        %1171 = vmatprep.subr.mxu0 0.0
        %1172 = vmatpush1.msra.mxu0 0.0
        %1173 = vmatprep.subr.mxu0 0.0
        %1174 = vmatpush1.msra.mxu0 0.0
        %1175 = vmatprep.subr.mxu0 0.0
        %1176 = vmatpush1.msra.mxu0 0.0
        %1177 = vmatprep.subr.mxu0 0.0
        %1178 = vmatpush1.msra.mxu0 0.0
        %1179 = vmatprep.subr.mxu0 0.0
        %1180 = vmatpush1.msra.mxu0 0.0
        %1181 = vmatprep.subr.mxu0 0.0
        %1182 = vmatpush1.msra.mxu0 0.0
        %1183 = vmatprep.subr.mxu0 0.0
        %1184 = vmatpush1.msra.mxu0 0.0
        %1185 = vmatprep.subr.mxu0 0.0
        %1186 = vmatpush1.msra.mxu0 0.0
        %1187 = vmatprep.subr.mxu0 0.0
        %1188 = vmatpush1.msra.mxu0 0.0
        %1189 = vmatprep.subr.mxu0 0.0
        %1190 = vmatpush1.msra.mxu0 0.0
        %1191 = vmatprep.subr.mxu0 0.0
        %1192 = vmatpush1.msra.mxu0 0.0
        %1193 = vmatprep.subr.mxu0 0.0
        %1194 = vmatpush1.msra.mxu0 0.0
        %1195 = vmatprep.mubr.f32.mxu0 0.0
        %1196 = vmatmul.mubr.f32.gmra.mrb[0].mxu0 %v803
        %v1197 = vpop.f32.mrb[0].mxu0
        %v1198 = vadd.f32 0.0, %v1197
        %v1199 = vpop.f32.mrb[0].mxu0
        %1200 = vmatprep.mubr.f32.mxu0 0.0
        %1201 = vmatmul.mubr.f32.gmra.mrb[0].mxu0 %v806
        %v1202 = vpop.f32.mrb[0].mxu0
        %v1203 = vadd.f32 0.0, %v1202
        %v1204 = vpop.f32.mrb[0].mxu0
        %1205 = vmatprep.mubr.f32.mxu0 0.0
        %1206 = vmatmul.mubr.f32.gmra.mrb[0].mxu0 %v809
        %v1207 = vpop.f32.mrb[0].mxu0
        %v1208 = vadd.f32 0.0, %v1207
        %v1209 = vpop.f32.mrb[0].mxu0
        %1210 = vdwg.mxu0
        %1211 = vmatprep.subr.mxu0 0.0
        %1212 = vmatpush1.msra.mxu0 %v782
        %1213 = vmatprep.subr.mxu0 0.0
        %1214 = vmatpush1.msra.mxu0 0.0
        %1215 = vmatprep.subr.mxu0 0.0
        %1216 = vmatpush1.msra.mxu0 0.0
        %1217 = vmatprep.subr.mxu0 0.0
        %1218 = vmatpush1.msra.mxu0 0.0
        %1219 = vmatprep.subr.mxu0 0.0
        %1220 = vmatpush1.msra.mxu0 0.0
        %1221 = vmatprep.subr.mxu0 0.0
        %1222 = vmatpush1.msra.mxu0 0.0
        %1223 = vmatprep.subr.mxu0 0.0
        %1224 = vmatpush1.msra.mxu0 0.0
        %1225 = vmatprep.subr.mxu0 0.0
        %1226 = vmatpush1.msra.mxu0 0.0
        %1227 = vmatprep.subr.mxu0 0.0
        %1228 = vmatpush1.msra.mxu0 0.0
        %1229 = vmatprep.subr.mxu0 0.0
        %1230 = vmatpush1.msra.mxu0 0.0
        %1231 = vmatprep.subr.mxu0 0.0
        %1232 = vmatpush1.msra.mxu0 0.0
        %1233 = vmatprep.subr.mxu0 0.0
        %1234 = vmatpush1.msra.mxu0 0.0
        %1235 = vmatprep.subr.mxu0 0.0
        %1236 = vmatpush1.msra.mxu0 0.0
        %1237 = vmatprep.subr.mxu0 0.0
        %1238 = vmatpush1.msra.mxu0 0.0
        %1239 = vmatprep.subr.mxu0 0.0
        %1240 = vmatpush1.msra.mxu0 0.0
        %1241 = vmatprep.subr.mxu0 0.0
        %1242 = vmatpush1.msra.mxu0 0.0
        %1243 = vmatprep.subr.mxu0 0.0
        %1244 = vmatpush1.msra.mxu0 0.0
        %1245 = vmatprep.subr.mxu0 0.0
        %1246 = vmatpush1.msra.mxu0 0.0
        %1247 = vmatprep.subr.mxu0 0.0
        %1248 = vmatpush1.msra.mxu0 0.0
        %1249 = vmatprep.subr.mxu0 0.0
        %1250 = vmatpush1.msra.mxu0 0.0
        %1251 = vmatprep.subr.mxu0 0.0
        %1252 = vmatpush1.msra.mxu0 0.0
        %1253 = vmatprep.subr.mxu0 0.0
        %1254 = vmatpush1.msra.mxu0 0.0
        %1255 = vmatprep.subr.mxu0 0.0
        %1256 = vmatpush1.msra.mxu0 0.0
        %1257 = vmatprep.subr.mxu0 0.0
        %1258 = vmatpush1.msra.mxu0 0.0
        %1259 = vmatprep.subr.mxu0 0.0
        %1260 = vmatpush1.msra.mxu0 0.0
        %1261 = vmatprep.subr.mxu0 0.0
        %1262 = vmatpush1.msra.mxu0 0.0
        %1263 = vmatprep.subr.mxu0 0.0
        %1264 = vmatpush1.msra.mxu0 0.0
        %1265 = vmatprep.subr.mxu0 0.0
        %1266 = vmatpush1.msra.mxu0 0.0
        %1267 = vmatprep.subr.mxu0 0.0
        %1268 = vmatpush1.msra.mxu0 0.0
        %1269 = vmatprep.subr.mxu0 0.0
        %1270 = vmatpush1.msra.mxu0 0.0
        %1271 = vmatprep.subr.mxu0 0.0
        %1272 = vmatpush1.msra.mxu0 0.0
        %1273 = vmatprep.subr.mxu0 0.0
        %1274 = vmatpush1.msra.mxu0 0.0
        %1275 = vmatprep.mubr.f32.mxu0 0.0
        %1276 = vmatmul.mubr.f32.gmra.mrb[0].mxu0 %v803
        %v1277 = vpop.f32.mrb[0].mxu0
        %v1278 = vadd.f32 0.0, %v1277
        %v1279 = vpop.f32.mrb[0].mxu0
        %1280 = vmatprep.mubr.f32.mxu0 0.0
        %1281 = vmatmul.mubr.f32.gmra.mrb[0].mxu0 %v806
        %v1282 = vpop.f32.mrb[0].mxu0
        %v1283 = vadd.f32 0.0, %v1282
        %v1284 = vpop.f32.mrb[0].mxu0
        %1285 = vmatprep.mubr.f32.mxu0 0.0
        %1286 = vmatmul.mubr.f32.gmra.mrb[0].mxu0 %v809
        %v1287 = vpop.f32.mrb[0].mxu0
        %v1288 = vadd.f32 0.0, %v1287
        %v1289 = vpop.f32.mrb[0].mxu0
        %1290 = vdwg.mxu0
        %1291 = vmatprep.subr.mxu0 0.0
        %1292 = vmatpush1.msra.mxu0 %v787
        %1293 = vmatprep.subr.mxu0 0.0
        %1294 = vmatpush1.msra.mxu0 0.0
        %1295 = vmatprep.subr.mxu0 0.0
        %1296 = vmatpush1.msra.mxu0 0.0
        %1297 = vmatprep.subr.mxu0 0.0
        %1298 = vmatpush1.msra.mxu0 0.0
        %1299 = vmatprep.subr.mxu0 0.0
        %1300 = vmatpush1.msra.mxu0 0.0
        %1301 = vmatprep.subr.mxu0 0.0
        %1302 = vmatpush1.msra.mxu0 0.0
        %1303 = vmatprep.subr.mxu0 0.0
        %1304 = vmatpush1.msra.mxu0 0.0
        %1305 = vmatprep.subr.mxu0 0.0
        %1306 = vmatpush1.msra.mxu0 0.0
        %1307 = vmatprep.subr.mxu0 0.0
        %1308 = vmatpush1.msra.mxu0 0.0
        %1309 = vmatprep.subr.mxu0 0.0
        %1310 = vmatpush1.msra.mxu0 0.0
        %1311 = vmatprep.subr.mxu0 0.0
        %1312 = vmatpush1.msra.mxu0 0.0
        %1313 = vmatprep.subr.mxu0 0.0
        %1314 = vmatpush1.msra.mxu0 0.0
        %1315 = vmatprep.subr.mxu0 0.0
        %1316 = vmatpush1.msra.mxu0 0.0
        %1317 = vmatprep.subr.mxu0 0.0
        %1318 = vmatpush1.msra.mxu0 0.0
        %1319 = vmatprep.subr.mxu0 0.0
        %1320 = vmatpush1.msra.mxu0 0.0
        %1321 = vmatprep.subr.mxu0 0.0
        %1322 = vmatpush1.msra.mxu0 0.0
        %1323 = vmatprep.subr.mxu0 0.0
        %1324 = vmatpush1.msra.mxu0 0.0
        %1325 = vmatprep.subr.mxu0 0.0
        %1326 = vmatpush1.msra.mxu0 0.0
        %1327 = vmatprep.subr.mxu0 0.0
        %1328 = vmatpush1.msra.mxu0 0.0
        %1329 = vmatprep.subr.mxu0 0.0
        %1330 = vmatpush1.msra.mxu0 0.0
        %1331 = vmatprep.subr.mxu0 0.0
        %1332 = vmatpush1.msra.mxu0 0.0
        %1333 = vmatprep.subr.mxu0 0.0
        %1334 = vmatpush1.msra.mxu0 0.0
        %1335 = vmatprep.subr.mxu0 0.0
        %1336 = vmatpush1.msra.mxu0 0.0
        %1337 = vmatprep.subr.mxu0 0.0
        %1338 = vmatpush1.msra.mxu0 0.0
        %1339 = vmatprep.subr.mxu0 0.0
        %1340 = vmatpush1.msra.mxu0 0.0
        %1341 = vmatprep.subr.mxu0 0.0
        %1342 = vmatpush1.msra.mxu0 0.0
        %1343 = vmatprep.subr.mxu0 0.0
        %1344 = vmatpush1.msra.mxu0 0.0
        %1345 = vmatprep.subr.mxu0 0.0
        %1346 = vmatpush1.msra.mxu0 0.0
        %1347 = vmatprep.subr.mxu0 0.0
        %1348 = vmatpush1.msra.mxu0 0.0
        %1349 = vmatprep.subr.mxu0 0.0
        %1350 = vmatpush1.msra.mxu0 0.0
        %1351 = vmatprep.subr.mxu0 0.0
        %1352 = vmatpush1.msra.mxu0 0.0
        %1353 = vmatprep.subr.mxu0 0.0
        %1354 = vmatpush1.msra.mxu0 0.0
        %1355 = vmatprep.mubr.f32.mxu0 0.0
        %1356 = vmatmul.mubr.f32.gmra.mrb[0].mxu0 %v803
        %v1357 = vpop.f32.mrb[0].mxu0
        %v1358 = vadd.f32 0.0, %v1357
        %v1359 = vpop.f32.mrb[0].mxu0
        %1360 = vmatprep.mubr.f32.mxu0 0.0
        %1361 = vmatmul.mubr.f32.gmra.mrb[0].mxu0 %v806
        %v1362 = vpop.f32.mrb[0].mxu0
        %v1363 = vadd.f32 0.0, %v1362
        %v1364 = vpop.f32.mrb[0].mxu0
        %1365 = vmatprep.mubr.f32.mxu0 0.0
        %1366 = vmatmul.mubr.f32.gmra.mrb[0].mxu0 %v809
        %v1367 = vpop.f32.mrb[0].mxu0
        %v1368 = vadd.f32 0.0, %v1367
        %v1369 = vpop.f32.mrb[0].mxu0
        %1370 = vdwg.mxu0
        %1371 = vmatprep.subr.mxu0 0.0
        %1372 = vmatpush1.msra.mxu0 %v792
        %1373 = vmatprep.subr.mxu0 0.0
        %1374 = vmatpush1.msra.mxu0 0.0
        %1375 = vmatprep.subr.mxu0 0.0
        %1376 = vmatpush1.msra.mxu0 0.0
        %1377 = vmatprep.subr.mxu0 0.0
        %1378 = vmatpush1.msra.mxu0 0.0
        %1379 = vmatprep.subr.mxu0 0.0
        %1380 = vmatpush1.msra.mxu0 0.0
        %1381 = vmatprep.subr.mxu0 0.0
        %1382 = vmatpush1.msra.mxu0 0.0
        %1383 = vmatprep.subr.mxu0 0.0
        %1384 = vmatpush1.msra.mxu0 0.0
        %1385 = vmatprep.subr.mxu0 0.0
        %1386 = vmatpush1.msra.mxu0 0.0
        %1387 = vmatprep.subr.mxu0 0.0
        %1388 = vmatpush1.msra.mxu0 0.0
        %1389 = vmatprep.subr.mxu0 0.0
        %1390 = vmatpush1.msra.mxu0 0.0
        %1391 = vmatprep.subr.mxu0 0.0
        %1392 = vmatpush1.msra.mxu0 0.0
        %1393 = vmatprep.subr.mxu0 0.0
        %1394 = vmatpush1.msra.mxu0 0.0
        %1395 = vmatprep.subr.mxu0 0.0
        %1396 = vmatpush1.msra.mxu0 0.0
        %1397 = vmatprep.subr.mxu0 0.0
        %1398 = vmatpush1.msra.mxu0 0.0
        %1399 = vmatprep.subr.mxu0 0.0
        %1400 = vmatpush1.msra.mxu0 0.0
        %1401 = vmatprep.subr.mxu0 0.0
        %1402 = vmatpush1.msra.mxu0 0.0
        %1403 = vmatprep.subr.mxu0 0.0
        %1404 = vmatpush1.msra.mxu0 0.0
        %1405 = vmatprep.subr.mxu0 0.0
        %1406 = vmatpush1.msra.mxu0 0.0
        %1407 = vmatprep.subr.mxu0 0.0
        %1408 = vmatpush1.msra.mxu0 0.0
        %1409 = vmatprep.subr.mxu0 0.0
        %1410 = vmatpush1.msra.mxu0 0.0
        %1411 = vmatprep.subr.mxu0 0.0
        %1412 = vmatpush1.msra.mxu0 0.0
        %1413 = vmatprep.subr.mxu0 0.0
        %1414 = vmatpush1.msra.mxu0 0.0
        %1415 = vmatprep.subr.mxu0 0.0
        %1416 = vmatpush1.msra.mxu0 0.0
        %1417 = vmatprep.subr.mxu0 0.0
        %1418 = vmatpush1.msra.mxu0 0.0
        %1419 = vmatprep.subr.mxu0 0.0
        %1420 = vmatpush1.msra.mxu0 0.0
        %1421 = vmatprep.subr.mxu0 0.0
        %1422 = vmatpush1.msra.mxu0 0.0
        %1423 = vmatprep.subr.mxu0 0.0
        %1424 = vmatpush1.msra.mxu0 0.0
        %1425 = vmatprep.subr.mxu0 0.0
        %1426 = vmatpush1.msra.mxu0 0.0
        %1427 = vmatprep.subr.mxu0 0.0
        %1428 = vmatpush1.msra.mxu0 0.0
        %1429 = vmatprep.subr.mxu0 0.0
        %1430 = vmatpush1.msra.mxu0 0.0
        %1431 = vmatprep.subr.mxu0 0.0
        %1432 = vmatpush1.msra.mxu0 0.0
        %1433 = vmatprep.subr.mxu0 0.0
        %1434 = vmatpush1.msra.mxu0 0.0
        %1435 = vmatprep.mubr.f32.mxu0 0.0
        %1436 = vmatmul.mubr.f32.gmra.mrb[0].mxu0 %v803
        %v1437 = vpop.f32.mrb[0].mxu0
        %v1438 = vadd.f32 0.0, %v1437
        %v1439 = vpop.f32.mrb[0].mxu0
        %1440 = vmatprep.mubr.f32.mxu0 0.0
        %1441 = vmatmul.mubr.f32.gmra.mrb[0].mxu0 %v806
        %v1442 = vpop.f32.mrb[0].mxu0
        %v1443 = vadd.f32 0.0, %v1442
        %v1444 = vpop.f32.mrb[0].mxu0
        %1445 = vmatprep.mubr.f32.mxu0 0.0
        %1446 = vmatmul.mubr.f32.gmra.mrb[0].mxu0 %v809
        %v1447 = vpop.f32.mrb[0].mxu0
        %v1448 = vadd.f32 0.0, %v1447
        %v1449 = vpop.f32.mrb[0].mxu0
        %1450 = vdwg.mxu0
        %v1452 = vsel %vm801, %v795, 0
        %v1455 = vsel %vm801, %v796, 0
        %v1458 = vsel %vm801, %v797, 0
        %1460 = vmatprep.subr.mxu0 0.0
        %1461 = vmatpush1.msra.mxu0 %v648
        %1462 = vmatprep.subr.mxu0 0.0
        %1463 = vmatpush1.msra.mxu0 0.0
        %1464 = vmatprep.subr.mxu0 0.0
        %1465 = vmatpush1.msra.mxu0 0.0
        %1466 = vmatprep.subr.mxu0 0.0
        %1467 = vmatpush1.msra.mxu0 0.0
        %1468 = vmatprep.subr.mxu0 0.0
        %1469 = vmatpush1.msra.mxu0 0.0
        %1470 = vmatprep.subr.mxu0 0.0
        %1471 = vmatpush1.msra.mxu0 0.0
        %1472 = vmatprep.subr.mxu0 0.0
        %1473 = vmatpush1.msra.mxu0 0.0
        %1474 = vmatprep.subr.mxu0 0.0
        %1475 = vmatpush1.msra.mxu0 0.0
        %1476 = vmatprep.subr.mxu0 0.0
        %1477 = vmatpush1.msra.mxu0 0.0
        %1478 = vmatprep.subr.mxu0 0.0
        %1479 = vmatpush1.msra.mxu0 0.0
        %1480 = vmatprep.subr.mxu0 0.0
        %1481 = vmatpush1.msra.mxu0 0.0
        %1482 = vmatprep.subr.mxu0 0.0
        %1483 = vmatpush1.msra.mxu0 0.0
        %1484 = vmatprep.subr.mxu0 0.0
        %1485 = vmatpush1.msra.mxu0 0.0
        %1486 = vmatprep.subr.mxu0 0.0
        %1487 = vmatpush1.msra.mxu0 0.0
        %1488 = vmatprep.subr.mxu0 0.0
        %1489 = vmatpush1.msra.mxu0 0.0
        %1490 = vmatprep.subr.mxu0 0.0
        %1491 = vmatpush1.msra.mxu0 0.0
        %1492 = vmatprep.subr.mxu0 0.0
        %1493 = vmatpush1.msra.mxu0 0.0
        %1494 = vmatprep.subr.mxu0 0.0
        %1495 = vmatpush1.msra.mxu0 0.0
        %1496 = vmatprep.subr.mxu0 0.0
        %1497 = vmatpush1.msra.mxu0 0.0
        %1498 = vmatprep.subr.mxu0 0.0
        %1499 = vmatpush1.msra.mxu0 0.0
        %1500 = vmatprep.subr.mxu0 0.0
        %1501 = vmatpush1.msra.mxu0 0.0
        %1502 = vmatprep.subr.mxu0 0.0
        %1503 = vmatpush1.msra.mxu0 0.0
        %1504 = vmatprep.subr.mxu0 0.0
        %1505 = vmatpush1.msra.mxu0 0.0
        %1506 = vmatprep.subr.mxu0 0.0
        %1507 = vmatpush1.msra.mxu0 0.0
        %1508 = vmatprep.subr.mxu0 0.0
        %1509 = vmatpush1.msra.mxu0 0.0
        %1510 = vmatprep.subr.mxu0 0.0
        %1511 = vmatpush1.msra.mxu0 0.0
        %1512 = vmatprep.subr.mxu0 0.0
        %1513 = vmatpush1.msra.mxu0 0.0
        %1514 = vmatprep.subr.mxu0 0.0
        %1515 = vmatpush1.msra.mxu0 0.0
        %1516 = vmatprep.subr.mxu0 0.0
        %1517 = vmatpush1.msra.mxu0 0.0
        %1518 = vmatprep.subr.mxu0 0.0
        %1519 = vmatpush1.msra.mxu0 0.0
        %1520 = vmatprep.subr.mxu0 0.0
        %1521 = vmatpush1.msra.mxu0 0.0
        %1522 = vmatprep.subr.mxu0 0.0
        %1523 = vmatpush1.msra.mxu0 0.0
        %1524 = vmatprep.mubr.f32.mxu0 0.0
        %1525 = vmatmul.mubr.f32.gmra.mrb[0].mxu0 %v1452
        %v1526 = vpop.f32.mrb[0].mxu0
        %v1527 = vadd.f32 %v878, %v1526
        %v1528 = vpop.f32.mrb[0].mxu0
        %1529 = vmatprep.mubr.f32.mxu0 0.0
        %1530 = vmatmul.mubr.f32.gmra.mrb[0].mxu0 %v1455
        %v1531 = vpop.f32.mrb[0].mxu0
        %v1532 = vadd.f32 %v883, %v1531
        %v1533 = vpop.f32.mrb[0].mxu0
        %1534 = vmatprep.mubr.f32.mxu0 0.0
        %1535 = vmatmul.mubr.f32.gmra.mrb[0].mxu0 %v1458
        %v1536 = vpop.f32.mrb[0].mxu0
        %v1537 = vadd.f32 %v888, %v1536
        %v1538 = vpop.f32.mrb[0].mxu0
        %1539 = vdwg.mxu0
        %1540 = vmatprep.subr.mxu0 0.0
        %1541 = vmatpush1.msra.mxu0 %v653
        %1542 = vmatprep.subr.mxu0 0.0
        %1543 = vmatpush1.msra.mxu0 0.0
        %1544 = vmatprep.subr.mxu0 0.0
        %1545 = vmatpush1.msra.mxu0 0.0
        %1546 = vmatprep.subr.mxu0 0.0
        %1547 = vmatpush1.msra.mxu0 0.0
        %1548 = vmatprep.subr.mxu0 0.0
        %1549 = vmatpush1.msra.mxu0 0.0
        %1550 = vmatprep.subr.mxu0 0.0
        %1551 = vmatpush1.msra.mxu0 0.0
        %1552 = vmatprep.subr.mxu0 0.0
        %1553 = vmatpush1.msra.mxu0 0.0
        %1554 = vmatprep.subr.mxu0 0.0
        %1555 = vmatpush1.msra.mxu0 0.0
        %1556 = vmatprep.subr.mxu0 0.0
        %1557 = vmatpush1.msra.mxu0 0.0
        %1558 = vmatprep.subr.mxu0 0.0
        %1559 = vmatpush1.msra.mxu0 0.0
        %1560 = vmatprep.subr.mxu0 0.0
        %1561 = vmatpush1.msra.mxu0 0.0
        %1562 = vmatprep.subr.mxu0 0.0
        %1563 = vmatpush1.msra.mxu0 0.0
        %1564 = vmatprep.subr.mxu0 0.0
        %1565 = vmatpush1.msra.mxu0 0.0
        %1566 = vmatprep.subr.mxu0 0.0
        %1567 = vmatpush1.msra.mxu0 0.0
        %1568 = vmatprep.subr.mxu0 0.0
        %1569 = vmatpush1.msra.mxu0 0.0
        %1570 = vmatprep.subr.mxu0 0.0
        %1571 = vmatpush1.msra.mxu0 0.0
        %1572 = vmatprep.subr.mxu0 0.0
        %1573 = vmatpush1.msra.mxu0 0.0
        %1574 = vmatprep.subr.mxu0 0.0
        %1575 = vmatpush1.msra.mxu0 0.0
        %1576 = vmatprep.subr.mxu0 0.0
        %1577 = vmatpush1.msra.mxu0 0.0
        %1578 = vmatprep.subr.mxu0 0.0
        %1579 = vmatpush1.msra.mxu0 0.0
        %1580 = vmatprep.subr.mxu0 0.0
        %1581 = vmatpush1.msra.mxu0 0.0
        %1582 = vmatprep.subr.mxu0 0.0
        %1583 = vmatpush1.msra.mxu0 0.0
        %1584 = vmatprep.subr.mxu0 0.0
        %1585 = vmatpush1.msra.mxu0 0.0
        %1586 = vmatprep.subr.mxu0 0.0
        %1587 = vmatpush1.msra.mxu0 0.0
        %1588 = vmatprep.subr.mxu0 0.0
        %1589 = vmatpush1.msra.mxu0 0.0
        %1590 = vmatprep.subr.mxu0 0.0
        %1591 = vmatpush1.msra.mxu0 0.0
        %1592 = vmatprep.subr.mxu0 0.0
        %1593 = vmatpush1.msra.mxu0 0.0
        %1594 = vmatprep.subr.mxu0 0.0
        %1595 = vmatpush1.msra.mxu0 0.0
        %1596 = vmatprep.subr.mxu0 0.0
        %1597 = vmatpush1.msra.mxu0 0.0
        %1598 = vmatprep.subr.mxu0 0.0
        %1599 = vmatpush1.msra.mxu0 0.0
        %1600 = vmatprep.subr.mxu0 0.0
        %1601 = vmatpush1.msra.mxu0 0.0
        %1602 = vmatprep.subr.mxu0 0.0
        %1603 = vmatpush1.msra.mxu0 0.0
        %1604 = vmatprep.mubr.f32.mxu0 0.0
        %1605 = vmatmul.mubr.f32.gmra.mrb[0].mxu0 %v1452
        %v1606 = vpop.f32.mrb[0].mxu0
        %v1607 = vadd.f32 %v958, %v1606
        %v1608 = vpop.f32.mrb[0].mxu0
        %1609 = vmatprep.mubr.f32.mxu0 0.0
        %1610 = vmatmul.mubr.f32.gmra.mrb[0].mxu0 %v1455
        %v1611 = vpop.f32.mrb[0].mxu0
        %v1612 = vadd.f32 %v963, %v1611
        %v1613 = vpop.f32.mrb[0].mxu0
        %1614 = vmatprep.mubr.f32.mxu0 0.0
        %1615 = vmatmul.mubr.f32.gmra.mrb[0].mxu0 %v1458
        %v1616 = vpop.f32.mrb[0].mxu0
        %v1617 = vadd.f32 %v968, %v1616
        %v1618 = vpop.f32.mrb[0].mxu0
        %1619 = vdwg.mxu0
        %1620 = vmatprep.subr.mxu0 0.0
        %1621 = vmatpush1.msra.mxu0 %v658
        %1622 = vmatprep.subr.mxu0 0.0
        %1623 = vmatpush1.msra.mxu0 0.0
        %1624 = vmatprep.subr.mxu0 0.0
        %1625 = vmatpush1.msra.mxu0 0.0
        %1626 = vmatprep.subr.mxu0 0.0
        %1627 = vmatpush1.msra.mxu0 0.0
        %1628 = vmatprep.subr.mxu0 0.0
        %1629 = vmatpush1.msra.mxu0 0.0
        %1630 = vmatprep.subr.mxu0 0.0
        %1631 = vmatpush1.msra.mxu0 0.0
        %1632 = vmatprep.subr.mxu0 0.0
        %1633 = vmatpush1.msra.mxu0 0.0
        %1634 = vmatprep.subr.mxu0 0.0
        %1635 = vmatpush1.msra.mxu0 0.0
        %1636 = vmatprep.subr.mxu0 0.0
        %1637 = vmatpush1.msra.mxu0 0.0
        %1638 = vmatprep.subr.mxu0 0.0
        %1639 = vmatpush1.msra.mxu0 0.0
        %1640 = vmatprep.subr.mxu0 0.0
        %1641 = vmatpush1.msra.mxu0 0.0
        %1642 = vmatprep.subr.mxu0 0.0
        %1643 = vmatpush1.msra.mxu0 0.0
        %1644 = vmatprep.subr.mxu0 0.0
        %1645 = vmatpush1.msra.mxu0 0.0
        %1646 = vmatprep.subr.mxu0 0.0
        %1647 = vmatpush1.msra.mxu0 0.0
        %1648 = vmatprep.subr.mxu0 0.0
        %1649 = vmatpush1.msra.mxu0 0.0
        %1650 = vmatprep.subr.mxu0 0.0
        %1651 = vmatpush1.msra.mxu0 0.0
        %1652 = vmatprep.subr.mxu0 0.0
        %1653 = vmatpush1.msra.mxu0 0.0
        %1654 = vmatprep.subr.mxu0 0.0
        %1655 = vmatpush1.msra.mxu0 0.0
        %1656 = vmatprep.subr.mxu0 0.0
        %1657 = vmatpush1.msra.mxu0 0.0
        %1658 = vmatprep.subr.mxu0 0.0
        %1659 = vmatpush1.msra.mxu0 0.0
        %1660 = vmatprep.subr.mxu0 0.0
        %1661 = vmatpush1.msra.mxu0 0.0
        %1662 = vmatprep.subr.mxu0 0.0
        %1663 = vmatpush1.msra.mxu0 0.0
        %1664 = vmatprep.subr.mxu0 0.0
        %1665 = vmatpush1.msra.mxu0 0.0
        %1666 = vmatprep.subr.mxu0 0.0
        %1667 = vmatpush1.msra.mxu0 0.0
        %1668 = vmatprep.subr.mxu0 0.0
        %1669 = vmatpush1.msra.mxu0 0.0
        %1670 = vmatprep.subr.mxu0 0.0
        %1671 = vmatpush1.msra.mxu0 0.0
        %1672 = vmatprep.subr.mxu0 0.0
        %1673 = vmatpush1.msra.mxu0 0.0
        %1674 = vmatprep.subr.mxu0 0.0
        %1675 = vmatpush1.msra.mxu0 0.0
        %1676 = vmatprep.subr.mxu0 0.0
        %1677 = vmatpush1.msra.mxu0 0.0
        %1678 = vmatprep.subr.mxu0 0.0
        %1679 = vmatpush1.msra.mxu0 0.0
        %1680 = vmatprep.subr.mxu0 0.0
        %1681 = vmatpush1.msra.mxu0 0.0
        %1682 = vmatprep.subr.mxu0 0.0
        %1683 = vmatpush1.msra.mxu0 0.0
        %1684 = vmatprep.mubr.f32.mxu0 0.0
        %1685 = vmatmul.mubr.f32.gmra.mrb[0].mxu0 %v1452
        %v1686 = vpop.f32.mrb[0].mxu0
        %v1687 = vadd.f32 %v1038, %v1686
        %v1688 = vpop.f32.mrb[0].mxu0
        %1689 = vmatprep.mubr.f32.mxu0 0.0
        %1690 = vmatmul.mubr.f32.gmra.mrb[0].mxu0 %v1455
        %v1691 = vpop.f32.mrb[0].mxu0
        %v1692 = vadd.f32 %v1043, %v1691
        %v1693 = vpop.f32.mrb[0].mxu0
        %1694 = vmatprep.mubr.f32.mxu0 0.0
        %1695 = vmatmul.mubr.f32.gmra.mrb[0].mxu0 %v1458
        %v1696 = vpop.f32.mrb[0].mxu0
        %v1697 = vadd.f32 %v1048, %v1696
        %v1698 = vpop.f32.mrb[0].mxu0
        %1699 = vdwg.mxu0
        %1700 = vmatprep.subr.mxu0 0.0
        %1701 = vmatpush1.msra.mxu0 %v663
        %1702 = vmatprep.subr.mxu0 0.0
        %1703 = vmatpush1.msra.mxu0 0.0
        %1704 = vmatprep.subr.mxu0 0.0
        %1705 = vmatpush1.msra.mxu0 0.0
        %1706 = vmatprep.subr.mxu0 0.0
        %1707 = vmatpush1.msra.mxu0 0.0
        %1708 = vmatprep.subr.mxu0 0.0
        %1709 = vmatpush1.msra.mxu0 0.0
        %1710 = vmatprep.subr.mxu0 0.0
        %1711 = vmatpush1.msra.mxu0 0.0
        %1712 = vmatprep.subr.mxu0 0.0
        %1713 = vmatpush1.msra.mxu0 0.0
        %1714 = vmatprep.subr.mxu0 0.0
        %1715 = vmatpush1.msra.mxu0 0.0
        %1716 = vmatprep.subr.mxu0 0.0
        %1717 = vmatpush1.msra.mxu0 0.0
        %1718 = vmatprep.subr.mxu0 0.0
        %1719 = vmatpush1.msra.mxu0 0.0
        %1720 = vmatprep.subr.mxu0 0.0
        %1721 = vmatpush1.msra.mxu0 0.0
        %1722 = vmatprep.subr.mxu0 0.0
        %1723 = vmatpush1.msra.mxu0 0.0
        %1724 = vmatprep.subr.mxu0 0.0
        %1725 = vmatpush1.msra.mxu0 0.0
        %1726 = vmatprep.subr.mxu0 0.0
        %1727 = vmatpush1.msra.mxu0 0.0
        %1728 = vmatprep.subr.mxu0 0.0
        %1729 = vmatpush1.msra.mxu0 0.0
        %1730 = vmatprep.subr.mxu0 0.0
        %1731 = vmatpush1.msra.mxu0 0.0
        %1732 = vmatprep.subr.mxu0 0.0
        %1733 = vmatpush1.msra.mxu0 0.0
        %1734 = vmatprep.subr.mxu0 0.0
        %1735 = vmatpush1.msra.mxu0 0.0
        %1736 = vmatprep.subr.mxu0 0.0
        %1737 = vmatpush1.msra.mxu0 0.0
        %1738 = vmatprep.subr.mxu0 0.0
        %1739 = vmatpush1.msra.mxu0 0.0
        %1740 = vmatprep.subr.mxu0 0.0
        %1741 = vmatpush1.msra.mxu0 0.0
        %1742 = vmatprep.subr.mxu0 0.0
        %1743 = vmatpush1.msra.mxu0 0.0
        %1744 = vmatprep.subr.mxu0 0.0
        %1745 = vmatpush1.msra.mxu0 0.0
        %1746 = vmatprep.subr.mxu0 0.0
        %1747 = vmatpush1.msra.mxu0 0.0
        %1748 = vmatprep.subr.mxu0 0.0
        %1749 = vmatpush1.msra.mxu0 0.0
        %1750 = vmatprep.subr.mxu0 0.0
        %1751 = vmatpush1.msra.mxu0 0.0
        %1752 = vmatprep.subr.mxu0 0.0
        %1753 = vmatpush1.msra.mxu0 0.0
        %1754 = vmatprep.subr.mxu0 0.0
        %1755 = vmatpush1.msra.mxu0 0.0
        %1756 = vmatprep.subr.mxu0 0.0
        %1757 = vmatpush1.msra.mxu0 0.0
        %1758 = vmatprep.subr.mxu0 0.0
        %1759 = vmatpush1.msra.mxu0 0.0
        %1760 = vmatprep.subr.mxu0 0.0
        %1761 = vmatpush1.msra.mxu0 0.0
        %1762 = vmatprep.subr.mxu0 0.0
        %1763 = vmatpush1.msra.mxu0 0.0
        %1764 = vmatprep.mubr.f32.mxu0 0.0
        %1765 = vmatmul.mubr.f32.gmra.mrb[0].mxu0 %v1452
        %v1766 = vpop.f32.mrb[0].mxu0
        %v1767 = vadd.f32 %v1118, %v1766
        %v1768 = vpop.f32.mrb[0].mxu0
        %1769 = vmatprep.mubr.f32.mxu0 0.0
        %1770 = vmatmul.mubr.f32.gmra.mrb[0].mxu0 %v1455
        %v1771 = vpop.f32.mrb[0].mxu0
        %v1772 = vadd.f32 %v1123, %v1771
        %v1773 = vpop.f32.mrb[0].mxu0
        %1774 = vmatprep.mubr.f32.mxu0 0.0
        %1775 = vmatmul.mubr.f32.gmra.mrb[0].mxu0 %v1458
        %v1776 = vpop.f32.mrb[0].mxu0
        %v1777 = vadd.f32 %v1128, %v1776
        %v1778 = vpop.f32.mrb[0].mxu0
        %1779 = vdwg.mxu0
        %1780 = vmatprep.subr.mxu0 0.0
        %1781 = vmatpush1.msra.mxu0 %v668
        %1782 = vmatprep.subr.mxu0 0.0
        %1783 = vmatpush1.msra.mxu0 0.0
        %1784 = vmatprep.subr.mxu0 0.0
        %1785 = vmatpush1.msra.mxu0 0.0
        %1786 = vmatprep.subr.mxu0 0.0
        %1787 = vmatpush1.msra.mxu0 0.0
        %1788 = vmatprep.subr.mxu0 0.0
        %1789 = vmatpush1.msra.mxu0 0.0
        %1790 = vmatprep.subr.mxu0 0.0
        %1791 = vmatpush1.msra.mxu0 0.0
        %1792 = vmatprep.subr.mxu0 0.0
        %1793 = vmatpush1.msra.mxu0 0.0
        %1794 = vmatprep.subr.mxu0 0.0
        %1795 = vmatpush1.msra.mxu0 0.0
        %1796 = vmatprep.subr.mxu0 0.0
        %1797 = vmatpush1.msra.mxu0 0.0
        %1798 = vmatprep.subr.mxu0 0.0
        %1799 = vmatpush1.msra.mxu0 0.0
        %1800 = vmatprep.subr.mxu0 0.0
        %1801 = vmatpush1.msra.mxu0 0.0
        %1802 = vmatprep.subr.mxu0 0.0
        %1803 = vmatpush1.msra.mxu0 0.0
        %1804 = vmatprep.subr.mxu0 0.0
        %1805 = vmatpush1.msra.mxu0 0.0
        %1806 = vmatprep.subr.mxu0 0.0
        %1807 = vmatpush1.msra.mxu0 0.0
        %1808 = vmatprep.subr.mxu0 0.0
        %1809 = vmatpush1.msra.mxu0 0.0
        %1810 = vmatprep.subr.mxu0 0.0
        %1811 = vmatpush1.msra.mxu0 0.0
        %1812 = vmatprep.subr.mxu0 0.0
        %1813 = vmatpush1.msra.mxu0 0.0
        %1814 = vmatprep.subr.mxu0 0.0
        %1815 = vmatpush1.msra.mxu0 0.0
        %1816 = vmatprep.subr.mxu0 0.0
        %1817 = vmatpush1.msra.mxu0 0.0
        %1818 = vmatprep.subr.mxu0 0.0
        %1819 = vmatpush1.msra.mxu0 0.0
        %1820 = vmatprep.subr.mxu0 0.0
        %1821 = vmatpush1.msra.mxu0 0.0
        %1822 = vmatprep.subr.mxu0 0.0
        %1823 = vmatpush1.msra.mxu0 0.0
        %1824 = vmatprep.subr.mxu0 0.0
        %1825 = vmatpush1.msra.mxu0 0.0
        %1826 = vmatprep.subr.mxu0 0.0
        %1827 = vmatpush1.msra.mxu0 0.0
        %1828 = vmatprep.subr.mxu0 0.0
        %1829 = vmatpush1.msra.mxu0 0.0
        %1830 = vmatprep.subr.mxu0 0.0
        %1831 = vmatpush1.msra.mxu0 0.0
        %1832 = vmatprep.subr.mxu0 0.0
        %1833 = vmatpush1.msra.mxu0 0.0
        %1834 = vmatprep.subr.mxu0 0.0
        %1835 = vmatpush1.msra.mxu0 0.0
        %1836 = vmatprep.subr.mxu0 0.0
        %1837 = vmatpush1.msra.mxu0 0.0
        %1838 = vmatprep.subr.mxu0 0.0
        %1839 = vmatpush1.msra.mxu0 0.0
        %1840 = vmatprep.subr.mxu0 0.0
        %1841 = vmatpush1.msra.mxu0 0.0
        %1842 = vmatprep.subr.mxu0 0.0
        %1843 = vmatpush1.msra.mxu0 0.0
        %1844 = vmatprep.mubr.f32.mxu0 0.0
        %1845 = vmatmul.mubr.f32.gmra.mrb[0].mxu0 %v1452
        %v1846 = vpop.f32.mrb[0].mxu0
        %v1847 = vadd.f32 %v1198, %v1846
        %v1848 = vpop.f32.mrb[0].mxu0
        %1849 = vmatprep.mubr.f32.mxu0 0.0
        %1850 = vmatmul.mubr.f32.gmra.mrb[0].mxu0 %v1455
        %v1851 = vpop.f32.mrb[0].mxu0
        %v1852 = vadd.f32 %v1203, %v1851
        %v1853 = vpop.f32.mrb[0].mxu0
        %1854 = vmatprep.mubr.f32.mxu0 0.0
        %1855 = vmatmul.mubr.f32.gmra.mrb[0].mxu0 %v1458
        %v1856 = vpop.f32.mrb[0].mxu0
        %v1857 = vadd.f32 %v1208, %v1856
        %v1858 = vpop.f32.mrb[0].mxu0
        %1859 = vdwg.mxu0
        %1860 = vmatprep.subr.mxu0 0.0
        %1861 = vmatpush1.msra.mxu0 %v673
        %1862 = vmatprep.subr.mxu0 0.0
        %1863 = vmatpush1.msra.mxu0 0.0
        %1864 = vmatprep.subr.mxu0 0.0
        %1865 = vmatpush1.msra.mxu0 0.0
        %1866 = vmatprep.subr.mxu0 0.0
        %1867 = vmatpush1.msra.mxu0 0.0
        %1868 = vmatprep.subr.mxu0 0.0
        %1869 = vmatpush1.msra.mxu0 0.0
        %1870 = vmatprep.subr.mxu0 0.0
        %1871 = vmatpush1.msra.mxu0 0.0
        %1872 = vmatprep.subr.mxu0 0.0
        %1873 = vmatpush1.msra.mxu0 0.0
        %1874 = vmatprep.subr.mxu0 0.0
        %1875 = vmatpush1.msra.mxu0 0.0
        %1876 = vmatprep.subr.mxu0 0.0
        %1877 = vmatpush1.msra.mxu0 0.0
        %1878 = vmatprep.subr.mxu0 0.0
        %1879 = vmatpush1.msra.mxu0 0.0
        %1880 = vmatprep.subr.mxu0 0.0
        %1881 = vmatpush1.msra.mxu0 0.0
        %1882 = vmatprep.subr.mxu0 0.0
        %1883 = vmatpush1.msra.mxu0 0.0
        %1884 = vmatprep.subr.mxu0 0.0
        %1885 = vmatpush1.msra.mxu0 0.0
        %1886 = vmatprep.subr.mxu0 0.0
        %1887 = vmatpush1.msra.mxu0 0.0
        %1888 = vmatprep.subr.mxu0 0.0
        %1889 = vmatpush1.msra.mxu0 0.0
        %1890 = vmatprep.subr.mxu0 0.0
        %1891 = vmatpush1.msra.mxu0 0.0
        %1892 = vmatprep.subr.mxu0 0.0
        %1893 = vmatpush1.msra.mxu0 0.0
        %1894 = vmatprep.subr.mxu0 0.0
        %1895 = vmatpush1.msra.mxu0 0.0
        %1896 = vmatprep.subr.mxu0 0.0
        %1897 = vmatpush1.msra.mxu0 0.0
        %1898 = vmatprep.subr.mxu0 0.0
        %1899 = vmatpush1.msra.mxu0 0.0
        %1900 = vmatprep.subr.mxu0 0.0
        %1901 = vmatpush1.msra.mxu0 0.0
        %1902 = vmatprep.subr.mxu0 0.0
        %1903 = vmatpush1.msra.mxu0 0.0
        %1904 = vmatprep.subr.mxu0 0.0
        %1905 = vmatpush1.msra.mxu0 0.0
        %1906 = vmatprep.subr.mxu0 0.0
        %1907 = vmatpush1.msra.mxu0 0.0
        %1908 = vmatprep.subr.mxu0 0.0
        %1909 = vmatpush1.msra.mxu0 0.0
        %1910 = vmatprep.subr.mxu0 0.0
        %1911 = vmatpush1.msra.mxu0 0.0
        %1912 = vmatprep.subr.mxu0 0.0
        %1913 = vmatpush1.msra.mxu0 0.0
        %1914 = vmatprep.subr.mxu0 0.0
        %1915 = vmatpush1.msra.mxu0 0.0
        %1916 = vmatprep.subr.mxu0 0.0
        %1917 = vmatpush1.msra.mxu0 0.0
        %1918 = vmatprep.subr.mxu0 0.0
        %1919 = vmatpush1.msra.mxu0 0.0
        %1920 = vmatprep.subr.mxu0 0.0
        %1921 = vmatpush1.msra.mxu0 0.0
        %1922 = vmatprep.subr.mxu0 0.0
        %1923 = vmatpush1.msra.mxu0 0.0
        %1924 = vmatprep.mubr.f32.mxu0 0.0
        %1925 = vmatmul.mubr.f32.gmra.mrb[0].mxu0 %v1452
        %v1926 = vpop.f32.mrb[0].mxu0
        %v1927 = vadd.f32 %v1278, %v1926
        %v1928 = vpop.f32.mrb[0].mxu0
        %1929 = vmatprep.mubr.f32.mxu0 0.0
        %1930 = vmatmul.mubr.f32.gmra.mrb[0].mxu0 %v1455
        %v1931 = vpop.f32.mrb[0].mxu0
        %v1932 = vadd.f32 %v1283, %v1931
        %v1933 = vpop.f32.mrb[0].mxu0
        %1934 = vmatprep.mubr.f32.mxu0 0.0
        %1935 = vmatmul.mubr.f32.gmra.mrb[0].mxu0 %v1458
        %v1936 = vpop.f32.mrb[0].mxu0
        %v1937 = vadd.f32 %v1288, %v1936
        %v1938 = vpop.f32.mrb[0].mxu0
        %1939 = vdwg.mxu0
        %1940 = vmatprep.subr.mxu0 0.0
        %1941 = vmatpush1.msra.mxu0 %v678
        %1942 = vmatprep.subr.mxu0 0.0
        %1943 = vmatpush1.msra.mxu0 0.0
        %1944 = vmatprep.subr.mxu0 0.0
        %1945 = vmatpush1.msra.mxu0 0.0
        %1946 = vmatprep.subr.mxu0 0.0
        %1947 = vmatpush1.msra.mxu0 0.0
        %1948 = vmatprep.subr.mxu0 0.0
        %1949 = vmatpush1.msra.mxu0 0.0
        %1950 = vmatprep.subr.mxu0 0.0
        %1951 = vmatpush1.msra.mxu0 0.0
        %1952 = vmatprep.subr.mxu0 0.0
        %1953 = vmatpush1.msra.mxu0 0.0
        %1954 = vmatprep.subr.mxu0 0.0
        %1955 = vmatpush1.msra.mxu0 0.0
        %1956 = vmatprep.subr.mxu0 0.0
        %1957 = vmatpush1.msra.mxu0 0.0
        %1958 = vmatprep.subr.mxu0 0.0
        %1959 = vmatpush1.msra.mxu0 0.0
        %1960 = vmatprep.subr.mxu0 0.0
        %1961 = vmatpush1.msra.mxu0 0.0
        %1962 = vmatprep.subr.mxu0 0.0
        %1963 = vmatpush1.msra.mxu0 0.0
        %1964 = vmatprep.subr.mxu0 0.0
        %1965 = vmatpush1.msra.mxu0 0.0
        %1966 = vmatprep.subr.mxu0 0.0
        %1967 = vmatpush1.msra.mxu0 0.0
        %1968 = vmatprep.subr.mxu0 0.0
        %1969 = vmatpush1.msra.mxu0 0.0
        %1970 = vmatprep.subr.mxu0 0.0
        %1971 = vmatpush1.msra.mxu0 0.0
        %1972 = vmatprep.subr.mxu0 0.0
        %1973 = vmatpush1.msra.mxu0 0.0
        %1974 = vmatprep.subr.mxu0 0.0
        %1975 = vmatpush1.msra.mxu0 0.0
        %1976 = vmatprep.subr.mxu0 0.0
        %1977 = vmatpush1.msra.mxu0 0.0
        %1978 = vmatprep.subr.mxu0 0.0
        %1979 = vmatpush1.msra.mxu0 0.0
        %1980 = vmatprep.subr.mxu0 0.0
        %1981 = vmatpush1.msra.mxu0 0.0
        %1982 = vmatprep.subr.mxu0 0.0
        %1983 = vmatpush1.msra.mxu0 0.0
        %1984 = vmatprep.subr.mxu0 0.0
        %1985 = vmatpush1.msra.mxu0 0.0
        %1986 = vmatprep.subr.mxu0 0.0
        %1987 = vmatpush1.msra.mxu0 0.0
        %1988 = vmatprep.subr.mxu0 0.0
        %1989 = vmatpush1.msra.mxu0 0.0
        %1990 = vmatprep.subr.mxu0 0.0
        %1991 = vmatpush1.msra.mxu0 0.0
        %1992 = vmatprep.subr.mxu0 0.0
        %1993 = vmatpush1.msra.mxu0 0.0
        %1994 = vmatprep.subr.mxu0 0.0
        %1995 = vmatpush1.msra.mxu0 0.0
        %1996 = vmatprep.subr.mxu0 0.0
        %1997 = vmatpush1.msra.mxu0 0.0
        %1998 = vmatprep.subr.mxu0 0.0
        %1999 = vmatpush1.msra.mxu0 0.0
        %2000 = vmatprep.subr.mxu0 0.0
        %2001 = vmatpush1.msra.mxu0 0.0
        %2002 = vmatprep.subr.mxu0 0.0
        %2003 = vmatpush1.msra.mxu0 0.0
        %2004 = vmatprep.mubr.f32.mxu0 0.0
        %2005 = vmatmul.mubr.f32.gmra.mrb[0].mxu0 %v1452
        %v2006 = vpop.f32.mrb[0].mxu0
        %v2007 = vadd.f32 %v1358, %v2006
        %v2008 = vpop.f32.mrb[0].mxu0
        %2009 = vmatprep.mubr.f32.mxu0 0.0
        %2010 = vmatmul.mubr.f32.gmra.mrb[0].mxu0 %v1455
        %v2011 = vpop.f32.mrb[0].mxu0
        %v2012 = vadd.f32 %v1363, %v2011
        %v2013 = vpop.f32.mrb[0].mxu0
        %2014 = vmatprep.mubr.f32.mxu0 0.0
        %2015 = vmatmul.mubr.f32.gmra.mrb[0].mxu0 %v1458
        %v2016 = vpop.f32.mrb[0].mxu0
        %v2017 = vadd.f32 %v1368, %v2016
        %v2018 = vpop.f32.mrb[0].mxu0
        %2019 = vdwg.mxu0
        %2020 = vmatprep.subr.mxu0 0.0
        %2021 = vmatpush1.msra.mxu0 %v683
        %2022 = vmatprep.subr.mxu0 0.0
        %2023 = vmatpush1.msra.mxu0 0.0
        %2024 = vmatprep.subr.mxu0 0.0
        %2025 = vmatpush1.msra.mxu0 0.0
        %2026 = vmatprep.subr.mxu0 0.0
        %2027 = vmatpush1.msra.mxu0 0.0
        %2028 = vmatprep.subr.mxu0 0.0
        %2029 = vmatpush1.msra.mxu0 0.0
        %2030 = vmatprep.subr.mxu0 0.0
        %2031 = vmatpush1.msra.mxu0 0.0
        %2032 = vmatprep.subr.mxu0 0.0
        %2033 = vmatpush1.msra.mxu0 0.0
        %2034 = vmatprep.subr.mxu0 0.0
        %2035 = vmatpush1.msra.mxu0 0.0
        %2036 = vmatprep.subr.mxu0 0.0
        %2037 = vmatpush1.msra.mxu0 0.0
        %2038 = vmatprep.subr.mxu0 0.0
        %2039 = vmatpush1.msra.mxu0 0.0
        %2040 = vmatprep.subr.mxu0 0.0
        %2041 = vmatpush1.msra.mxu0 0.0
        %2042 = vmatprep.subr.mxu0 0.0
        %2043 = vmatpush1.msra.mxu0 0.0
        %2044 = vmatprep.subr.mxu0 0.0
        %2045 = vmatpush1.msra.mxu0 0.0
        %2046 = vmatprep.subr.mxu0 0.0
        %2047 = vmatpush1.msra.mxu0 0.0
        %2048 = vmatprep.subr.mxu0 0.0
        %2049 = vmatpush1.msra.mxu0 0.0
        %2050 = vmatprep.subr.mxu0 0.0
        %2051 = vmatpush1.msra.mxu0 0.0
        %2052 = vmatprep.subr.mxu0 0.0
        %2053 = vmatpush1.msra.mxu0 0.0
        %2054 = vmatprep.subr.mxu0 0.0
        %2055 = vmatpush1.msra.mxu0 0.0
        %2056 = vmatprep.subr.mxu0 0.0
        %2057 = vmatpush1.msra.mxu0 0.0
        %2058 = vmatprep.subr.mxu0 0.0
        %2059 = vmatpush1.msra.mxu0 0.0
        %2060 = vmatprep.subr.mxu0 0.0
        %2061 = vmatpush1.msra.mxu0 0.0
        %2062 = vmatprep.subr.mxu0 0.0
        %2063 = vmatpush1.msra.mxu0 0.0
        %2064 = vmatprep.subr.mxu0 0.0
        %2065 = vmatpush1.msra.mxu0 0.0
        %2066 = vmatprep.subr.mxu0 0.0
        %2067 = vmatpush1.msra.mxu0 0.0
        %2068 = vmatprep.subr.mxu0 0.0
        %2069 = vmatpush1.msra.mxu0 0.0
        %2070 = vmatprep.subr.mxu0 0.0
        %2071 = vmatpush1.msra.mxu0 0.0
        %2072 = vmatprep.subr.mxu0 0.0
        %2073 = vmatpush1.msra.mxu0 0.0
        %2074 = vmatprep.subr.mxu0 0.0
        %2075 = vmatpush1.msra.mxu0 0.0
        %2076 = vmatprep.subr.mxu0 0.0
        %2077 = vmatpush1.msra.mxu0 0.0
        %2078 = vmatprep.subr.mxu0 0.0
        %2079 = vmatpush1.msra.mxu0 0.0
        %2080 = vmatprep.subr.mxu0 0.0
        %2081 = vmatpush1.msra.mxu0 0.0
        %2082 = vmatprep.subr.mxu0 0.0
        %2083 = vmatpush1.msra.mxu0 0.0
        %2084 = vmatprep.mubr.f32.mxu0 0.0
        %2085 = vmatmul.mubr.f32.gmra.mrb[0].mxu0 %v1452
        %v2086 = vpop.f32.mrb[0].mxu0
        %v2087 = vadd.f32 %v1438, %v2086
        %v2088 = vpop.f32.mrb[0].mxu0
        %2089 = vmatprep.mubr.f32.mxu0 0.0
        %2090 = vmatmul.mubr.f32.gmra.mrb[0].mxu0 %v1455
        %v2091 = vpop.f32.mrb[0].mxu0
        %v2092 = vadd.f32 %v1443, %v2091
        %v2093 = vpop.f32.mrb[0].mxu0
        %2094 = vmatprep.mubr.f32.mxu0 0.0
        %2095 = vmatmul.mubr.f32.gmra.mrb[0].mxu0 %v1458
        %v2096 = vpop.f32.mrb[0].mxu0
        %v2097 = vadd.f32 %v1448, %v2096
        %v2098 = vpop.f32.mrb[0].mxu0
        %2099 = vdwg.mxu0
        %v2100 = vmax.f32 %v1527, 0.0
        %v2101 = vmax.f32 %v1532, 0.0
        %v2102 = vmax.f32 %v1537, 0.0
        %v2103 = vmax.f32 %v1607, 0.0
        %v2104 = vmax.f32 %v1612, 0.0
        %v2105 = vmax.f32 %v1617, 0.0
        %v2106 = vmax.f32 %v1687, 0.0
        %v2107 = vmax.f32 %v1692, 0.0
        %v2108 = vmax.f32 %v1697, 0.0
        %v2109 = vmax.f32 %v1767, 0.0
        %v2110 = vmax.f32 %v1772, 0.0
        %v2111 = vmax.f32 %v1777, 0.0
        %v2112 = vmax.f32 %v1847, 0.0
        %v2113 = vmax.f32 %v1852, 0.0
        %v2114 = vmax.f32 %v1857, 0.0
        %v2115 = vmax.f32 %v1927, 0.0
        %v2116 = vmax.f32 %v1932, 0.0
        %v2117 = vmax.f32 %v1937, 0.0
        %v2118 = vmax.f32 %v2007, 0.0
        %v2119 = vmax.f32 %v2012, 0.0
        %v2120 = vmax.f32 %v2017, 0.0
        %v2121 = vmax.f32 %v2087, 0.0
        %v2122 = vmax.f32 %v2092, 0.0
        %v2123 = vmax.f32 %v2097, 0.0
        %v2124 = vld [vmem:[%s7] sm:$0xff]
        %v2125 = vld [vmem:[%s7 + $0x8] sm:$0xff]
        %v2126 = vld [vmem:[%s7 + $0x10] sm:$0xff]
        %v2127 = vld [vmem:[%s7 + $0x18] sm:$0xff]
        %v2128 = vld [vmem:[%s7 + $0x20] sm:$0xff]
        %v2129 = vld [vmem:[%s7 + $0x28] sm:$0xff]
        %v2130 = vld [vmem:[%s7 + $0x30] sm:$0xff]
        %v2131 = vld [vmem:[%s7 + $0x38] sm:$0xff]
        %v2132 = vld [vmem:[%s7 + $0x40] sm:$0xff]
        %v2133 = vld [vmem:[%s7 + $0x48] sm:$0xff]
        %v2134 = vld [vmem:[%s7 + $0x50] sm:$0xff]
        %v2135 = vld [vmem:[%s7 + $0x58] sm:$0xff]
        %v2136 = vld [vmem:[%s7 + $0x60] sm:$0xff]
        %v2137 = vld [vmem:[%s7 + $0x68] sm:$0xff]
        %v2138 = vld [vmem:[%s7 + $0x70] sm:$0xff]
        %v2139 = vld [vmem:[%s7 + $0x78] sm:$0xff]
        %v2140 = vld [vmem:[%s8] sm:$0x1]
        %v2142 = vlaneseq
        %v2143 = vshrl.u32 %v2142, 7
        %v2144 = vsub.s32 0, %v2143
        %v2145 = vrot.slane %v2140, %v2144
        %2147 = vmatprep.subr.mxu0 0.0
        %2148 = vmatpush1.msra.mxu0 %v2124
        %2149 = vmatprep.subr.mxu0 0.0
        %2150 = vmatpush1.msra.mxu0 %v2125
        %2151 = vmatprep.subr.mxu0 0.0
        %2152 = vmatpush1.msra.mxu0 %v2126
        %2153 = vmatprep.subr.mxu0 0.0
        %2154 = vmatpush1.msra.mxu0 %v2127
        %2155 = vmatprep.subr.mxu0 0.0
        %2156 = vmatpush1.msra.mxu0 %v2128
        %2157 = vmatprep.subr.mxu0 0.0
        %2158 = vmatpush1.msra.mxu0 %v2129
        %2159 = vmatprep.subr.mxu0 0.0
        %2160 = vmatpush1.msra.mxu0 %v2130
        %2161 = vmatprep.subr.mxu0 0.0
        %2162 = vmatpush1.msra.mxu0 %v2131
        %2163 = vmatprep.subr.mxu0 0.0
        %2164 = vmatpush1.msra.mxu0 %v2132
        %2165 = vmatprep.subr.mxu0 0.0
        %2166 = vmatpush1.msra.mxu0 %v2133
        %2167 = vmatprep.subr.mxu0 0.0
        %2168 = vmatpush1.msra.mxu0 %v2134
        %2169 = vmatprep.subr.mxu0 0.0
        %2170 = vmatpush1.msra.mxu0 %v2135
        %2171 = vmatprep.subr.mxu0 0.0
        %2172 = vmatpush1.msra.mxu0 %v2136
        %2173 = vmatprep.subr.mxu0 0.0
        %2174 = vmatpush1.msra.mxu0 %v2137
        %2175 = vmatprep.subr.mxu0 0.0
        %2176 = vmatpush1.msra.mxu0 %v2138
        %2177 = vmatprep.subr.mxu0 0.0
        %2178 = vmatpush1.msra.mxu0 %v2139
        %2179 = vmatprep.subr.mxu0 0.0
        %2180 = vmatpush1.msra.mxu0 0.0
        %2181 = vmatprep.subr.mxu0 0.0
        %2182 = vmatpush1.msra.mxu0 0.0
        %2183 = vmatprep.subr.mxu0 0.0
        %2184 = vmatpush1.msra.mxu0 0.0
        %2185 = vmatprep.subr.mxu0 0.0
        %2186 = vmatpush1.msra.mxu0 0.0
        %2187 = vmatprep.subr.mxu0 0.0
        %2188 = vmatpush1.msra.mxu0 0.0
        %2189 = vmatprep.subr.mxu0 0.0
        %2190 = vmatpush1.msra.mxu0 0.0
        %2191 = vmatprep.subr.mxu0 0.0
        %2192 = vmatpush1.msra.mxu0 0.0
        %2193 = vmatprep.subr.mxu0 0.0
        %2194 = vmatpush1.msra.mxu0 0.0
        %2195 = vmatprep.subr.mxu0 0.0
        %2196 = vmatpush1.msra.mxu0 0.0
        %2197 = vmatprep.subr.mxu0 0.0
        %2198 = vmatpush1.msra.mxu0 0.0
        %2199 = vmatprep.subr.mxu0 0.0
        %2200 = vmatpush1.msra.mxu0 0.0
        %2201 = vmatprep.subr.mxu0 0.0
        %2202 = vmatpush1.msra.mxu0 0.0
        %2203 = vmatprep.subr.mxu0 0.0
        %2204 = vmatpush1.msra.mxu0 0.0
        %2205 = vmatprep.subr.mxu0 0.0
        %2206 = vmatpush1.msra.mxu0 0.0
        %2207 = vmatprep.subr.mxu0 0.0
        %2208 = vmatpush1.msra.mxu0 0.0
        %2209 = vmatprep.subr.mxu0 0.0
        %2210 = vmatpush1.msra.mxu0 0.0
        %2211 = vmatprep.mubr.f32.mxu0 0.0
        %2212 = vmatmul.mubr.f32.gmra.mrb[0].mxu0 %v2100
        %v2213 = vpop.f32.mrb[0].mxu0
        %v2214 = vadd.f32 %v2145, %v2213
        %v2215 = vpop.f32.mrb[0].mxu0
        %2216 = vmatprep.mubr.f32.mxu0 0.0
        %2217 = vmatmul.mubr.f32.gmra.mrb[0].mxu0 %v2101
        %v2218 = vpop.f32.mrb[0].mxu0
        %v2219 = vadd.f32 %v2145, %v2218
        %v2220 = vpop.f32.mrb[0].mxu0
        %2221 = vmatprep.mubr.f32.mxu0 0.0
        %2222 = vmatmul.mubr.f32.gmra.mrb[0].mxu0 %v2102
        %v2223 = vpop.f32.mrb[0].mxu0
        %v2224 = vadd.f32 %v2145, %v2223
        %v2225 = vpop.f32.mrb[0].mxu0
        %2226 = vmatprep.mubr.f32.mxu0 0.0
        %2227 = vmatmul.mubr.f32.gmra.mrb[0].mxu0 %v2103
        %v2228 = vpop.f32.mrb[0].mxu0
        %v2229 = vadd.f32 %v2145, %v2228
        %v2230 = vpop.f32.mrb[0].mxu0
        %2231 = vmatprep.mubr.f32.mxu0 0.0
        %2232 = vmatmul.mubr.f32.gmra.mrb[0].mxu0 %v2104
        %v2233 = vpop.f32.mrb[0].mxu0
        %v2234 = vadd.f32 %v2145, %v2233
        %v2235 = vpop.f32.mrb[0].mxu0
        %2236 = vmatprep.mubr.f32.mxu0 0.0
        %2237 = vmatmul.mubr.f32.gmra.mrb[0].mxu0 %v2105
        %v2238 = vpop.f32.mrb[0].mxu0
        %v2239 = vadd.f32 %v2145, %v2238
        %v2240 = vpop.f32.mrb[0].mxu0
        %2241 = vmatprep.mubr.f32.mxu0 0.0
        %2242 = vmatmul.mubr.f32.gmra.mrb[0].mxu0 %v2106
        %v2243 = vpop.f32.mrb[0].mxu0
        %v2244 = vadd.f32 %v2145, %v2243
        %v2245 = vpop.f32.mrb[0].mxu0
        %2246 = vmatprep.mubr.f32.mxu0 0.0
        %2247 = vmatmul.mubr.f32.gmra.mrb[0].mxu0 %v2107
        %v2248 = vpop.f32.mrb[0].mxu0
        %v2249 = vadd.f32 %v2145, %v2248
        %v2250 = vpop.f32.mrb[0].mxu0
        %2251 = vmatprep.mubr.f32.mxu0 0.0
        %2252 = vmatmul.mubr.f32.gmra.mrb[0].mxu0 %v2108
        %v2253 = vpop.f32.mrb[0].mxu0
        %v2254 = vadd.f32 %v2145, %v2253
        %v2255 = vpop.f32.mrb[0].mxu0
        %2256 = vmatprep.mubr.f32.mxu0 0.0
        %2257 = vmatmul.mubr.f32.gmra.mrb[0].mxu0 %v2109
        %v2258 = vpop.f32.mrb[0].mxu0
        %v2259 = vadd.f32 %v2145, %v2258
        %v2260 = vpop.f32.mrb[0].mxu0
        %2261 = vmatprep.mubr.f32.mxu0 0.0
        %2262 = vmatmul.mubr.f32.gmra.mrb[0].mxu0 %v2110
        %v2263 = vpop.f32.mrb[0].mxu0
        %v2264 = vadd.f32 %v2145, %v2263
        %v2265 = vpop.f32.mrb[0].mxu0
        %2266 = vmatprep.mubr.f32.mxu0 0.0
        %2267 = vmatmul.mubr.f32.gmra.mrb[0].mxu0 %v2111
        %v2268 = vpop.f32.mrb[0].mxu0
        %v2269 = vadd.f32 %v2145, %v2268
        %v2270 = vpop.f32.mrb[0].mxu0
        %2271 = vmatprep.mubr.f32.mxu0 0.0
        %2272 = vmatmul.mubr.f32.gmra.mrb[0].mxu0 %v2112
        %v2273 = vpop.f32.mrb[0].mxu0
        %v2274 = vadd.f32 %v2145, %v2273
        %v2275 = vpop.f32.mrb[0].mxu0
        %2276 = vmatprep.mubr.f32.mxu0 0.0
        %2277 = vmatmul.mubr.f32.gmra.mrb[0].mxu0 %v2113
        %v2278 = vpop.f32.mrb[0].mxu0
        %v2279 = vadd.f32 %v2145, %v2278
        %v2280 = vpop.f32.mrb[0].mxu0
        %2281 = vmatprep.mubr.f32.mxu0 0.0
        %2282 = vmatmul.mubr.f32.gmra.mrb[0].mxu0 %v2114
        %v2283 = vpop.f32.mrb[0].mxu0
        %v2284 = vadd.f32 %v2145, %v2283
        %v2285 = vpop.f32.mrb[0].mxu0
        %2286 = vmatprep.mubr.f32.mxu0 0.0
        %2287 = vmatmul.mubr.f32.gmra.mrb[0].mxu0 %v2115
        %v2288 = vpop.f32.mrb[0].mxu0
        %v2289 = vadd.f32 %v2145, %v2288
        %v2290 = vpop.f32.mrb[0].mxu0
        %2291 = vmatprep.mubr.f32.mxu0 0.0
        %2292 = vmatmul.mubr.f32.gmra.mrb[0].mxu0 %v2116
        %v2293 = vpop.f32.mrb[0].mxu0
        %v2294 = vadd.f32 %v2145, %v2293
        %v2295 = vpop.f32.mrb[0].mxu0
        %2296 = vmatprep.mubr.f32.mxu0 0.0
        %2297 = vmatmul.mubr.f32.gmra.mrb[0].mxu0 %v2117
        %v2298 = vpop.f32.mrb[0].mxu0
        %v2299 = vadd.f32 %v2145, %v2298
        %v2300 = vpop.f32.mrb[0].mxu0
        %2301 = vmatprep.mubr.f32.mxu0 0.0
        %2302 = vmatmul.mubr.f32.gmra.mrb[0].mxu0 %v2118
        %v2303 = vpop.f32.mrb[0].mxu0
        %v2304 = vadd.f32 %v2145, %v2303
        %v2305 = vpop.f32.mrb[0].mxu0
        %2306 = vmatprep.mubr.f32.mxu0 0.0
        %2307 = vmatmul.mubr.f32.gmra.mrb[0].mxu0 %v2119
        %v2308 = vpop.f32.mrb[0].mxu0
        %v2309 = vadd.f32 %v2145, %v2308
        %v2310 = vpop.f32.mrb[0].mxu0
        %2311 = vmatprep.mubr.f32.mxu0 0.0
        %2312 = vmatmul.mubr.f32.gmra.mrb[0].mxu0 %v2120
        %v2313 = vpop.f32.mrb[0].mxu0
        %v2314 = vadd.f32 %v2145, %v2313
        %v2315 = vpop.f32.mrb[0].mxu0
        %2316 = vmatprep.mubr.f32.mxu0 0.0
        %2317 = vmatmul.mubr.f32.gmra.mrb[0].mxu0 %v2121
        %v2318 = vpop.f32.mrb[0].mxu0
        %v2319 = vadd.f32 %v2145, %v2318
        %v2320 = vpop.f32.mrb[0].mxu0
        %2321 = vmatprep.mubr.f32.mxu0 0.0
        %2322 = vmatmul.mubr.f32.gmra.mrb[0].mxu0 %v2122
        %v2323 = vpop.f32.mrb[0].mxu0
        %v2324 = vadd.f32 %v2145, %v2323
        %v2325 = vpop.f32.mrb[0].mxu0
        %2326 = vmatprep.mubr.f32.mxu0 0.0
        %2327 = vmatmul.mubr.f32.gmra.mrb[0].mxu0 %v2123
        %v2328 = vpop.f32.mrb[0].mxu0
        %v2329 = vadd.f32 %v2145, %v2328
        %v2330 = vpop.f32.mrb[0].mxu0
        %2331 = vdwg.mxu0
        %v2332 = vmax.f32 %v2214, 0.0
        %v2333 = vmax.f32 %v2219, 0.0
        %v2334 = vmax.f32 %v2224, 0.0
        %v2335 = vmax.f32 %v2229, 0.0
        %v2336 = vmax.f32 %v2234, 0.0
        %v2337 = vmax.f32 %v2239, 0.0
        %v2338 = vmax.f32 %v2244, 0.0
        %v2339 = vmax.f32 %v2249, 0.0
        %v2340 = vmax.f32 %v2254, 0.0
        %v2341 = vmax.f32 %v2259, 0.0
        %v2342 = vmax.f32 %v2264, 0.0
        %v2343 = vmax.f32 %v2269, 0.0
        %v2344 = vmax.f32 %v2274, 0.0
        %v2345 = vmax.f32 %v2279, 0.0
        %v2346 = vmax.f32 %v2284, 0.0
        %v2347 = vmax.f32 %v2289, 0.0
        %v2348 = vmax.f32 %v2294, 0.0
        %v2349 = vmax.f32 %v2299, 0.0
        %v2350 = vmax.f32 %v2304, 0.0
        %v2351 = vmax.f32 %v2309, 0.0
        %v2352 = vmax.f32 %v2314, 0.0
        %v2353 = vmax.f32 %v2319, 0.0
        %v2354 = vmax.f32 %v2324, 0.0
        %v2355 = vmax.f32 %v2329, 0.0
        %v2356 = vld [vmem:[#allocation2] sm:$0xff]
        %vm2357 = vcmask 195584
        %v2359 = vsel %vm2357, %v2356, 0
        %2361 = vmatprep.subr.mxu0 0.0
        %2362 = vmatpush1.msra.mxu0 %v2332
        %2363 = vmatprep.subr.mxu0 0.0
        %2364 = vmatpush1.msra.mxu0 %v2333
        %2365 = vmatprep.subr.mxu0 0.0
        %2366 = vmatpush1.msra.mxu0 %v2334
        %2367 = vmatprep.subr.mxu0 0.0
        %2368 = vmatpush1.msra.mxu0 0.0
        %2369 = vmatprep.subr.mxu0 0.0
        %2370 = vmatpush1.msra.mxu0 0.0
        %2371 = vmatprep.subr.mxu0 0.0
        %2372 = vmatpush1.msra.mxu0 0.0
        %2373 = vmatprep.subr.mxu0 0.0
        %2374 = vmatpush1.msra.mxu0 0.0
        %2375 = vmatprep.subr.mxu0 0.0
        %2376 = vmatpush1.msra.mxu0 0.0
        %2377 = vmatprep.subr.mxu0 0.0
        %2378 = vmatpush1.msra.mxu0 0.0
        %2379 = vmatprep.subr.mxu0 0.0
        %2380 = vmatpush1.msra.mxu0 0.0
        %2381 = vmatprep.subr.mxu0 0.0
        %2382 = vmatpush1.msra.mxu0 0.0
        %2383 = vmatprep.subr.mxu0 0.0
        %2384 = vmatpush1.msra.mxu0 0.0
        %2385 = vmatprep.subr.mxu0 0.0
        %2386 = vmatpush1.msra.mxu0 0.0
        %2387 = vmatprep.subr.mxu0 0.0
        %2388 = vmatpush1.msra.mxu0 0.0
        %2389 = vmatprep.subr.mxu0 0.0
        %2390 = vmatpush1.msra.mxu0 0.0
        %2391 = vmatprep.subr.mxu0 0.0
        %2392 = vmatpush1.msra.mxu0 0.0
        %2393 = vmatprep.subr.mxu0 0.0
        %2394 = vmatpush1.msra.mxu0 0.0
        %2395 = vmatprep.subr.mxu0 0.0
        %2396 = vmatpush1.msra.mxu0 0.0
        %2397 = vmatprep.subr.mxu0 0.0
        %2398 = vmatpush1.msra.mxu0 0.0
        %2399 = vmatprep.subr.mxu0 0.0
        %2400 = vmatpush1.msra.mxu0 0.0
        %2401 = vmatprep.subr.mxu0 0.0
        %2402 = vmatpush1.msra.mxu0 0.0
        %2403 = vmatprep.subr.mxu0 0.0
        %2404 = vmatpush1.msra.mxu0 0.0
        %2405 = vmatprep.subr.mxu0 0.0
        %2406 = vmatpush1.msra.mxu0 0.0
        %2407 = vmatprep.subr.mxu0 0.0
        %2408 = vmatpush1.msra.mxu0 0.0
        %2409 = vmatprep.subr.mxu0 0.0
        %2410 = vmatpush1.msra.mxu0 0.0
        %2411 = vmatprep.subr.mxu0 0.0
        %2412 = vmatpush1.msra.mxu0 0.0
        %2413 = vmatprep.subr.mxu0 0.0
        %2414 = vmatpush1.msra.mxu0 0.0
        %2415 = vmatprep.subr.mxu0 0.0
        %2416 = vmatpush1.msra.mxu0 0.0
        %2417 = vmatprep.subr.mxu0 0.0
        %2418 = vmatpush1.msra.mxu0 0.0
        %2419 = vmatprep.subr.mxu0 0.0
        %2420 = vmatpush1.msra.mxu0 0.0
        %2421 = vmatprep.subr.mxu0 0.0
        %2422 = vmatpush1.msra.mxu0 0.0
        %2423 = vmatprep.subr.mxu0 0.0
        %2424 = vmatpush1.msra.mxu0 0.0
        %2425 = vmatprep.mubr.f32.mxu0 0.0
        %2426 = vmatmul.mubr.f32.gmra.mrb[0].mxu0 %v2359
        %v2427 = vpop.f32.mrb[0].mxu0
        %v2428 = vadd.f32 0.0, %v2427
        %v2429 = vpop.f32.mrb[0].mxu0
        %2430 = vdwg.mxu0
        %2431 = vmatprep.subr.mxu0 0.0
        %2432 = vmatpush1.msra.mxu0 %v2335
        %2433 = vmatprep.subr.mxu0 0.0
        %2434 = vmatpush1.msra.mxu0 %v2336
        %2435 = vmatprep.subr.mxu0 0.0
        %2436 = vmatpush1.msra.mxu0 %v2337
        %2437 = vmatprep.subr.mxu0 0.0
        %2438 = vmatpush1.msra.mxu0 0.0
        %2439 = vmatprep.subr.mxu0 0.0
        %2440 = vmatpush1.msra.mxu0 0.0
        %2441 = vmatprep.subr.mxu0 0.0
        %2442 = vmatpush1.msra.mxu0 0.0
        %2443 = vmatprep.subr.mxu0 0.0
        %2444 = vmatpush1.msra.mxu0 0.0
        %2445 = vmatprep.subr.mxu0 0.0
        %2446 = vmatpush1.msra.mxu0 0.0
        %2447 = vmatprep.subr.mxu0 0.0
        %2448 = vmatpush1.msra.mxu0 0.0
        %2449 = vmatprep.subr.mxu0 0.0
        %2450 = vmatpush1.msra.mxu0 0.0
        %2451 = vmatprep.subr.mxu0 0.0
        %2452 = vmatpush1.msra.mxu0 0.0
        %2453 = vmatprep.subr.mxu0 0.0
        %2454 = vmatpush1.msra.mxu0 0.0
        %2455 = vmatprep.subr.mxu0 0.0
        %2456 = vmatpush1.msra.mxu0 0.0
        %2457 = vmatprep.subr.mxu0 0.0
        %2458 = vmatpush1.msra.mxu0 0.0
        %2459 = vmatprep.subr.mxu0 0.0
        %2460 = vmatpush1.msra.mxu0 0.0
        %2461 = vmatprep.subr.mxu0 0.0
        %2462 = vmatpush1.msra.mxu0 0.0
        %2463 = vmatprep.subr.mxu0 0.0
        %2464 = vmatpush1.msra.mxu0 0.0
        %2465 = vmatprep.subr.mxu0 0.0
        %2466 = vmatpush1.msra.mxu0 0.0
        %2467 = vmatprep.subr.mxu0 0.0
        %2468 = vmatpush1.msra.mxu0 0.0
        %2469 = vmatprep.subr.mxu0 0.0
        %2470 = vmatpush1.msra.mxu0 0.0
        %2471 = vmatprep.subr.mxu0 0.0
        %2472 = vmatpush1.msra.mxu0 0.0
        %2473 = vmatprep.subr.mxu0 0.0
        %2474 = vmatpush1.msra.mxu0 0.0
        %2475 = vmatprep.subr.mxu0 0.0
        %2476 = vmatpush1.msra.mxu0 0.0
        %2477 = vmatprep.subr.mxu0 0.0
        %2478 = vmatpush1.msra.mxu0 0.0
        %2479 = vmatprep.subr.mxu0 0.0
        %2480 = vmatpush1.msra.mxu0 0.0
        %2481 = vmatprep.subr.mxu0 0.0
        %2482 = vmatpush1.msra.mxu0 0.0
        %2483 = vmatprep.subr.mxu0 0.0
        %2484 = vmatpush1.msra.mxu0 0.0
        %2485 = vmatprep.subr.mxu0 0.0
        %2486 = vmatpush1.msra.mxu0 0.0
        %2487 = vmatprep.subr.mxu0 0.0
        %2488 = vmatpush1.msra.mxu0 0.0
        %2489 = vmatprep.subr.mxu0 0.0
        %2490 = vmatpush1.msra.mxu0 0.0
        %2491 = vmatprep.subr.mxu0 0.0
        %2492 = vmatpush1.msra.mxu0 0.0
        %2493 = vmatprep.subr.mxu0 0.0
        %2494 = vmatpush1.msra.mxu0 0.0
        %2495 = vmatprep.mubr.f32.mxu0 0.0
        %2496 = vmatmul.mubr.f32.gmra.mrb[0].mxu0 %v2359
        %v2497 = vpop.f32.mrb[0].mxu0
        %v2498 = vadd.f32 0.0, %v2497
        %v2499 = vpop.f32.mrb[0].mxu0
        %2500 = vdwg.mxu0
        %2501 = vmatprep.subr.mxu0 0.0
        %2502 = vmatpush1.msra.mxu0 %v2338
        %2503 = vmatprep.subr.mxu0 0.0
        %2504 = vmatpush1.msra.mxu0 %v2339
        %2505 = vmatprep.subr.mxu0 0.0
        %2506 = vmatpush1.msra.mxu0 %v2340
        %2507 = vmatprep.subr.mxu0 0.0
        %2508 = vmatpush1.msra.mxu0 0.0
        %2509 = vmatprep.subr.mxu0 0.0
        %2510 = vmatpush1.msra.mxu0 0.0
        %2511 = vmatprep.subr.mxu0 0.0
        %2512 = vmatpush1.msra.mxu0 0.0
        %2513 = vmatprep.subr.mxu0 0.0
        %2514 = vmatpush1.msra.mxu0 0.0
        %2515 = vmatprep.subr.mxu0 0.0
        %2516 = vmatpush1.msra.mxu0 0.0
        %2517 = vmatprep.subr.mxu0 0.0
        %2518 = vmatpush1.msra.mxu0 0.0
        %2519 = vmatprep.subr.mxu0 0.0
        %2520 = vmatpush1.msra.mxu0 0.0
        %2521 = vmatprep.subr.mxu0 0.0
        %2522 = vmatpush1.msra.mxu0 0.0
        %2523 = vmatprep.subr.mxu0 0.0
        %2524 = vmatpush1.msra.mxu0 0.0
        %2525 = vmatprep.subr.mxu0 0.0
        %2526 = vmatpush1.msra.mxu0 0.0
        %2527 = vmatprep.subr.mxu0 0.0
        %2528 = vmatpush1.msra.mxu0 0.0
        %2529 = vmatprep.subr.mxu0 0.0
        %2530 = vmatpush1.msra.mxu0 0.0
        %2531 = vmatprep.subr.mxu0 0.0
        %2532 = vmatpush1.msra.mxu0 0.0
        %2533 = vmatprep.subr.mxu0 0.0
        %2534 = vmatpush1.msra.mxu0 0.0
        %2535 = vmatprep.subr.mxu0 0.0
        %2536 = vmatpush1.msra.mxu0 0.0
        %2537 = vmatprep.subr.mxu0 0.0
        %2538 = vmatpush1.msra.mxu0 0.0
        %2539 = vmatprep.subr.mxu0 0.0
        %2540 = vmatpush1.msra.mxu0 0.0
        %2541 = vmatprep.subr.mxu0 0.0
        %2542 = vmatpush1.msra.mxu0 0.0
        %2543 = vmatprep.subr.mxu0 0.0
        %2544 = vmatpush1.msra.mxu0 0.0
        %2545 = vmatprep.subr.mxu0 0.0
        %2546 = vmatpush1.msra.mxu0 0.0
        %2547 = vmatprep.subr.mxu0 0.0
        %2548 = vmatpush1.msra.mxu0 0.0
        %2549 = vmatprep.subr.mxu0 0.0
        %2550 = vmatpush1.msra.mxu0 0.0
        %2551 = vmatprep.subr.mxu0 0.0
        %2552 = vmatpush1.msra.mxu0 0.0
        %2553 = vmatprep.subr.mxu0 0.0
        %2554 = vmatpush1.msra.mxu0 0.0
        %2555 = vmatprep.subr.mxu0 0.0
        %2556 = vmatpush1.msra.mxu0 0.0
        %2557 = vmatprep.subr.mxu0 0.0
        %2558 = vmatpush1.msra.mxu0 0.0
        %2559 = vmatprep.subr.mxu0 0.0
        %2560 = vmatpush1.msra.mxu0 0.0
        %2561 = vmatprep.subr.mxu0 0.0
        %2562 = vmatpush1.msra.mxu0 0.0
        %2563 = vmatprep.subr.mxu0 0.0
        %2564 = vmatpush1.msra.mxu0 0.0
        %2565 = vmatprep.mubr.f32.mxu0 0.0
        %2566 = vmatmul.mubr.f32.gmra.mrb[0].mxu0 %v2359
        %v2567 = vpop.f32.mrb[0].mxu0
        %v2568 = vadd.f32 0.0, %v2567
        %v2569 = vpop.f32.mrb[0].mxu0
        %2570 = vdwg.mxu0
        %2571 = vmatprep.subr.mxu0 0.0
        %2572 = vmatpush1.msra.mxu0 %v2341
        %2573 = vmatprep.subr.mxu0 0.0
        %2574 = vmatpush1.msra.mxu0 %v2342
        %2575 = vmatprep.subr.mxu0 0.0
        %2576 = vmatpush1.msra.mxu0 %v2343
        %2577 = vmatprep.subr.mxu0 0.0
        %2578 = vmatpush1.msra.mxu0 0.0
        %2579 = vmatprep.subr.mxu0 0.0
        %2580 = vmatpush1.msra.mxu0 0.0
        %2581 = vmatprep.subr.mxu0 0.0
        %2582 = vmatpush1.msra.mxu0 0.0
        %2583 = vmatprep.subr.mxu0 0.0
        %2584 = vmatpush1.msra.mxu0 0.0
        %2585 = vmatprep.subr.mxu0 0.0
        %2586 = vmatpush1.msra.mxu0 0.0
        %2587 = vmatprep.subr.mxu0 0.0
        %2588 = vmatpush1.msra.mxu0 0.0
        %2589 = vmatprep.subr.mxu0 0.0
        %2590 = vmatpush1.msra.mxu0 0.0
        %2591 = vmatprep.subr.mxu0 0.0
        %2592 = vmatpush1.msra.mxu0 0.0
        %2593 = vmatprep.subr.mxu0 0.0
        %2594 = vmatpush1.msra.mxu0 0.0
        %2595 = vmatprep.subr.mxu0 0.0
        %2596 = vmatpush1.msra.mxu0 0.0
        %2597 = vmatprep.subr.mxu0 0.0
        %2598 = vmatpush1.msra.mxu0 0.0
        %2599 = vmatprep.subr.mxu0 0.0
        %2600 = vmatpush1.msra.mxu0 0.0
        %2601 = vmatprep.subr.mxu0 0.0
        %2602 = vmatpush1.msra.mxu0 0.0
        %2603 = vmatprep.subr.mxu0 0.0
        %2604 = vmatpush1.msra.mxu0 0.0
        %2605 = vmatprep.subr.mxu0 0.0
        %2606 = vmatpush1.msra.mxu0 0.0
        %2607 = vmatprep.subr.mxu0 0.0
        %2608 = vmatpush1.msra.mxu0 0.0
        %2609 = vmatprep.subr.mxu0 0.0
        %2610 = vmatpush1.msra.mxu0 0.0
        %2611 = vmatprep.subr.mxu0 0.0
        %2612 = vmatpush1.msra.mxu0 0.0
        %2613 = vmatprep.subr.mxu0 0.0
        %2614 = vmatpush1.msra.mxu0 0.0
        %2615 = vmatprep.subr.mxu0 0.0
        %2616 = vmatpush1.msra.mxu0 0.0
        %2617 = vmatprep.subr.mxu0 0.0
        %2618 = vmatpush1.msra.mxu0 0.0
        %2619 = vmatprep.subr.mxu0 0.0
        %2620 = vmatpush1.msra.mxu0 0.0
        %2621 = vmatprep.subr.mxu0 0.0
        %2622 = vmatpush1.msra.mxu0 0.0
        %2623 = vmatprep.subr.mxu0 0.0
        %2624 = vmatpush1.msra.mxu0 0.0
        %2625 = vmatprep.subr.mxu0 0.0
        %2626 = vmatpush1.msra.mxu0 0.0
        %2627 = vmatprep.subr.mxu0 0.0
        %2628 = vmatpush1.msra.mxu0 0.0
        %2629 = vmatprep.subr.mxu0 0.0
        %2630 = vmatpush1.msra.mxu0 0.0
        %2631 = vmatprep.subr.mxu0 0.0
        %2632 = vmatpush1.msra.mxu0 0.0
        %2633 = vmatprep.subr.mxu0 0.0
        %2634 = vmatpush1.msra.mxu0 0.0
        %2635 = vmatprep.mubr.f32.mxu0 0.0
        %2636 = vmatmul.mubr.f32.gmra.mrb[0].mxu0 %v2359
        %v2637 = vpop.f32.mrb[0].mxu0
        %v2638 = vadd.f32 0.0, %v2637
        %v2639 = vpop.f32.mrb[0].mxu0
        %2640 = vdwg.mxu0
        %2641 = vmatprep.subr.mxu0 0.0
        %2642 = vmatpush1.msra.mxu0 %v2344
        %2643 = vmatprep.subr.mxu0 0.0
        %2644 = vmatpush1.msra.mxu0 %v2345
        %2645 = vmatprep.subr.mxu0 0.0
        %2646 = vmatpush1.msra.mxu0 %v2346
        %2647 = vmatprep.subr.mxu0 0.0
        %2648 = vmatpush1.msra.mxu0 0.0
        %2649 = vmatprep.subr.mxu0 0.0
        %2650 = vmatpush1.msra.mxu0 0.0
        %2651 = vmatprep.subr.mxu0 0.0
        %2652 = vmatpush1.msra.mxu0 0.0
        %2653 = vmatprep.subr.mxu0 0.0
        %2654 = vmatpush1.msra.mxu0 0.0
        %2655 = vmatprep.subr.mxu0 0.0
        %2656 = vmatpush1.msra.mxu0 0.0
        %2657 = vmatprep.subr.mxu0 0.0
        %2658 = vmatpush1.msra.mxu0 0.0
        %2659 = vmatprep.subr.mxu0 0.0
        %2660 = vmatpush1.msra.mxu0 0.0
        %2661 = vmatprep.subr.mxu0 0.0
        %2662 = vmatpush1.msra.mxu0 0.0
        %2663 = vmatprep.subr.mxu0 0.0
        %2664 = vmatpush1.msra.mxu0 0.0
        %2665 = vmatprep.subr.mxu0 0.0
        %2666 = vmatpush1.msra.mxu0 0.0
        %2667 = vmatprep.subr.mxu0 0.0
        %2668 = vmatpush1.msra.mxu0 0.0
        %2669 = vmatprep.subr.mxu0 0.0
        %2670 = vmatpush1.msra.mxu0 0.0
        %2671 = vmatprep.subr.mxu0 0.0
        %2672 = vmatpush1.msra.mxu0 0.0
        %2673 = vmatprep.subr.mxu0 0.0
        %2674 = vmatpush1.msra.mxu0 0.0
        %2675 = vmatprep.subr.mxu0 0.0
        %2676 = vmatpush1.msra.mxu0 0.0
        %2677 = vmatprep.subr.mxu0 0.0
        %2678 = vmatpush1.msra.mxu0 0.0
        %2679 = vmatprep.subr.mxu0 0.0
        %2680 = vmatpush1.msra.mxu0 0.0
        %2681 = vmatprep.subr.mxu0 0.0
        %2682 = vmatpush1.msra.mxu0 0.0
        %2683 = vmatprep.subr.mxu0 0.0
        %2684 = vmatpush1.msra.mxu0 0.0
        %2685 = vmatprep.subr.mxu0 0.0
        %2686 = vmatpush1.msra.mxu0 0.0
        %2687 = vmatprep.subr.mxu0 0.0
        %2688 = vmatpush1.msra.mxu0 0.0
        %2689 = vmatprep.subr.mxu0 0.0
        %2690 = vmatpush1.msra.mxu0 0.0
        %2691 = vmatprep.subr.mxu0 0.0
        %2692 = vmatpush1.msra.mxu0 0.0
        %2693 = vmatprep.subr.mxu0 0.0
        %2694 = vmatpush1.msra.mxu0 0.0
        %2695 = vmatprep.subr.mxu0 0.0
        %2696 = vmatpush1.msra.mxu0 0.0
        %2697 = vmatprep.subr.mxu0 0.0
        %2698 = vmatpush1.msra.mxu0 0.0
        %2699 = vmatprep.subr.mxu0 0.0
        %2700 = vmatpush1.msra.mxu0 0.0
        %2701 = vmatprep.subr.mxu0 0.0
        %2702 = vmatpush1.msra.mxu0 0.0
        %2703 = vmatprep.subr.mxu0 0.0
        %2704 = vmatpush1.msra.mxu0 0.0
        %2705 = vmatprep.mubr.f32.mxu0 0.0
        %2706 = vmatmul.mubr.f32.gmra.mrb[0].mxu0 %v2359
        %v2707 = vpop.f32.mrb[0].mxu0
        %v2708 = vadd.f32 0.0, %v2707
        %v2709 = vpop.f32.mrb[0].mxu0
        %2710 = vdwg.mxu0
        %2711 = vmatprep.subr.mxu0 0.0
        %2712 = vmatpush1.msra.mxu0 %v2347
        %2713 = vmatprep.subr.mxu0 0.0
        %2714 = vmatpush1.msra.mxu0 %v2348
        %2715 = vmatprep.subr.mxu0 0.0
        %2716 = vmatpush1.msra.mxu0 %v2349
        %2717 = vmatprep.subr.mxu0 0.0
        %2718 = vmatpush1.msra.mxu0 0.0
        %2719 = vmatprep.subr.mxu0 0.0
        %2720 = vmatpush1.msra.mxu0 0.0
        %2721 = vmatprep.subr.mxu0 0.0
        %2722 = vmatpush1.msra.mxu0 0.0
        %2723 = vmatprep.subr.mxu0 0.0
        %2724 = vmatpush1.msra.mxu0 0.0
        %2725 = vmatprep.subr.mxu0 0.0
        %2726 = vmatpush1.msra.mxu0 0.0
        %2727 = vmatprep.subr.mxu0 0.0
        %2728 = vmatpush1.msra.mxu0 0.0
        %2729 = vmatprep.subr.mxu0 0.0
        %2730 = vmatpush1.msra.mxu0 0.0
        %2731 = vmatprep.subr.mxu0 0.0
        %2732 = vmatpush1.msra.mxu0 0.0
        %2733 = vmatprep.subr.mxu0 0.0
        %2734 = vmatpush1.msra.mxu0 0.0
        %2735 = vmatprep.subr.mxu0 0.0
        %2736 = vmatpush1.msra.mxu0 0.0
        %2737 = vmatprep.subr.mxu0 0.0
        %2738 = vmatpush1.msra.mxu0 0.0
        %2739 = vmatprep.subr.mxu0 0.0
        %2740 = vmatpush1.msra.mxu0 0.0
        %2741 = vmatprep.subr.mxu0 0.0
        %2742 = vmatpush1.msra.mxu0 0.0
        %2743 = vmatprep.subr.mxu0 0.0
        %2744 = vmatpush1.msra.mxu0 0.0
        %2745 = vmatprep.subr.mxu0 0.0
        %2746 = vmatpush1.msra.mxu0 0.0
        %2747 = vmatprep.subr.mxu0 0.0
        %2748 = vmatpush1.msra.mxu0 0.0
        %2749 = vmatprep.subr.mxu0 0.0
        %2750 = vmatpush1.msra.mxu0 0.0
        %2751 = vmatprep.subr.mxu0 0.0
        %2752 = vmatpush1.msra.mxu0 0.0
        %2753 = vmatprep.subr.mxu0 0.0
        %2754 = vmatpush1.msra.mxu0 0.0
        %2755 = vmatprep.subr.mxu0 0.0
        %2756 = vmatpush1.msra.mxu0 0.0
        %2757 = vmatprep.subr.mxu0 0.0
        %2758 = vmatpush1.msra.mxu0 0.0
        %2759 = vmatprep.subr.mxu0 0.0
        %2760 = vmatpush1.msra.mxu0 0.0
        %2761 = vmatprep.subr.mxu0 0.0
        %2762 = vmatpush1.msra.mxu0 0.0
        %2763 = vmatprep.subr.mxu0 0.0
        %2764 = vmatpush1.msra.mxu0 0.0
        %2765 = vmatprep.subr.mxu0 0.0
        %2766 = vmatpush1.msra.mxu0 0.0
        %2767 = vmatprep.subr.mxu0 0.0
        %2768 = vmatpush1.msra.mxu0 0.0
        %2769 = vmatprep.subr.mxu0 0.0
        %2770 = vmatpush1.msra.mxu0 0.0
        %2771 = vmatprep.subr.mxu0 0.0
        %2772 = vmatpush1.msra.mxu0 0.0
        %2773 = vmatprep.subr.mxu0 0.0
        %2774 = vmatpush1.msra.mxu0 0.0
        %2775 = vmatprep.mubr.f32.mxu0 0.0
        %2776 = vmatmul.mubr.f32.gmra.mrb[0].mxu0 %v2359
        %v2777 = vpop.f32.mrb[0].mxu0
        %v2778 = vadd.f32 0.0, %v2777
        %v2779 = vpop.f32.mrb[0].mxu0
        %2780 = vdwg.mxu0
        %2781 = vmatprep.subr.mxu0 0.0
        %2782 = vmatpush1.msra.mxu0 %v2350
        %2783 = vmatprep.subr.mxu0 0.0
        %2784 = vmatpush1.msra.mxu0 %v2351
        %2785 = vmatprep.subr.mxu0 0.0
        %2786 = vmatpush1.msra.mxu0 %v2352
        %2787 = vmatprep.subr.mxu0 0.0
        %2788 = vmatpush1.msra.mxu0 0.0
        %2789 = vmatprep.subr.mxu0 0.0
        %2790 = vmatpush1.msra.mxu0 0.0
        %2791 = vmatprep.subr.mxu0 0.0
        %2792 = vmatpush1.msra.mxu0 0.0
        %2793 = vmatprep.subr.mxu0 0.0
        %2794 = vmatpush1.msra.mxu0 0.0
        %2795 = vmatprep.subr.mxu0 0.0
        %2796 = vmatpush1.msra.mxu0 0.0
        %2797 = vmatprep.subr.mxu0 0.0
        %2798 = vmatpush1.msra.mxu0 0.0
        %2799 = vmatprep.subr.mxu0 0.0
        %2800 = vmatpush1.msra.mxu0 0.0
        %2801 = vmatprep.subr.mxu0 0.0
        %2802 = vmatpush1.msra.mxu0 0.0
        %2803 = vmatprep.subr.mxu0 0.0
        %2804 = vmatpush1.msra.mxu0 0.0
        %2805 = vmatprep.subr.mxu0 0.0
        %2806 = vmatpush1.msra.mxu0 0.0
        %2807 = vmatprep.subr.mxu0 0.0
        %2808 = vmatpush1.msra.mxu0 0.0
        %2809 = vmatprep.subr.mxu0 0.0
        %2810 = vmatpush1.msra.mxu0 0.0
        %2811 = vmatprep.subr.mxu0 0.0
        %2812 = vmatpush1.msra.mxu0 0.0
        %2813 = vmatprep.subr.mxu0 0.0
        %2814 = vmatpush1.msra.mxu0 0.0
        %2815 = vmatprep.subr.mxu0 0.0
        %2816 = vmatpush1.msra.mxu0 0.0
        %2817 = vmatprep.subr.mxu0 0.0
        %2818 = vmatpush1.msra.mxu0 0.0
        %2819 = vmatprep.subr.mxu0 0.0
        %2820 = vmatpush1.msra.mxu0 0.0
        %2821 = vmatprep.subr.mxu0 0.0
        %2822 = vmatpush1.msra.mxu0 0.0
        %2823 = vmatprep.subr.mxu0 0.0
        %2824 = vmatpush1.msra.mxu0 0.0
        %2825 = vmatprep.subr.mxu0 0.0
        %2826 = vmatpush1.msra.mxu0 0.0
        %2827 = vmatprep.subr.mxu0 0.0
        %2828 = vmatpush1.msra.mxu0 0.0
        %2829 = vmatprep.subr.mxu0 0.0
        %2830 = vmatpush1.msra.mxu0 0.0
        %2831 = vmatprep.subr.mxu0 0.0
        %2832 = vmatpush1.msra.mxu0 0.0
        %2833 = vmatprep.subr.mxu0 0.0
        %2834 = vmatpush1.msra.mxu0 0.0
        %2835 = vmatprep.subr.mxu0 0.0
        %2836 = vmatpush1.msra.mxu0 0.0
        %2837 = vmatprep.subr.mxu0 0.0
        %2838 = vmatpush1.msra.mxu0 0.0
        %2839 = vmatprep.subr.mxu0 0.0
        %2840 = vmatpush1.msra.mxu0 0.0
        %2841 = vmatprep.subr.mxu0 0.0
        %2842 = vmatpush1.msra.mxu0 0.0
        %2843 = vmatprep.subr.mxu0 0.0
        %2844 = vmatpush1.msra.mxu0 0.0
        %2845 = vmatprep.mubr.f32.mxu0 0.0
        %2846 = vmatmul.mubr.f32.gmra.mrb[0].mxu0 %v2359
        %v2847 = vpop.f32.mrb[0].mxu0
        %v2848 = vadd.f32 0.0, %v2847
        %v2849 = vpop.f32.mrb[0].mxu0
        %2850 = vdwg.mxu0
        %2851 = vmatprep.subr.mxu0 0.0
        %2852 = vmatpush1.msra.mxu0 %v2353
        %2853 = vmatprep.subr.mxu0 0.0
        %2854 = vmatpush1.msra.mxu0 %v2354
        %2855 = vmatprep.subr.mxu0 0.0
        %2856 = vmatpush1.msra.mxu0 %v2355
        %2857 = vmatprep.subr.mxu0 0.0
        %2858 = vmatpush1.msra.mxu0 0.0
        %2859 = vmatprep.subr.mxu0 0.0
        %2860 = vmatpush1.msra.mxu0 0.0
        %2861 = vmatprep.subr.mxu0 0.0
        %2862 = vmatpush1.msra.mxu0 0.0
        %2863 = vmatprep.subr.mxu0 0.0
        %2864 = vmatpush1.msra.mxu0 0.0
        %2865 = vmatprep.subr.mxu0 0.0
        %2866 = vmatpush1.msra.mxu0 0.0
        %2867 = vmatprep.subr.mxu0 0.0
        %2868 = vmatpush1.msra.mxu0 0.0
        %2869 = vmatprep.subr.mxu0 0.0
        %2870 = vmatpush1.msra.mxu0 0.0
        %2871 = vmatprep.subr.mxu0 0.0
        %2872 = vmatpush1.msra.mxu0 0.0
        %2873 = vmatprep.subr.mxu0 0.0
        %2874 = vmatpush1.msra.mxu0 0.0
        %2875 = vmatprep.subr.mxu0 0.0
        %2876 = vmatpush1.msra.mxu0 0.0
        %2877 = vmatprep.subr.mxu0 0.0
        %2878 = vmatpush1.msra.mxu0 0.0
        %2879 = vmatprep.subr.mxu0 0.0
        %2880 = vmatpush1.msra.mxu0 0.0
        %2881 = vmatprep.subr.mxu0 0.0
        %2882 = vmatpush1.msra.mxu0 0.0
        %2883 = vmatprep.subr.mxu0 0.0
        %2884 = vmatpush1.msra.mxu0 0.0
        %2885 = vmatprep.subr.mxu0 0.0
        %2886 = vmatpush1.msra.mxu0 0.0
        %2887 = vmatprep.subr.mxu0 0.0
        %2888 = vmatpush1.msra.mxu0 0.0
        %2889 = vmatprep.subr.mxu0 0.0
        %2890 = vmatpush1.msra.mxu0 0.0
        %2891 = vmatprep.subr.mxu0 0.0
        %2892 = vmatpush1.msra.mxu0 0.0
        %2893 = vmatprep.subr.mxu0 0.0
        %2894 = vmatpush1.msra.mxu0 0.0
        %2895 = vmatprep.subr.mxu0 0.0
        %2896 = vmatpush1.msra.mxu0 0.0
        %2897 = vmatprep.subr.mxu0 0.0
        %2898 = vmatpush1.msra.mxu0 0.0
        %2899 = vmatprep.subr.mxu0 0.0
        %2900 = vmatpush1.msra.mxu0 0.0
        %2901 = vmatprep.subr.mxu0 0.0
        %2902 = vmatpush1.msra.mxu0 0.0
        %2903 = vmatprep.subr.mxu0 0.0
        %2904 = vmatpush1.msra.mxu0 0.0
        %2905 = vmatprep.subr.mxu0 0.0
        %2906 = vmatpush1.msra.mxu0 0.0
        %2907 = vmatprep.subr.mxu0 0.0
        %2908 = vmatpush1.msra.mxu0 0.0
        %2909 = vmatprep.subr.mxu0 0.0
        %2910 = vmatpush1.msra.mxu0 0.0
        %2911 = vmatprep.subr.mxu0 0.0
        %2912 = vmatpush1.msra.mxu0 0.0
        %2913 = vmatprep.subr.mxu0 0.0
        %2914 = vmatpush1.msra.mxu0 0.0
        %2915 = vmatprep.mubr.f32.mxu0 0.0
        %2916 = vmatmul.mubr.f32.gmra.mrb[0].mxu0 %v2359
        %v2917 = vpop.f32.mrb[0].mxu0
        %v2918 = vadd.f32 0.0, %v2917
        %v2919 = vpop.f32.mrb[0].mxu0
        %2920 = vdwg.mxu0
        %v2921 = vld [vmem:[%s9] sm:$0xff]
        %v2922 = vld [vmem:[%s9 + $0x8] sm:$0xff]
        %v2923 = vld [vmem:[%s9 + $0x10] sm:$0xff]
        %v2924 = vld [vmem:[%s9 + $0x18] sm:$0xff]
        %v2925 = vld [vmem:[%s9 + $0x20] sm:$0xff]
        %v2926 = vld [vmem:[%s9 + $0x28] sm:$0xff]
        %v2927 = vld [vmem:[%s9 + $0x30] sm:$0xff]
        %v2928 = vld [vmem:[%s9 + $0x38] sm:$0xff]
        %v2929 = vld [vmem:[%s9 + $0x40] sm:$0xff]
        %v2930 = vld [vmem:[%s9 + $0x48] sm:$0xff]
        %v2931 = vld [vmem:[%s9 + $0x50] sm:$0xff]
        %v2932 = vld [vmem:[%s9 + $0x58] sm:$0xff]
        %v2933 = vld [vmem:[%s9 + $0x60] sm:$0xff]
        %v2934 = vld [vmem:[%s9 + $0x68] sm:$0xff]
        %v2935 = vld [vmem:[%s9 + $0x70] sm:$0xff]
        %v2936 = vld [vmem:[%s9 + $0x78] sm:$0xff]
        %v2937 = vld [vmem:[%s10] sm:$0x1]
        %v2939 = vlaneseq
        %v2940 = vshrl.u32 %v2939, 7
        %v2941 = vsub.s32 0, %v2940
        %v2942 = vrot.slane %v2937, %v2941
        %2944 = vmatprep.subr.mxu0 0.0
        %2945 = vmatpush1.msra.mxu0 %v2921
        %2946 = vmatprep.subr.mxu0 0.0
        %2947 = vmatpush1.msra.mxu0 %v2922
        %2948 = vmatprep.subr.mxu0 0.0
        %2949 = vmatpush1.msra.mxu0 %v2923
        %2950 = vmatprep.subr.mxu0 0.0
        %2951 = vmatpush1.msra.mxu0 %v2924
        %2952 = vmatprep.subr.mxu0 0.0
        %2953 = vmatpush1.msra.mxu0 %v2925
        %2954 = vmatprep.subr.mxu0 0.0
        %2955 = vmatpush1.msra.mxu0 %v2926
        %2956 = vmatprep.subr.mxu0 0.0
        %2957 = vmatpush1.msra.mxu0 %v2927
        %2958 = vmatprep.subr.mxu0 0.0
        %2959 = vmatpush1.msra.mxu0 %v2928
        %2960 = vmatprep.subr.mxu0 0.0
        %2961 = vmatpush1.msra.mxu0 %v2929
        %2962 = vmatprep.subr.mxu0 0.0
        %2963 = vmatpush1.msra.mxu0 %v2930
        %2964 = vmatprep.subr.mxu0 0.0
        %2965 = vmatpush1.msra.mxu0 %v2931
        %2966 = vmatprep.subr.mxu0 0.0
        %2967 = vmatpush1.msra.mxu0 %v2932
        %2968 = vmatprep.subr.mxu0 0.0
        %2969 = vmatpush1.msra.mxu0 %v2933
        %2970 = vmatprep.subr.mxu0 0.0
        %2971 = vmatpush1.msra.mxu0 %v2934
        %2972 = vmatprep.subr.mxu0 0.0
        %2973 = vmatpush1.msra.mxu0 %v2935
        %2974 = vmatprep.subr.mxu0 0.0
        %2975 = vmatpush1.msra.mxu0 %v2936
        %2976 = vmatprep.subr.mxu0 0.0
        %2977 = vmatpush1.msra.mxu0 0.0
        %2978 = vmatprep.subr.mxu0 0.0
        %2979 = vmatpush1.msra.mxu0 0.0
        %2980 = vmatprep.subr.mxu0 0.0
        %2981 = vmatpush1.msra.mxu0 0.0
        %2982 = vmatprep.subr.mxu0 0.0
        %2983 = vmatpush1.msra.mxu0 0.0
        %2984 = vmatprep.subr.mxu0 0.0
        %2985 = vmatpush1.msra.mxu0 0.0
        %2986 = vmatprep.subr.mxu0 0.0
        %2987 = vmatpush1.msra.mxu0 0.0
        %2988 = vmatprep.subr.mxu0 0.0
        %2989 = vmatpush1.msra.mxu0 0.0
        %2990 = vmatprep.subr.mxu0 0.0
        %2991 = vmatpush1.msra.mxu0 0.0
        %2992 = vmatprep.subr.mxu0 0.0
        %2993 = vmatpush1.msra.mxu0 0.0
        %2994 = vmatprep.subr.mxu0 0.0
        %2995 = vmatpush1.msra.mxu0 0.0
        %2996 = vmatprep.subr.mxu0 0.0
        %2997 = vmatpush1.msra.mxu0 0.0
        %2998 = vmatprep.subr.mxu0 0.0
        %2999 = vmatpush1.msra.mxu0 0.0
        %3000 = vmatprep.subr.mxu0 0.0
        %3001 = vmatpush1.msra.mxu0 0.0
        %3002 = vmatprep.subr.mxu0 0.0
        %3003 = vmatpush1.msra.mxu0 0.0
        %3004 = vmatprep.subr.mxu0 0.0
        %3005 = vmatpush1.msra.mxu0 0.0
        %3006 = vmatprep.subr.mxu0 0.0
        %3007 = vmatpush1.msra.mxu0 0.0
        %3008 = vmatprep.mubr.f32.mxu0 0.0
        %3009 = vmatmul.mubr.f32.gmra.mrb[0].mxu0 %v2428
        %v3010 = vpop.f32.mrb[0].mxu0
        %v3011 = vadd.f32 %v2942, %v3010
        %v3012 = vpop.f32.mrb[0].mxu0
        %3013 = vmatprep.mubr.f32.mxu0 0.0
        %3014 = vmatmul.mubr.f32.gmra.mrb[0].mxu0 %v2498
        %v3015 = vpop.f32.mrb[0].mxu0
        %v3016 = vadd.f32 %v2942, %v3015
        %v3017 = vpop.f32.mrb[0].mxu0
        %3018 = vmatprep.mubr.f32.mxu0 0.0
        %3019 = vmatmul.mubr.f32.gmra.mrb[0].mxu0 %v2568
        %v3020 = vpop.f32.mrb[0].mxu0
        %v3021 = vadd.f32 %v2942, %v3020
        %v3022 = vpop.f32.mrb[0].mxu0
        %3023 = vmatprep.mubr.f32.mxu0 0.0
        %3024 = vmatmul.mubr.f32.gmra.mrb[0].mxu0 %v2638
        %v3025 = vpop.f32.mrb[0].mxu0
        %v3026 = vadd.f32 %v2942, %v3025
        %v3027 = vpop.f32.mrb[0].mxu0
        %3028 = vmatprep.mubr.f32.mxu0 0.0
        %3029 = vmatmul.mubr.f32.gmra.mrb[0].mxu0 %v2708
        %v3030 = vpop.f32.mrb[0].mxu0
        %v3031 = vadd.f32 %v2942, %v3030
        %v3032 = vpop.f32.mrb[0].mxu0
        %3033 = vmatprep.mubr.f32.mxu0 0.0
        %3034 = vmatmul.mubr.f32.gmra.mrb[0].mxu0 %v2778
        %v3035 = vpop.f32.mrb[0].mxu0
        %v3036 = vadd.f32 %v2942, %v3035
        %v3037 = vpop.f32.mrb[0].mxu0
        %3038 = vmatprep.mubr.f32.mxu0 0.0
        %3039 = vmatmul.mubr.f32.gmra.mrb[0].mxu0 %v2848
        %v3040 = vpop.f32.mrb[0].mxu0
        %v3041 = vadd.f32 %v2942, %v3040
        %v3042 = vpop.f32.mrb[0].mxu0
        %3043 = vmatprep.mubr.f32.mxu0 0.0
        %3044 = vmatmul.mubr.f32.gmra.mrb[0].mxu0 %v2918
        %v3045 = vpop.f32.mrb[0].mxu0
        %v3046 = vadd.f32 %v2942, %v3045
        %v3047 = vpop.f32.mrb[0].mxu0
        %3048 = vdwg.mxu0
        %v3049 = vmax.f32 %v3011, 0.0
        %v3050 = vmax.f32 %v3016, 0.0
        %v3051 = vmax.f32 %v3021, 0.0
        %v3052 = vmax.f32 %v3026, 0.0
        %v3053 = vmax.f32 %v3031, 0.0
        %v3054 = vmax.f32 %v3036, 0.0
        %v3055 = vmax.f32 %v3041, 0.0
        %v3056 = vmax.f32 %v3046, 0.0
        %v3057 = vld [vmem:[%s11] sm:$0xff]
        %v3058 = vld [vmem:[%s11 + $0x8] sm:$0xff]
        %v3059 = vld [vmem:[%s11 + $0x10] sm:$0xff]
        %v3060 = vld [vmem:[%s11 + $0x18] sm:$0xff]
        %v3061 = vld [vmem:[%s11 + $0x20] sm:$0xff]
        %v3062 = vld [vmem:[%s11 + $0x28] sm:$0xff]
        %v3063 = vld [vmem:[%s11 + $0x30] sm:$0xff]
        %v3064 = vld [vmem:[%s11 + $0x38] sm:$0xff]
        %v3065 = vld [vmem:[%s11 + $0x40] sm:$0xff]
        %v3066 = vld [vmem:[%s11 + $0x48] sm:$0xff]
        %v3067 = vld [vmem:[%s11 + $0x50] sm:$0xff]
        %v3068 = vld [vmem:[%s11 + $0x58] sm:$0xff]
        %v3069 = vld [vmem:[%s11 + $0x60] sm:$0xff]
        %v3070 = vld [vmem:[%s11 + $0x68] sm:$0xff]
        %v3071 = vld [vmem:[%s11 + $0x70] sm:$0xff]
        %v3072 = vld [vmem:[%s11 + $0x78] sm:$0xff]
        %v3073 = vld [vmem:[%s12] sm:$0x1]
        %v3075 = vlaneseq
        %v3076 = vshrl.u32 %v3075, 7
        %v3077 = vsub.s32 0, %v3076
        %v3078 = vrot.slane %v3073, %v3077
        %3080 = vmatprep.subr.mxu0 0.0
        %3081 = vmatpush1.msra.mxu0 %v3057
        %3082 = vmatprep.subr.mxu0 0.0
        %3083 = vmatpush1.msra.mxu0 %v3058
        %3084 = vmatprep.subr.mxu0 0.0
        %3085 = vmatpush1.msra.mxu0 %v3059
        %3086 = vmatprep.subr.mxu0 0.0
        %3087 = vmatpush1.msra.mxu0 %v3060
        %3088 = vmatprep.subr.mxu0 0.0
        %3089 = vmatpush1.msra.mxu0 %v3061
        %3090 = vmatprep.subr.mxu0 0.0
        %3091 = vmatpush1.msra.mxu0 %v3062
        %3092 = vmatprep.subr.mxu0 0.0
        %3093 = vmatpush1.msra.mxu0 %v3063
        %3094 = vmatprep.subr.mxu0 0.0
        %3095 = vmatpush1.msra.mxu0 %v3064
        %3096 = vmatprep.subr.mxu0 0.0
        %3097 = vmatpush1.msra.mxu0 %v3065
        %3098 = vmatprep.subr.mxu0 0.0
        %3099 = vmatpush1.msra.mxu0 %v3066
        %3100 = vmatprep.subr.mxu0 0.0
        %3101 = vmatpush1.msra.mxu0 %v3067
        %3102 = vmatprep.subr.mxu0 0.0
        %3103 = vmatpush1.msra.mxu0 %v3068
        %3104 = vmatprep.subr.mxu0 0.0
        %3105 = vmatpush1.msra.mxu0 %v3069
        %3106 = vmatprep.subr.mxu0 0.0
        %3107 = vmatpush1.msra.mxu0 %v3070
        %3108 = vmatprep.subr.mxu0 0.0
        %3109 = vmatpush1.msra.mxu0 %v3071
        %3110 = vmatprep.subr.mxu0 0.0
        %3111 = vmatpush1.msra.mxu0 %v3072
        %3112 = vmatprep.subr.mxu0 0.0
        %3113 = vmatpush1.msra.mxu0 0.0
        %3114 = vmatprep.subr.mxu0 0.0
        %3115 = vmatpush1.msra.mxu0 0.0
        %3116 = vmatprep.subr.mxu0 0.0
        %3117 = vmatpush1.msra.mxu0 0.0
        %3118 = vmatprep.subr.mxu0 0.0
        %3119 = vmatpush1.msra.mxu0 0.0
        %3120 = vmatprep.subr.mxu0 0.0
        %3121 = vmatpush1.msra.mxu0 0.0
        %3122 = vmatprep.subr.mxu0 0.0
        %3123 = vmatpush1.msra.mxu0 0.0
        %3124 = vmatprep.subr.mxu0 0.0
        %3125 = vmatpush1.msra.mxu0 0.0
        %3126 = vmatprep.subr.mxu0 0.0
        %3127 = vmatpush1.msra.mxu0 0.0
        %3128 = vmatprep.subr.mxu0 0.0
        %3129 = vmatpush1.msra.mxu0 0.0
        %3130 = vmatprep.subr.mxu0 0.0
        %3131 = vmatpush1.msra.mxu0 0.0
        %3132 = vmatprep.subr.mxu0 0.0
        %3133 = vmatpush1.msra.mxu0 0.0
        %3134 = vmatprep.subr.mxu0 0.0
        %3135 = vmatpush1.msra.mxu0 0.0
        %3136 = vmatprep.subr.mxu0 0.0
        %3137 = vmatpush1.msra.mxu0 0.0
        %3138 = vmatprep.subr.mxu0 0.0
        %3139 = vmatpush1.msra.mxu0 0.0
        %3140 = vmatprep.subr.mxu0 0.0
        %3141 = vmatpush1.msra.mxu0 0.0
        %3142 = vmatprep.subr.mxu0 0.0
        %3143 = vmatpush1.msra.mxu0 0.0
        %3144 = vmatprep.mubr.f32.mxu0 0.0
        %3145 = vmatmul.mubr.f32.gmra.mrb[0].mxu0 %v3049
        %v3146 = vpop.f32.mrb[0].mxu0
        %v3147 = vadd.f32 %v3078, %v3146
        %v3148 = vpop.f32.mrb[0].mxu0
        %3149 = vmatprep.mubr.f32.mxu0 0.0
        %3150 = vmatmul.mubr.f32.gmra.mrb[0].mxu0 %v3050
        %v3151 = vpop.f32.mrb[0].mxu0
        %v3152 = vadd.f32 %v3078, %v3151
        %v3153 = vpop.f32.mrb[0].mxu0
        %3154 = vmatprep.mubr.f32.mxu0 0.0
        %3155 = vmatmul.mubr.f32.gmra.mrb[0].mxu0 %v3051
        %v3156 = vpop.f32.mrb[0].mxu0
        %v3157 = vadd.f32 %v3078, %v3156
        %v3158 = vpop.f32.mrb[0].mxu0
        %3159 = vmatprep.mubr.f32.mxu0 0.0
        %3160 = vmatmul.mubr.f32.gmra.mrb[0].mxu0 %v3052
        %v3161 = vpop.f32.mrb[0].mxu0
        %v3162 = vadd.f32 %v3078, %v3161
        %v3163 = vpop.f32.mrb[0].mxu0
        %3164 = vmatprep.mubr.f32.mxu0 0.0
        %3165 = vmatmul.mubr.f32.gmra.mrb[0].mxu0 %v3053
        %v3166 = vpop.f32.mrb[0].mxu0
        %v3167 = vadd.f32 %v3078, %v3166
        %v3168 = vpop.f32.mrb[0].mxu0
        %3169 = vmatprep.mubr.f32.mxu0 0.0
        %3170 = vmatmul.mubr.f32.gmra.mrb[0].mxu0 %v3054
        %v3171 = vpop.f32.mrb[0].mxu0
        %v3172 = vadd.f32 %v3078, %v3171
        %v3173 = vpop.f32.mrb[0].mxu0
        %3174 = vmatprep.mubr.f32.mxu0 0.0
        %3175 = vmatmul.mubr.f32.gmra.mrb[0].mxu0 %v3055
        %v3176 = vpop.f32.mrb[0].mxu0
        %v3177 = vadd.f32 %v3078, %v3176
        %v3178 = vpop.f32.mrb[0].mxu0
        %3179 = vmatprep.mubr.f32.mxu0 0.0
        %3180 = vmatmul.mubr.f32.gmra.mrb[0].mxu0 %v3056
        %v3181 = vpop.f32.mrb[0].mxu0
        %v3182 = vadd.f32 %v3078, %v3181
        %v3183 = vpop.f32.mrb[0].mxu0
        %3184 = vdwg.mxu0
        %v3185 = vmax.f32 %v3147, 0.0
        %v3186 = vmax.f32 %v3152, 0.0
        %v3187 = vmax.f32 %v3157, 0.0
        %v3188 = vmax.f32 %v3162, 0.0
        %v3189 = vmax.f32 %v3167, 0.0
        %v3190 = vmax.f32 %v3172, 0.0
        %v3191 = vmax.f32 %v3177, 0.0
        %v3192 = vmax.f32 %v3182, 0.0
        %v3193 = vld [vmem:[%s13] sm:$0xff]
        %v3194 = vld [vmem:[%s13 + $0x8] sm:$0xff]
        %v3195 = vld [vmem:[%s13 + $0x10] sm:$0xff]
        %v3196 = vld [vmem:[%s13 + $0x18] sm:$0xff]
        %v3197 = vld [vmem:[%s13 + $0x20] sm:$0xff]
        %v3198 = vld [vmem:[%s13 + $0x28] sm:$0xff]
        %v3199 = vld [vmem:[%s13 + $0x30] sm:$0xff]
        %v3200 = vld [vmem:[%s13 + $0x38] sm:$0xff]
        %v3201 = vld [vmem:[%s13 + $0x40] sm:$0xff]
        %v3202 = vld [vmem:[%s13 + $0x48] sm:$0xff]
        %v3203 = vld [vmem:[%s13 + $0x50] sm:$0xff]
        %v3204 = vld [vmem:[%s13 + $0x58] sm:$0xff]
        %v3205 = vld [vmem:[%s13 + $0x60] sm:$0xff]
        %v3206 = vld [vmem:[%s13 + $0x68] sm:$0xff]
        %v3207 = vld [vmem:[%s13 + $0x70] sm:$0xff]
        %v3208 = vld [vmem:[%s13 + $0x78] sm:$0xff]
        %v3209 = vld [vmem:[%s14] sm:$0x1]
        %v3211 = vlaneseq
        %v3212 = vshrl.u32 %v3211, 7
        %v3213 = vsub.s32 0, %v3212
        %v3214 = vrot.slane %v3209, %v3213
        %3216 = vmatprep.subr.mxu0 0.0
        %3217 = vmatpush1.msra.mxu0 %v3193
        %3218 = vmatprep.subr.mxu0 0.0
        %3219 = vmatpush1.msra.mxu0 %v3194
        %3220 = vmatprep.subr.mxu0 0.0
        %3221 = vmatpush1.msra.mxu0 %v3195
        %3222 = vmatprep.subr.mxu0 0.0
        %3223 = vmatpush1.msra.mxu0 %v3196
        %3224 = vmatprep.subr.mxu0 0.0
        %3225 = vmatpush1.msra.mxu0 %v3197
        %3226 = vmatprep.subr.mxu0 0.0
        %3227 = vmatpush1.msra.mxu0 %v3198
        %3228 = vmatprep.subr.mxu0 0.0
        %3229 = vmatpush1.msra.mxu0 %v3199
        %3230 = vmatprep.subr.mxu0 0.0
        %3231 = vmatpush1.msra.mxu0 %v3200
        %3232 = vmatprep.subr.mxu0 0.0
        %3233 = vmatpush1.msra.mxu0 %v3201
        %3234 = vmatprep.subr.mxu0 0.0
        %3235 = vmatpush1.msra.mxu0 %v3202
        %3236 = vmatprep.subr.mxu0 0.0
        %3237 = vmatpush1.msra.mxu0 %v3203
        %3238 = vmatprep.subr.mxu0 0.0
        %3239 = vmatpush1.msra.mxu0 %v3204
        %3240 = vmatprep.subr.mxu0 0.0
        %3241 = vmatpush1.msra.mxu0 %v3205
        %3242 = vmatprep.subr.mxu0 0.0
        %3243 = vmatpush1.msra.mxu0 %v3206
        %3244 = vmatprep.subr.mxu0 0.0
        %3245 = vmatpush1.msra.mxu0 %v3207
        %3246 = vmatprep.subr.mxu0 0.0
        %3247 = vmatpush1.msra.mxu0 %v3208
        %3248 = vmatprep.subr.mxu0 0.0
        %3249 = vmatpush1.msra.mxu0 0.0
        %3250 = vmatprep.subr.mxu0 0.0
        %3251 = vmatpush1.msra.mxu0 0.0
        %3252 = vmatprep.subr.mxu0 0.0
        %3253 = vmatpush1.msra.mxu0 0.0
        %3254 = vmatprep.subr.mxu0 0.0
        %3255 = vmatpush1.msra.mxu0 0.0
        %3256 = vmatprep.subr.mxu0 0.0
        %3257 = vmatpush1.msra.mxu0 0.0
        %3258 = vmatprep.subr.mxu0 0.0
        %3259 = vmatpush1.msra.mxu0 0.0
        %3260 = vmatprep.subr.mxu0 0.0
        %3261 = vmatpush1.msra.mxu0 0.0
        %3262 = vmatprep.subr.mxu0 0.0
        %3263 = vmatpush1.msra.mxu0 0.0
        %3264 = vmatprep.subr.mxu0 0.0
        %3265 = vmatpush1.msra.mxu0 0.0
        %3266 = vmatprep.subr.mxu0 0.0
        %3267 = vmatpush1.msra.mxu0 0.0
        %3268 = vmatprep.subr.mxu0 0.0
        %3269 = vmatpush1.msra.mxu0 0.0
        %3270 = vmatprep.subr.mxu0 0.0
        %3271 = vmatpush1.msra.mxu0 0.0
        %3272 = vmatprep.subr.mxu0 0.0
        %3273 = vmatpush1.msra.mxu0 0.0
        %3274 = vmatprep.subr.mxu0 0.0
        %3275 = vmatpush1.msra.mxu0 0.0
        %3276 = vmatprep.subr.mxu0 0.0
        %3277 = vmatpush1.msra.mxu0 0.0
        %3278 = vmatprep.subr.mxu0 0.0
        %3279 = vmatpush1.msra.mxu0 0.0
        %3280 = vmatprep.mubr.f32.mxu0 0.0
        %3281 = vmatmul.mubr.f32.gmra.mrb[0].mxu0 %v3185
        %v3282 = vpop.f32.mrb[0].mxu0
        %v3283 = vadd.f32 %v3214, %v3282
        %v3284 = vpop.f32.mrb[0].mxu0
        %3285 = vmatprep.mubr.f32.mxu0 0.0
        %3286 = vmatmul.mubr.f32.gmra.mrb[0].mxu0 %v3186
        %v3287 = vpop.f32.mrb[0].mxu0
        %v3288 = vadd.f32 %v3214, %v3287
        %v3289 = vpop.f32.mrb[0].mxu0
        %3290 = vmatprep.mubr.f32.mxu0 0.0
        %3291 = vmatmul.mubr.f32.gmra.mrb[0].mxu0 %v3187
        %v3292 = vpop.f32.mrb[0].mxu0
        %v3293 = vadd.f32 %v3214, %v3292
        %v3294 = vpop.f32.mrb[0].mxu0
        %3295 = vmatprep.mubr.f32.mxu0 0.0
        %3296 = vmatmul.mubr.f32.gmra.mrb[0].mxu0 %v3188
        %v3297 = vpop.f32.mrb[0].mxu0
        %v3298 = vadd.f32 %v3214, %v3297
        %v3299 = vpop.f32.mrb[0].mxu0
        %3300 = vmatprep.mubr.f32.mxu0 0.0
        %3301 = vmatmul.mubr.f32.gmra.mrb[0].mxu0 %v3189
        %v3302 = vpop.f32.mrb[0].mxu0
        %v3303 = vadd.f32 %v3214, %v3302
        %v3304 = vpop.f32.mrb[0].mxu0
        %3305 = vmatprep.mubr.f32.mxu0 0.0
        %3306 = vmatmul.mubr.f32.gmra.mrb[0].mxu0 %v3190
        %v3307 = vpop.f32.mrb[0].mxu0
        %v3308 = vadd.f32 %v3214, %v3307
        %v3309 = vpop.f32.mrb[0].mxu0
        %3310 = vmatprep.mubr.f32.mxu0 0.0
        %3311 = vmatmul.mubr.f32.gmra.mrb[0].mxu0 %v3191
        %v3312 = vpop.f32.mrb[0].mxu0
        %v3313 = vadd.f32 %v3214, %v3312
        %v3314 = vpop.f32.mrb[0].mxu0
        %3315 = vmatprep.mubr.f32.mxu0 0.0
        %3316 = vmatmul.mubr.f32.gmra.mrb[0].mxu0 %v3192
        %v3317 = vpop.f32.mrb[0].mxu0
        %v3318 = vadd.f32 %v3214, %v3317
        %v3319 = vpop.f32.mrb[0].mxu0
        %3320 = vdwg.mxu0
        %v3321 = vadd.f32 %v536, %v3283
        %v3322 = vadd.f32 %v537, %v3288
        %v3323 = vadd.f32 %v538, %v3293
        %v3324 = vadd.f32 %v539, %v3298
        %v3325 = vadd.f32 %v540, %v3303
        %v3326 = vadd.f32 %v541, %v3308
        %v3327 = vadd.f32 %v542, %v3313
        %v3328 = vadd.f32 %v543, %v3318
        %3329 = vst.msk [vmem:[%s534] sm:$0xff] %vm552, %v3321
        %3330 = vst.msk [vmem:[%s534 + $0x8] sm:$0xff] %vm552, %v3322
        %3331 = vst.msk [vmem:[%s534 + $0x10] sm:$0xff] %vm552, %v3323
        %3332 = vst.msk [vmem:[%s534 + $0x18] sm:$0xff] %vm552, %v3324
        %3333 = vst.msk [vmem:[%s534 + $0x20] sm:$0xff] %vm552, %v3325
        %3334 = vst.msk [vmem:[%s534 + $0x28] sm:$0xff] %vm552, %v3326
        %3335 = vst.msk [vmem:[%s534 + $0x30] sm:$0xff] %vm552, %v3327
        %3336 = vst.msk [vmem:[%s534 + $0x38] sm:$0xff] %vm552, %v3328
        %s3337 = smul.u32 8, %s28
        %p3338 = scmp.lt.s32.totalorder %s3337, 15
        %s3339 = scalar_select %p3338, %s3337, 15
        %s3340 = smul.addr %s3339, 8
        %s3341 = scalar_lea.vmem %s15, %s3340
        // Predicated region
        $region93: #{tpu_custom_call.1} parent=79 // pred_check
          %p3342 = pneg %p366
        $region94: #{tpu_custom_call.1} parent=79 // pred_check_branch
          %3344 = sbr.rel (%p3342) target = $region96
        $region95: #{tpu_custom_call.1} parent=79 // pred_region
          %s3345 = smul.u32 8, %s28
        $region96: #{tpu_custom_call.1} parent=79 // pred_fallthru
          _
      $region80: #{tpu_custom_call.1} parent=5 // pred_fallthru
        _
      %p3346 = scmp.le.s32.totalorder 2, %s23
      // Predicated region
      $region97: #{tpu_custom_call.1} parent=5 // pred_check
        %p3347 = pneg %p3346
      $region98: #{tpu_custom_call.1} parent=5 // pred_check_branch
        %3349 = sbr.rel (%p3347) target = $region100
      $region99: #{tpu_custom_call.1} parent=5 // pred_region
        %s3350 = ssub.s32 %s23, 2
        // Predicated region
        $region101: #{tpu_custom_call.1} parent=99 // pred_check
          %p3351 = pneg %p372
        $region102: #{tpu_custom_call.1} parent=99 // pred_check_branch
          %3353 = sbr.rel (%p3351) target = $region104
        $region103: #{tpu_custom_call.1} parent=99 // pred_region
          %s3354 = smul.u32 8, %s29
          %p3355 = scmp.lt.s32.totalorder %s3354, 15
          %s3356 = scalar_select %p3355, %s3354, 15
          %s3357 = smul.addr %s3356, 8
          %s3358 = scalar_lea.vmem %s15, %s3357
        $region104: #{tpu_custom_call.1} parent=99 // pred_fallthru
          _
      $region100: #{tpu_custom_call.1} parent=5 // pred_fallthru
        _
    $region6: #{tpu_custom_call.1} parent=1 // loop_footer
      %s27 = sadd.s32 1, %s23
    $region7: #{tpu_custom_call.1} parent=1 // loop_footer_branch
      %22 = sbr.rel target = $region3
    $region8: #{tpu_custom_call.1} parent=1 // loop_exit
      _
    %3359 = vsyncpa [#allocation3], 1
    %s3360 = scalar_lea.sflag [#allocation3], 1
    %3361 = vsyncpa %s3360, 1
    %3362 = vsyncpa [#allocation5], 1

</llo_original>
